<compile_context>
chip_gen: v7x
topology: tpu7x:2x2x1
jax: 0.10.0
libtpu: 0.0.40
codegen_flags: <defaults>
</compile_context>

<pallas_src>
import math
import functools

import jax
import jax.numpy as jnp
from jax.experimental import pallas as pl
from jax.experimental.pallas import tpu as pltpu

# ---- small config (consistent with TransformerConfig, scaled down) ----
VOCAB = 128
D_MODEL = 32
NHEAD = 4
HEAD_DIM = D_MODEL // NHEAD
NUM_LAYERS = 2
DIM_FF = 64
NUM_ATTACK_TYPES = 10
NUM_TARGET_MODELS = 5
BATCH = 2
SEQ = 8
MAX_LEN = 64
LN_EPS = 1e-5


def _full_spec(shape):
    # whole-array block; grid=(1,) so index_map takes one grid index
    return pl.BlockSpec(shape, lambda i: (0,) * len(shape))


def _layer_norm(x, w, b):
    mean = jnp.mean(x, axis=-1, keepdims=True)
    var = jnp.mean((x - mean) ** 2, axis=-1, keepdims=True)
    return (x - mean) * jax.lax.rsqrt(var + LN_EPS) * w + b


# ----------------------------- fused Pallas kernel -----------------------------

def fused_forward_kernel(tok_ref, pe_ref, cond_ref, sty_ref, style_w_ref,
                         wqkv_ref, bqkv_ref, wo_ref,
                         w1_ref, b1_ref, w2_ref,
                         misc_ref,
                         out_w_ref, out_b_ref,
                         logits_ref,
                         *, nhead, head_dim, num_layers, batch, seq):
    """Whole AttackTransformer forward on a folded (B*S, D) activation slab."""
    f32 = jnp.float32
    bf16 = jnp.bfloat16
    D = nhead * head_dim

    pe = pe_ref[...]                                                  # (S, D)

    # conditioning: (attack + target + style_bias) [pre-added] + style_linear(style)
    style_e = jnp.dot(sty_ref[...], style_w_ref[...],
                      preferred_element_type=f32)                     # (B, D)
    cond = cond_ref[...] + style_e                                    # (B, D)

    # combine: token embeds (sqrt(D) folded into table) + pos enc + conditioning
    # (dropout layers = identity, inference semantics)
    rows = [tok_ref[b] + pe + cond[b:b + 1, :] for b in range(batch)]
    x = jnp.concatenate(rows, axis=0)                                 # (B*S, D)

    for l in range(num_layers):                  # static unroll over layers
        misc = misc_ref[l]                                            # (6, D)
        bo = misc[0:1, :]
        ln1w = misc[1:2, :]
        ln1b = misc[2:3, :]
        b2 = misc[3:4, :]
        ln2w = misc[4:5, :]
        ln2b = misc[5:6, :]

        # ---- fused QKV projection on the whole slab (1/sqrt(dh) folded into Q) ----
        qkv = jnp.dot(x.astype(bf16), wqkv_ref[l],
                      preferred_element_type=f32) + bqkv_ref[l]       # (B*S, 3D)
        q = qkv[:, 0:D]
        k = qkv[:, D:2 * D]
        v = qkv[:, 2 * D:3 * D]

        # ---- per-(batch, head) attention scores; softmax batched across tiles ----
        s_tiles = []
        for b in range(batch):
            r0 = b * seq
            for h in range(nhead):
                c0 = h * head_dim
                qh = q[r0:r0 + seq, c0:c0 + head_dim]                 # (S, dh)
                kh = k[r0:r0 + seq, c0:c0 + head_dim]                 # (S, dh)
                s_tiles.append(jax.lax.dot_general(
                    qh, kh, (((1,), (1,)), ((), ())),
                    preferred_element_type=f32))                      # (S, S)
        s_all = jnp.concatenate(s_tiles, axis=0)                      # (B*H*S, S)
        s_all = s_all - jnp.max(s_all, axis=-1, keepdims=True)
        p_all = jnp.exp(s_all)
        p_all = p_all * pl.reciprocal(
            jnp.sum(p_all, axis=-1, keepdims=True), approx=True)

        # ---- per-(batch, head) context; reassemble one (B*S, D) slab ----
        batch_rows = []
        idx = 0
        for b in range(batch):
            r0 = b * seq
            head_ctx = []
            for h in range(nhead):
                c0 = h * head_dim
                p = p_all[idx * seq:(idx + 1) * seq, :]               # (S, S)
                vh = v[r0:r0 + seq, c0:c0 + head_dim]                 # (S, dh)
                head_ctx.append(jnp.dot(p, vh,
                                        preferred_element_type=f32))  # (S, dh)
                idx += 1
            batch_rows.append(jnp.concatenate(head_ctx, axis=1))      # (S, D)
        ctx = jnp.concatenate(batch_rows, axis=0)                     # (B*S, D)

        # ---- single full-width output projection ----
        attn = jnp.dot(ctx.astype(bf16), wo_ref[l],
                       preferred_element_type=f32) + bo               # (B*S, D)

        # ---- residual + LayerNorm 1 (post-LN) ----
        x1 = _layer_norm(x + attn, ln1w, ln1b)

        # ---- feed-forward: Linear -> ReLU -> Linear ----
        h1 = jnp.dot(x1.astype(bf16), w1_ref[l],
                     preferred_element_type=f32) + b1_ref[l]          # (B*S, FF)
        h1 = jnp.maximum(h1, 0.0)
        ff = jnp.dot(h1.astype(bf16), w2_ref[l],
                     preferred_element_type=f32) + b2                 # (B*S, D)

        # ---- residual + LayerNorm 2 ----
        x = _layer_norm(x1 + ff, ln2w, ln2b)

    # ---- vocab projection: single lane-dense (B*S, 128) dot, only HBM store ----
    logits = jnp.dot(x.astype(bf16), out_w_ref[...],
                     preferred_element_type=f32) + out_b_ref[...]     # (B*S, V)
    for b in range(batch):
        logits_ref[b] = logits[b * seq:(b + 1) * seq, :]


# ----------------------------- wrapper -----------------------------

def attack_transformer_pallas(kp, tok, pe, cond_base, sty):
    B, S, D = tok.shape
    V = kp['out_w'].shape[1]
    kern = functools.partial(fused_forward_kernel, nhead=NHEAD,
                             head_dim=HEAD_DIM, num_layers=NUM_LAYERS,
                             batch=B, seq=S)
    args = (tok, pe, cond_base, sty,
            kp['style_w'],
            kp['wqkv'], kp['bqkv'], kp['wo'],
            kp['w1'], kp['b1'], kp['w2'],
            kp['misc'],
            kp['out_w'], kp['out_b'])
    return pl.pallas_call(
        kern,
        out_shape=jax.ShapeDtypeStruct((B, S, V), jnp.float32),
        grid=(1,),
        in_specs=[_full_spec(a.shape) for a in args],
        out_specs=_full_spec((B, S, V)),
        compiler_params=pltpu.CompilerParams(dimension_semantics=("arbitrary",)),
    )(*args)


# ----------------------------- params / glue -----------------------------

def positional_encoding(max_len, d_model):
    position = jnp.arange(max_len, dtype=jnp.float32)[:, None]
    div_term = jnp.exp(jnp.arange(0, d_model, 2, dtype=jnp.float32)
                       * (-math.log(10000.0) / d_model))
    pe = jnp.zeros((max_len, d_model), jnp.float32)
    pe = pe.at[:, 0::2].set(jnp.sin(position * div_term))
    pe = pe.at[:, 1::2].set(jnp.cos(position * div_term))
    return pe


def init_params(key):
    ks = jax.random.split(key, 8 + NUM_LAYERS)
    u = lambda k, shape, r=0.1: jax.random.uniform(k, shape, jnp.float32, -r, r)
    params = {
        'token_emb': u(ks[0], (VOCAB, D_MODEL)),                 # uniform(-0.1, 0.1)
        'attack_emb': u(ks[1], (NUM_ATTACK_TYPES, D_MODEL)),
        'target_emb': u(ks[2], (NUM_TARGET_MODELS, D_MODEL)),
        'style_w': u(ks[3], (4, D_MODEL)),
        'style_b': u(ks[4], (1, D_MODEL)),
        'out_w': u(ks[5], (D_MODEL, VOCAB)),
        'out_b': jnp.zeros((1, VOCAB), jnp.float32),             # zeroed as in _init_weights
    }
    layers = []
    for l in range(NUM_LAYERS):
        lk = jax.random.split(ks[8 + l], 8)
        layers.append({
            'wqkv': u(lk[0], (D_MODEL, 3 * D_MODEL)),            # in_proj (pre-transposed)
            'bqkv': u(lk[1], (1, 3 * D_MODEL)),
            'wo':   u(lk[2], (D_MODEL, D_MODEL)),                # out_proj (pre-transposed)
            'bo':   u(lk[3], (1, D_MODEL)),
            'w1':   u(lk[4], (D_MODEL, DIM_FF)),
            'b1':   u(lk[5], (1, DIM_FF)),
            'w2':   u(lk[6], (DIM_FF, D_MODEL)),
            'b2':   u(lk[7], (1, D_MODEL)),
            'ln1w': jnp.ones((1, D_MODEL), jnp.float32),
            'ln1b': jnp.zeros((1, D_MODEL), jnp.float32),
            'ln2w': jnp.ones((1, D_MODEL), jnp.float32),
            'ln2b': jnp.zeros((1, D_MODEL), jnp.float32),
        })
    params['layers'] = layers
    return params


def prepare_kernel_params(params):
    """One-time prep (outside hot path):
       * fold sqrt(d_model) into the token embedding table,
       * fold 1/sqrt(dh) into the Q part of the fused QKV weights/bias,
       * pack small per-layer vectors (bo, ln1w, ln1b, b2, ln2w, ln2b) into one slab,
       * cast matmul weights to bf16 (f32 accumulate in-kernel),
       * precompute the positional-encoding table."""
    D = D_MODEL
    inv = 1.0 / math.sqrt(HEAD_DIM)
    bf16 = jnp.bfloat16

    qkv_scale = jnp.concatenate([jnp.full((1, D), inv, jnp.float32),
                                 jnp.ones((1, 2 * D), jnp.float32)], axis=1)

    wqkv_l, bqkv_l, wo_l, w1_l, b1_l, w2_l, misc_l = [], [], [], [], [], [], []
    for lp in params['layers']:
        wqkv_l.append((lp['wqkv'] * qkv_scale).astype(bf16))     # fold 1/sqrt(dh) into Q
        bqkv_l.append(lp['bqkv'] * qkv_scale)
        wo_l.append(lp['wo'].astype(bf16))
        w1_l.append(lp['w1'].astype(bf16))
        b1_l.append(lp['b1'])
        w2_l.append(lp['w2'].astype(bf16))
        misc_l.append(jnp.concatenate([lp['bo'], lp['ln1w'], lp['ln1b'],
                                       lp['b2'], lp['ln2w'], lp['ln2b']], axis=0))

    stk = lambda xs: jnp.stack(xs, axis=0)
    return {
        'token_emb': params['token_emb'] * math.sqrt(D),         # fold sqrt(d_model)
        'attack_emb': params['attack_emb'],
        'target_emb': params['target_emb'],
        'style_w': params['style_w'], 'style_b': params['style_b'],
        'out_w': params['out_w'].astype(bf16), 'out_b': params['out_b'],
        'pe': positional_encoding(MAX_LEN, D),                   # precomputed once
        'wqkv': stk(wqkv_l), 'bqkv': stk(bqkv_l), 'wo': stk(wo_l),
        'w1': stk(w1_l), 'b1': stk(b1_l), 'w2': stk(w2_l),
        'misc': stk(misc_l),
    }


@jax.jit
def attack_transformer_forward(kp, input_ids, attack_type, target_model,
                               style_params):
    """Matches AttackTransformer.forward (attention_mask=None, inference mode)."""
    B, S = input_ids.shape
    # embedding gathers are glue (table lookups); hot-path compute is in the kernel
    tok = kp['token_emb'][input_ids]                      # (B, S, D), sqrt(D) pre-folded
    cond_base = (kp['attack_emb'][attack_type]
                 + kp['target_emb'][target_model]
                 + kp['style_b'])                          # (B, D): attack + target + style bias
    pe = kp['pe'][:S]                                      # (S, D) static slice of table
    # TODO(synk): dropout layers (p=0.1) are identity here (inference semantics)
    # TODO(synk): attention_mask / src_key_padding_mask path not implemented (forward uses None)
    return attack_transformer_pallas(kp, tok, pe, cond_base, style_params)


# ----------------------------- main -----------------------------

if __name__ == "__main__":
    key = jax.random.PRNGKey(0)
    kparam_key, ki, ka, kt, ksy = jax.random.split(key, 5)

    params = init_params(kparam_key)
    kparams = prepare_kernel_params(params)

    input_ids = jax.random.randint(ki, (BATCH, SEQ), 0, VOCAB, dtype=jnp.int32)
    attack_type = jax.random.randint(ka, (BATCH,), 0, NUM_ATTACK_TYPES, dtype=jnp.int32)
    target_model = jax.random.randint(kt, (BATCH,), 0, NUM_TARGET_MODELS, dtype=jnp.int32)
    style_params = jax.random.uniform(ksy, (BATCH, 4), jnp.float32, -1.0, 1.0)

    logits = attack_transformer_forward(kparams, input_ids, attack_type,
                                        target_model, style_params)
    jax.block_until_ready(logits)
    assert logits.shape == (BATCH, SEQ, VOCAB)
    assert bool(jnp.all(jnp.isfinite(logits)))
    print("KERNEL_OK")
</pallas_src>

<mosaic_0001>
module attributes {stable_mosaic.version = 11 : i64} {
  func.func @fused_forward_kernel(%arg0: i32, %arg1: memref<2x8x32xf32, #tpu.memory_space<vmem>>, %arg2: memref<8x32xf32, #tpu.memory_space<vmem>>, %arg3: memref<2x32xf32, #tpu.memory_space<vmem>>, %arg4: memref<2x4xf32, #tpu.memory_space<vmem>>, %arg5: memref<4x32xf32, #tpu.memory_space<vmem>>, %arg6: memref<2x32x96xbf16, #tpu.memory_space<vmem>>, %arg7: memref<2x1x96xf32, #tpu.memory_space<vmem>>, %arg8: memref<2x32x32xbf16, #tpu.memory_space<vmem>>, %arg9: memref<2x32x64xbf16, #tpu.memory_space<vmem>>, %arg10: memref<2x1x64xf32, #tpu.memory_space<vmem>>, %arg11: memref<2x64x32xbf16, #tpu.memory_space<vmem>>, %arg12: memref<2x6x32xf32, #tpu.memory_space<vmem>>, %arg13: memref<32x128xbf16, #tpu.memory_space<vmem>>, %arg14: memref<1x128xf32, #tpu.memory_space<vmem>>, %arg15: memref<2x8x128xf32, #tpu.memory_space<vmem>>) attributes {dimension_semantics = [#tpu.dimension_semantics<arbitrary>], iteration_bounds = array<i64: 1>, scalar_prefetch = 0 : i64, scratch_operands = 0 : i64, tpu.core_type = #tpu.core_type<tc>, window_params = [{pipeline_mode = #tpu.pipeline_mode<synchronous>, transform_indices = @transform_0, window_bounds = array<i64: 2, 8, 32>}, {pipeline_mode = #tpu.pipeline_mode<synchronous>, transform_indices = @transform_1, window_bounds = array<i64: 8, 32>}, {pipeline_mode = #tpu.pipeline_mode<synchronous>, transform_indices = @transform_2, window_bounds = array<i64: 2, 32>}, {pipeline_mode = #tpu.pipeline_mode<synchronous>, transform_indices = @transform_3, window_bounds = array<i64: 2, 4>}, {pipeline_mode = #tpu.pipeline_mode<synchronous>, transform_indices = @transform_4, window_bounds = array<i64: 4, 32>}, {pipeline_mode = #tpu.pipeline_mode<synchronous>, transform_indices = @transform_5, window_bounds = array<i64: 2, 32, 96>}, {pipeline_mode = #tpu.pipeline_mode<synchronous>, transform_indices = @transform_6, window_bounds = array<i64: 2, 1, 96>}, {pipeline_mode = #tpu.pipeline_mode<synchronous>, transform_indices = @transform_7, window_bounds = array<i64: 2, 32, 32>}, {pipeline_mode = #tpu.pipeline_mode<synchronous>, transform_indices = @transform_8, window_bounds = array<i64: 2, 32, 64>}, {pipeline_mode = #tpu.pipeline_mode<synchronous>, transform_indices = @transform_9, window_bounds = array<i64: 2, 1, 64>}, {pipeline_mode = #tpu.pipeline_mode<synchronous>, transform_indices = @transform_10, window_bounds = array<i64: 2, 64, 32>}, {pipeline_mode = #tpu.pipeline_mode<synchronous>, transform_indices = @transform_11, window_bounds = array<i64: 2, 6, 32>}, {pipeline_mode = #tpu.pipeline_mode<synchronous>, transform_indices = @transform_12, window_bounds = array<i64: 32, 128>}, {pipeline_mode = #tpu.pipeline_mode<synchronous>, transform_indices = @transform_13, window_bounds = array<i64: 1, 128>}, {pipeline_mode = #tpu.pipeline_mode<synchronous>, transform_indices = @transform_14, window_bounds = array<i64: 2, 8, 128>}]} {
    %c0 = arith.constant 0 : index
    %c0_0 = arith.constant 0 : index
    %0 = vector.load %arg2[%c0, %c0_0] : memref<8x32xf32, #tpu.memory_space<vmem>>, vector<8x32xf32>
    %c0_1 = arith.constant 0 : index
    %c0_2 = arith.constant 0 : index
    %1 = vector.load %arg4[%c0_1, %c0_2] : memref<2x4xf32, #tpu.memory_space<vmem>>, vector<2x4xf32>
    %c0_3 = arith.constant 0 : index
    %c0_4 = arith.constant 0 : index
    %2 = vector.load %arg5[%c0_3, %c0_4] : memref<4x32xf32, #tpu.memory_space<vmem>>, vector<4x32xf32>
    %cst = arith.constant dense<0.000000e+00> : vector<2x32xf32>
    %3 = tpu.matmul %1, %2, %cst {dimension_numbers = #tpu.dot_dimension_numbers<[1], [0], [0], [1], [0, 0, 1, 1], [], []>} : vector<2x4xf32>, vector<4x32xf32>, vector<2x32xf32> -> vector<2x32xf32>
    %c0_5 = arith.constant 0 : index
    %c0_6 = arith.constant 0 : index
    %4 = vector.load %arg3[%c0_5, %c0_6] : memref<2x32xf32, #tpu.memory_space<vmem>>, vector<2x32xf32>
    %5 = arith.addf %4, %3 : vector<2x32xf32>
    %c0_7 = arith.constant 0 : index
    %c0_8 = arith.constant 0 : index
    %c0_9 = arith.constant 0 : index
    %6 = vector.load %arg1[%c0_7, %c0_8, %c0_9] : memref<2x8x32xf32, #tpu.memory_space<vmem>>, vector<1x8x32xf32>
    %7 = vector.shape_cast %6 : vector<1x8x32xf32> to vector<8x32xf32>
    %8 = arith.addf %7, %0 : vector<8x32xf32>
    %9 = vector.extract_strided_slice %5 {offsets = [0, 0], sizes = [1, 32], strides = [1, 1]} : vector<2x32xf32> to vector<1x32xf32>
    %10 = vector.broadcast %9 : vector<1x32xf32> to vector<8x32xf32>
    %11 = arith.addf %8, %10 : vector<8x32xf32>
    %c1 = arith.constant 1 : index
    %c0_10 = arith.constant 0 : index
    %c0_11 = arith.constant 0 : index
    %12 = vector.load %arg1[%c1, %c0_10, %c0_11] : memref<2x8x32xf32, #tpu.memory_space<vmem>>, vector<1x8x32xf32>
    %13 = vector.shape_cast %12 : vector<1x8x32xf32> to vector<8x32xf32>
    %14 = arith.addf %13, %0 : vector<8x32xf32>
    %15 = vector.extract_strided_slice %5 {offsets = [1, 0], sizes = [1, 32], strides = [1, 1]} : vector<2x32xf32> to vector<1x32xf32>
    %16 = vector.broadcast %15 : vector<1x32xf32> to vector<8x32xf32>
    %17 = arith.addf %14, %16 : vector<8x32xf32>
    %18 = tpu.concatenate %11, %17 in 0 : vector<8x32xf32>, vector<8x32xf32> -> vector<16x32xf32>
    %c0_12 = arith.constant 0 : index
    %c0_13 = arith.constant 0 : index
    %c0_14 = arith.constant 0 : index
    %19 = vector.load %arg12[%c0_12, %c0_13, %c0_14] : memref<2x6x32xf32, #tpu.memory_space<vmem>>, vector<1x6x32xf32>
    %20 = vector.shape_cast %19 : vector<1x6x32xf32> to vector<6x32xf32>
    %21 = vector.extract_strided_slice %20 {offsets = [0, 0], sizes = [1, 32], strides = [1, 1]} : vector<6x32xf32> to vector<1x32xf32>
    %22 = vector.extract_strided_slice %20 {offsets = [1, 0], sizes = [1, 32], strides = [1, 1]} : vector<6x32xf32> to vector<1x32xf32>
    %23 = vector.extract_strided_slice %20 {offsets = [2, 0], sizes = [1, 32], strides = [1, 1]} : vector<6x32xf32> to vector<1x32xf32>
    %24 = vector.extract_strided_slice %20 {offsets = [3, 0], sizes = [1, 32], strides = [1, 1]} : vector<6x32xf32> to vector<1x32xf32>
    %25 = vector.extract_strided_slice %20 {offsets = [4, 0], sizes = [1, 32], strides = [1, 1]} : vector<6x32xf32> to vector<1x32xf32>
    %26 = vector.extract_strided_slice %20 {offsets = [5, 0], sizes = [1, 32], strides = [1, 1]} : vector<6x32xf32> to vector<1x32xf32>
    %27 = arith.truncf %18 : vector<16x32xf32> to vector<16x32xbf16>
    %c0_15 = arith.constant 0 : index
    %c0_16 = arith.constant 0 : index
    %c0_17 = arith.constant 0 : index
    %28 = vector.load %arg6[%c0_15, %c0_16, %c0_17] : memref<2x32x96xbf16, #tpu.memory_space<vmem>>, vector<1x32x96xbf16>
    %29 = vector.shape_cast %28 : vector<1x32x96xbf16> to vector<32x96xbf16>
    %cst_18 = arith.constant dense<0.000000e+00> : vector<16x96xf32>
    %30 = tpu.matmul %27, %29, %cst_18 {dimension_numbers = #tpu.dot_dimension_numbers<[1], [0], [0], [1], [0, 0, 1, 1], [], []>} : vector<16x32xbf16>, vector<32x96xbf16>, vector<16x96xf32> -> vector<16x96xf32>
    %c0_19 = arith.constant 0 : index
    %c0_20 = arith.constant 0 : index
    %c0_21 = arith.constant 0 : index
    %31 = vector.load %arg7[%c0_19, %c0_20, %c0_21] : memref<2x1x96xf32, #tpu.memory_space<vmem>>, vector<1x1x96xf32>
    %32 = vector.shape_cast %31 : vector<1x1x96xf32> to vector<1x96xf32>
    %33 = vector.broadcast %32 : vector<1x96xf32> to vector<16x96xf32>
    %34 = arith.addf %30, %33 : vector<16x96xf32>
    %35 = vector.extract_strided_slice %34 {offsets = [0, 0], sizes = [16, 32], strides = [1, 1]} : vector<16x96xf32> to vector<16x32xf32>
    %36 = vector.extract_strided_slice %34 {offsets = [0, 32], sizes = [16, 32], strides = [1, 1]} : vector<16x96xf32> to vector<16x32xf32>
    %37 = vector.extract_strided_slice %34 {offsets = [0, 64], sizes = [16, 32], strides = [1, 1]} : vector<16x96xf32> to vector<16x32xf32>
    %38 = vector.extract_strided_slice %35 {offsets = [0, 0], sizes = [8, 8], strides = [1, 1]} : vector<16x32xf32> to vector<8x8xf32>
    %39 = vector.extract_strided_slice %36 {offsets = [0, 0], sizes = [8, 8], strides = [1, 1]} : vector<16x32xf32> to vector<8x8xf32>
    %cst_22 = arith.constant dense<0.000000e+00> : vector<8x8xf32>
    %40 = tpu.matmul %38, %39, %cst_22 {dimension_numbers = #tpu.dot_dimension_numbers<[1], [1], [0], [0], [0, 0, 1, 0], [], []>} : vector<8x8xf32>, vector<8x8xf32>, vector<8x8xf32> -> vector<8x8xf32>
    %41 = vector.extract_strided_slice %35 {offsets = [0, 8], sizes = [8, 8], strides = [1, 1]} : vector<16x32xf32> to vector<8x8xf32>
    %42 = vector.extract_strided_slice %36 {offsets = [0, 8], sizes = [8, 8], strides = [1, 1]} : vector<16x32xf32> to vector<8x8xf32>
    %cst_23 = arith.constant dense<0.000000e+00> : vector<8x8xf32>
    %43 = tpu.matmul %41, %42, %cst_23 {dimension_numbers = #tpu.dot_dimension_numbers<[1], [1], [0], [0], [0, 0, 1, 0], [], []>} : vector<8x8xf32>, vector<8x8xf32>, vector<8x8xf32> -> vector<8x8xf32>
    %44 = vector.extract_strided_slice %35 {offsets = [0, 16], sizes = [8, 8], strides = [1, 1]} : vector<16x32xf32> to vector<8x8xf32>
    %45 = vector.extract_strided_slice %36 {offsets = [0, 16], sizes = [8, 8], strides = [1, 1]} : vector<16x32xf32> to vector<8x8xf32>
    %cst_24 = arith.constant dense<0.000000e+00> : vector<8x8xf32>
    %46 = tpu.matmul %44, %45, %cst_24 {dimension_numbers = #tpu.dot_dimension_numbers<[1], [1], [0], [0], [0, 0, 1, 0], [], []>} : vector<8x8xf32>, vector<8x8xf32>, vector<8x8xf32> -> vector<8x8xf32>
    %47 = vector.extract_strided_slice %35 {offsets = [0, 24], sizes = [8, 8], strides = [1, 1]} : vector<16x32xf32> to vector<8x8xf32>
    %48 = vector.extract_strided_slice %36 {offsets = [0, 24], sizes = [8, 8], strides = [1, 1]} : vector<16x32xf32> to vector<8x8xf32>
    %cst_25 = arith.constant dense<0.000000e+00> : vector<8x8xf32>
    %49 = tpu.matmul %47, %48, %cst_25 {dimension_numbers = #tpu.dot_dimension_numbers<[1], [1], [0], [0], [0, 0, 1, 0], [], []>} : vector<8x8xf32>, vector<8x8xf32>, vector<8x8xf32> -> vector<8x8xf32>
    %50 = vector.extract_strided_slice %35 {offsets = [8, 0], sizes = [8, 8], strides = [1, 1]} : vector<16x32xf32> to vector<8x8xf32>
    %51 = vector.extract_strided_slice %36 {offsets = [8, 0], sizes = [8, 8], strides = [1, 1]} : vector<16x32xf32> to vector<8x8xf32>
    %cst_26 = arith.constant dense<0.000000e+00> : vector<8x8xf32>
    %52 = tpu.matmul %50, %51, %cst_26 {dimension_numbers = #tpu.dot_dimension_numbers<[1], [1], [0], [0], [0, 0, 1, 0], [], []>} : vector<8x8xf32>, vector<8x8xf32>, vector<8x8xf32> -> vector<8x8xf32>
    %53 = vector.extract_strided_slice %35 {offsets = [8, 8], sizes = [8, 8], strides = [1, 1]} : vector<16x32xf32> to vector<8x8xf32>
    %54 = vector.extract_strided_slice %36 {offsets = [8, 8], sizes = [8, 8], strides = [1, 1]} : vector<16x32xf32> to vector<8x8xf32>
    %cst_27 = arith.constant dense<0.000000e+00> : vector<8x8xf32>
    %55 = tpu.matmul %53, %54, %cst_27 {dimension_numbers = #tpu.dot_dimension_numbers<[1], [1], [0], [0], [0, 0, 1, 0], [], []>} : vector<8x8xf32>, vector<8x8xf32>, vector<8x8xf32> -> vector<8x8xf32>
    %56 = vector.extract_strided_slice %35 {offsets = [8, 16], sizes = [8, 8], strides = [1, 1]} : vector<16x32xf32> to vector<8x8xf32>
    %57 = vector.extract_strided_slice %36 {offsets = [8, 16], sizes = [8, 8], strides = [1, 1]} : vector<16x32xf32> to vector<8x8xf32>
    %cst_28 = arith.constant dense<0.000000e+00> : vector<8x8xf32>
    %58 = tpu.matmul %56, %57, %cst_28 {dimension_numbers = #tpu.dot_dimension_numbers<[1], [1], [0], [0], [0, 0, 1, 0], [], []>} : vector<8x8xf32>, vector<8x8xf32>, vector<8x8xf32> -> vector<8x8xf32>
    %59 = vector.extract_strided_slice %35 {offsets = [8, 24], sizes = [8, 8], strides = [1, 1]} : vector<16x32xf32> to vector<8x8xf32>
    %60 = vector.extract_strided_slice %36 {offsets = [8, 24], sizes = [8, 8], strides = [1, 1]} : vector<16x32xf32> to vector<8x8xf32>
    %cst_29 = arith.constant dense<0.000000e+00> : vector<8x8xf32>
    %61 = tpu.matmul %59, %60, %cst_29 {dimension_numbers = #tpu.dot_dimension_numbers<[1], [1], [0], [0], [0, 0, 1, 0], [], []>} : vector<8x8xf32>, vector<8x8xf32>, vector<8x8xf32> -> vector<8x8xf32>
    %62 = tpu.concatenate %40, %43, %46, %49, %52, %55, %58, %61 in 0 : vector<8x8xf32>, vector<8x8xf32>, vector<8x8xf32>, vector<8x8xf32>, vector<8x8xf32>, vector<8x8xf32>, vector<8x8xf32>, vector<8x8xf32> -> vector<64x8xf32>
    %cst_30 = arith.constant dense<0xFF800000> : vector<64xf32>
    %63 = vector.multi_reduction <maximumf>, %62, %cst_30 [1] : vector<64x8xf32> to vector<64xf32>
    %64 = vector.shape_cast %63 : vector<64xf32> to vector<64x1xf32>
    %65 = vector.broadcast %64 : vector<64x1xf32> to vector<64x8xf32>
    %66 = arith.subf %62, %65 : vector<64x8xf32>
    %67 = math.exp %66 : vector<64x8xf32>
    %cst_31 = arith.constant dense<0.000000e+00> : vector<64xf32>
    %68 = vector.multi_reduction <add>, %67, %cst_31 [1] : vector<64x8xf32> to vector<64xf32>
    %69 = vector.shape_cast %68 : vector<64xf32> to vector<64x1xf32>
    %70 = tpu.reciprocal %69 {approx = true} : vector<64x1xf32> -> vector<64x1xf32>
    %71 = vector.broadcast %70 : vector<64x1xf32> to vector<64x8xf32>
    %72 = arith.mulf %67, %71 : vector<64x8xf32>
    %73 = vector.extract_strided_slice %72 {offsets = [0, 0], sizes = [8, 8], strides = [1, 1]} : vector<64x8xf32> to vector<8x8xf32>
    %74 = vector.extract_strided_slice %37 {offsets = [0, 0], sizes = [8, 8], strides = [1, 1]} : vector<16x32xf32> to vector<8x8xf32>
    %cst_32 = arith.constant dense<0.000000e+00> : vector<8x8xf32>
    %75 = tpu.matmul %73, %74, %cst_32 {dimension_numbers = #tpu.dot_dimension_numbers<[1], [0], [0], [1], [0, 0, 1, 1], [], []>} : vector<8x8xf32>, vector<8x8xf32>, vector<8x8xf32> -> vector<8x8xf32>
    %76 = vector.extract_strided_slice %72 {offsets = [8, 0], sizes = [8, 8], strides = [1, 1]} : vector<64x8xf32> to vector<8x8xf32>
    %77 = vector.extract_strided_slice %37 {offsets = [0, 8], sizes = [8, 8], strides = [1, 1]} : vector<16x32xf32> to vector<8x8xf32>
    %cst_33 = arith.constant dense<0.000000e+00> : vector<8x8xf32>
    %78 = tpu.matmul %76, %77, %cst_33 {dimension_numbers = #tpu.dot_dimension_numbers<[1], [0], [0], [1], [0, 0, 1, 1], [], []>} : vector<8x8xf32>, vector<8x8xf32>, vector<8x8xf32> -> vector<8x8xf32>
    %79 = vector.extract_strided_slice %72 {offsets = [16, 0], sizes = [8, 8], strides = [1, 1]} : vector<64x8xf32> to vector<8x8xf32>
    %80 = vector.extract_strided_slice %37 {offsets = [0, 16], sizes = [8, 8], strides = [1, 1]} : vector<16x32xf32> to vector<8x8xf32>
    %cst_34 = arith.constant dense<0.000000e+00> : vector<8x8xf32>
    %81 = tpu.matmul %79, %80, %cst_34 {dimension_numbers = #tpu.dot_dimension_numbers<[1], [0], [0], [1], [0, 0, 1, 1], [], []>} : vector<8x8xf32>, vector<8x8xf32>, vector<8x8xf32> -> vector<8x8xf32>
    %82 = vector.extract_strided_slice %72 {offsets = [24, 0], sizes = [8, 8], strides = [1, 1]} : vector<64x8xf32> to vector<8x8xf32>
    %83 = vector.extract_strided_slice %37 {offsets = [0, 24], sizes = [8, 8], strides = [1, 1]} : vector<16x32xf32> to vector<8x8xf32>
    %cst_35 = arith.constant dense<0.000000e+00> : vector<8x8xf32>
    %84 = tpu.matmul %82, %83, %cst_35 {dimension_numbers = #tpu.dot_dimension_numbers<[1], [0], [0], [1], [0, 0, 1, 1], [], []>} : vector<8x8xf32>, vector<8x8xf32>, vector<8x8xf32> -> vector<8x8xf32>
    %85 = tpu.concatenate %75, %78, %81, %84 in 1 : vector<8x8xf32>, vector<8x8xf32>, vector<8x8xf32>, vector<8x8xf32> -> vector<8x32xf32>
    %86 = vector.extract_strided_slice %72 {offsets = [32, 0], sizes = [8, 8], strides = [1, 1]} : vector<64x8xf32> to vector<8x8xf32>
    %87 = vector.extract_strided_slice %37 {offsets = [8, 0], sizes = [8, 8], strides = [1, 1]} : vector<16x32xf32> to vector<8x8xf32>
    %cst_36 = arith.constant dense<0.000000e+00> : vector<8x8xf32>
    %88 = tpu.matmul %86, %87, %cst_36 {dimension_numbers = #tpu.dot_dimension_numbers<[1], [0], [0], [1], [0, 0, 1, 1], [], []>} : vector<8x8xf32>, vector<8x8xf32>, vector<8x8xf32> -> vector<8x8xf32>
    %89 = vector.extract_strided_slice %72 {offsets = [40, 0], sizes = [8, 8], strides = [1, 1]} : vector<64x8xf32> to vector<8x8xf32>
    %90 = vector.extract_strided_slice %37 {offsets = [8, 8], sizes = [8, 8], strides = [1, 1]} : vector<16x32xf32> to vector<8x8xf32>
    %cst_37 = arith.constant dense<0.000000e+00> : vector<8x8xf32>
    %91 = tpu.matmul %89, %90, %cst_37 {dimension_numbers = #tpu.dot_dimension_numbers<[1], [0], [0], [1], [0, 0, 1, 1], [], []>} : vector<8x8xf32>, vector<8x8xf32>, vector<8x8xf32> -> vector<8x8xf32>
    %92 = vector.extract_strided_slice %72 {offsets = [48, 0], sizes = [8, 8], strides = [1, 1]} : vector<64x8xf32> to vector<8x8xf32>
    %93 = vector.extract_strided_slice %37 {offsets = [8, 16], sizes = [8, 8], strides = [1, 1]} : vector<16x32xf32> to vector<8x8xf32>
    %cst_38 = arith.constant dense<0.000000e+00> : vector<8x8xf32>
    %94 = tpu.matmul %92, %93, %cst_38 {dimension_numbers = #tpu.dot_dimension_numbers<[1], [0], [0], [1], [0, 0, 1, 1], [], []>} : vector<8x8xf32>, vector<8x8xf32>, vector<8x8xf32> -> vector<8x8xf32>
    %95 = vector.extract_strided_slice %72 {offsets = [56, 0], sizes = [8, 8], strides = [1, 1]} : vector<64x8xf32> to vector<8x8xf32>
    %96 = vector.extract_strided_slice %37 {offsets = [8, 24], sizes = [8, 8], strides = [1, 1]} : vector<16x32xf32> to vector<8x8xf32>
    %cst_39 = arith.constant dense<0.000000e+00> : vector<8x8xf32>
    %97 = tpu.matmul %95, %96, %cst_39 {dimension_numbers = #tpu.dot_dimension_numbers<[1], [0], [0], [1], [0, 0, 1, 1], [], []>} : vector<8x8xf32>, vector<8x8xf32>, vector<8x8xf32> -> vector<8x8xf32>
    %98 = tpu.concatenate %88, %91, %94, %97 in 1 : vector<8x8xf32>, vector<8x8xf32>, vector<8x8xf32>, vector<8x8xf32> -> vector<8x32xf32>
    %99 = tpu.concatenate %85, %98 in 0 : vector<8x32xf32>, vector<8x32xf32> -> vector<16x32xf32>
    %100 = arith.truncf %99 : vector<16x32xf32> to vector<16x32xbf16>
    %c0_40 = arith.constant 0 : index
    %c0_41 = arith.constant 0 : index
    %c0_42 = arith.constant 0 : index
    %101 = vector.load %arg8[%c0_40, %c0_41, %c0_42] : memref<2x32x32xbf16, #tpu.memory_space<vmem>>, vector<1x32x32xbf16>
    %102 = vector.shape_cast %101 : vector<1x32x32xbf16> to vector<32x32xbf16>
    %cst_43 = arith.constant dense<0.000000e+00> : vector<16x32xf32>
    %103 = tpu.matmul %100, %102, %cst_43 {dimension_numbers = #tpu.dot_dimension_numbers<[1], [0], [0], [1], [0, 0, 1, 1], [], []>} : vector<16x32xbf16>, vector<32x32xbf16>, vector<16x32xf32> -> vector<16x32xf32>
    %104 = vector.broadcast %21 : vector<1x32xf32> to vector<16x32xf32>
    %105 = arith.addf %103, %104 : vector<16x32xf32>
    %106 = arith.addf %18, %105 : vector<16x32xf32>
    %cst_44 = arith.constant dense<0.000000e+00> : vector<16xf32>
    %107 = vector.multi_reduction <add>, %106, %cst_44 [1] : vector<16x32xf32> to vector<16xf32>
    %108 = vector.shape_cast %107 : vector<16xf32> to vector<16x1xf32>
    %cst_45 = arith.constant 3.200000e+01 : f32
    %109 = vector.broadcast %cst_45 : f32 to vector<16x1xf32>
    %110 = arith.divf %108, %109 : vector<16x1xf32>
    %111 = vector.broadcast %110 : vector<16x1xf32> to vector<16x32xf32>
    %112 = arith.subf %106, %111 : vector<16x32xf32>
    %113 = arith.mulf %112, %112 : vector<16x32xf32>
    %cst_46 = arith.constant dense<0.000000e+00> : vector<16xf32>
    %114 = vector.multi_reduction <add>, %113, %cst_46 [1] : vector<16x32xf32> to vector<16xf32>
    %115 = vector.shape_cast %114 : vector<16xf32> to vector<16x1xf32>
    %cst_47 = arith.constant 3.200000e+01 : f32
    %116 = vector.broadcast %cst_47 : f32 to vector<16x1xf32>
    %117 = arith.divf %115, %116 : vector<16x1xf32>
    %118 = vector.broadcast %110 : vector<16x1xf32> to vector<16x32xf32>
    %119 = arith.subf %106, %118 : vector<16x32xf32>
    %cst_48 = arith.constant 9.99999974E-6 : f32
    %120 = vector.broadcast %cst_48 : f32 to vector<16x1xf32>
    %121 = arith.addf %117, %120 : vector<16x1xf32>
    %122 = math.rsqrt %121 : vector<16x1xf32>
    %123 = vector.broadcast %122 : vector<16x1xf32> to vector<16x32xf32>
    %124 = arith.mulf %119, %123 : vector<16x32xf32>
    %125 = vector.broadcast %22 : vector<1x32xf32> to vector<16x32xf32>
    %126 = arith.mulf %124, %125 : vector<16x32xf32>
    %127 = vector.broadcast %23 : vector<1x32xf32> to vector<16x32xf32>
    %128 = arith.addf %126, %127 : vector<16x32xf32>
    %129 = arith.truncf %128 : vector<16x32xf32> to vector<16x32xbf16>
    %c0_49 = arith.constant 0 : index
    %c0_50 = arith.constant 0 : index
    %c0_51 = arith.constant 0 : index
    %130 = vector.load %arg9[%c0_49, %c0_50, %c0_51] : memref<2x32x64xbf16, #tpu.memory_space<vmem>>, vector<1x32x64xbf16>
    %131 = vector.shape_cast %130 : vector<1x32x64xbf16> to vector<32x64xbf16>
    %cst_52 = arith.constant dense<0.000000e+00> : vector<16x64xf32>
    %132 = tpu.matmul %129, %131, %cst_52 {dimension_numbers = #tpu.dot_dimension_numbers<[1], [0], [0], [1], [0, 0, 1, 1], [], []>} : vector<16x32xbf16>, vector<32x64xbf16>, vector<16x64xf32> -> vector<16x64xf32>
    %c0_53 = arith.constant 0 : index
    %c0_54 = arith.constant 0 : index
    %c0_55 = arith.constant 0 : index
    %133 = vector.load %arg10[%c0_53, %c0_54, %c0_55] : memref<2x1x64xf32, #tpu.memory_space<vmem>>, vector<1x1x64xf32>
    %134 = vector.shape_cast %133 : vector<1x1x64xf32> to vector<1x64xf32>
    %135 = vector.broadcast %134 : vector<1x64xf32> to vector<16x64xf32>
    %136 = arith.addf %132, %135 : vector<16x64xf32>
    %cst_56 = arith.constant 0.000000e+00 : f32
    %137 = vector.broadcast %cst_56 : f32 to vector<16x64xf32>
    %138 = arith.maximumf %136, %137 : vector<16x64xf32>
    %139 = arith.truncf %138 : vector<16x64xf32> to vector<16x64xbf16>
    %c0_57 = arith.constant 0 : index
    %c0_58 = arith.constant 0 : index
    %c0_59 = arith.constant 0 : index
    %140 = vector.load %arg11[%c0_57, %c0_58, %c0_59] : memref<2x64x32xbf16, #tpu.memory_space<vmem>>, vector<1x64x32xbf16>
    %141 = vector.shape_cast %140 : vector<1x64x32xbf16> to vector<64x32xbf16>
    %cst_60 = arith.constant dense<0.000000e+00> : vector<16x32xf32>
    %142 = tpu.matmul %139, %141, %cst_60 {dimension_numbers = #tpu.dot_dimension_numbers<[1], [0], [0], [1], [0, 0, 1, 1], [], []>} : vector<16x64xbf16>, vector<64x32xbf16>, vector<16x32xf32> -> vector<16x32xf32>
    %143 = vector.broadcast %24 : vector<1x32xf32> to vector<16x32xf32>
    %144 = arith.addf %142, %143 : vector<16x32xf32>
    %145 = arith.addf %128, %144 : vector<16x32xf32>
    %cst_61 = arith.constant dense<0.000000e+00> : vector<16xf32>
    %146 = vector.multi_reduction <add>, %145, %cst_61 [1] : vector<16x32xf32> to vector<16xf32>
    %147 = vector.shape_cast %146 : vector<16xf32> to vector<16x1xf32>
    %cst_62 = arith.constant 3.200000e+01 : f32
    %148 = vector.broadcast %cst_62 : f32 to vector<16x1xf32>
    %149 = arith.divf %147, %148 : vector<16x1xf32>
    %150 = vector.broadcast %149 : vector<16x1xf32> to vector<16x32xf32>
    %151 = arith.subf %145, %150 : vector<16x32xf32>
    %152 = arith.mulf %151, %151 : vector<16x32xf32>
    %cst_63 = arith.constant dense<0.000000e+00> : vector<16xf32>
    %153 = vector.multi_reduction <add>, %152, %cst_63 [1] : vector<16x32xf32> to vector<16xf32>
    %154 = vector.shape_cast %153 : vector<16xf32> to vector<16x1xf32>
    %cst_64 = arith.constant 3.200000e+01 : f32
    %155 = vector.broadcast %cst_64 : f32 to vector<16x1xf32>
    %156 = arith.divf %154, %155 : vector<16x1xf32>
    %157 = vector.broadcast %149 : vector<16x1xf32> to vector<16x32xf32>
    %158 = arith.subf %145, %157 : vector<16x32xf32>
    %cst_65 = arith.constant 9.99999974E-6 : f32
    %159 = vector.broadcast %cst_65 : f32 to vector<16x1xf32>
    %160 = arith.addf %156, %159 : vector<16x1xf32>
    %161 = math.rsqrt %160 : vector<16x1xf32>
    %162 = vector.broadcast %161 : vector<16x1xf32> to vector<16x32xf32>
    %163 = arith.mulf %158, %162 : vector<16x32xf32>
    %164 = vector.broadcast %25 : vector<1x32xf32> to vector<16x32xf32>
    %165 = arith.mulf %163, %164 : vector<16x32xf32>
    %166 = vector.broadcast %26 : vector<1x32xf32> to vector<16x32xf32>
    %167 = arith.addf %165, %166 : vector<16x32xf32>
    %c1_66 = arith.constant 1 : index
    %c0_67 = arith.constant 0 : index
    %c0_68 = arith.constant 0 : index
    %168 = vector.load %arg12[%c1_66, %c0_67, %c0_68] : memref<2x6x32xf32, #tpu.memory_space<vmem>>, vector<1x6x32xf32>
    %169 = vector.shape_cast %168 : vector<1x6x32xf32> to vector<6x32xf32>
    %170 = vector.extract_strided_slice %169 {offsets = [0, 0], sizes = [1, 32], strides = [1, 1]} : vector<6x32xf32> to vector<1x32xf32>
    %171 = vector.extract_strided_slice %169 {offsets = [1, 0], sizes = [1, 32], strides = [1, 1]} : vector<6x32xf32> to vector<1x32xf32>
    %172 = vector.extract_strided_slice %169 {offsets = [2, 0], sizes = [1, 32], strides = [1, 1]} : vector<6x32xf32> to vector<1x32xf32>
    %173 = vector.extract_strided_slice %169 {offsets = [3, 0], sizes = [1, 32], strides = [1, 1]} : vector<6x32xf32> to vector<1x32xf32>
    %174 = vector.extract_strided_slice %169 {offsets = [4, 0], sizes = [1, 32], strides = [1, 1]} : vector<6x32xf32> to vector<1x32xf32>
    %175 = vector.extract_strided_slice %169 {offsets = [5, 0], sizes = [1, 32], strides = [1, 1]} : vector<6x32xf32> to vector<1x32xf32>
    %176 = arith.truncf %167 : vector<16x32xf32> to vector<16x32xbf16>
    %c1_69 = arith.constant 1 : index
    %c0_70 = arith.constant 0 : index
    %c0_71 = arith.constant 0 : index
    %177 = vector.load %arg6[%c1_69, %c0_70, %c0_71] : memref<2x32x96xbf16, #tpu.memory_space<vmem>>, vector<1x32x96xbf16>
    %178 = vector.shape_cast %177 : vector<1x32x96xbf16> to vector<32x96xbf16>
    %cst_72 = arith.constant dense<0.000000e+00> : vector<16x96xf32>
    %179 = tpu.matmul %176, %178, %cst_72 {dimension_numbers = #tpu.dot_dimension_numbers<[1], [0], [0], [1], [0, 0, 1, 1], [], []>} : vector<16x32xbf16>, vector<32x96xbf16>, vector<16x96xf32> -> vector<16x96xf32>
    %c1_73 = arith.constant 1 : index
    %c0_74 = arith.constant 0 : index
    %c0_75 = arith.constant 0 : index
    %180 = vector.load %arg7[%c1_73, %c0_74, %c0_75] : memref<2x1x96xf32, #tpu.memory_space<vmem>>, vector<1x1x96xf32>
    %181 = vector.shape_cast %180 : vector<1x1x96xf32> to vector<1x96xf32>
    %182 = vector.broadcast %181 : vector<1x96xf32> to vector<16x96xf32>
    %183 = arith.addf %179, %182 : vector<16x96xf32>
    %184 = vector.extract_strided_slice %183 {offsets = [0, 0], sizes = [16, 32], strides = [1, 1]} : vector<16x96xf32> to vector<16x32xf32>
    %185 = vector.extract_strided_slice %183 {offsets = [0, 32], sizes = [16, 32], strides = [1, 1]} : vector<16x96xf32> to vector<16x32xf32>
    %186 = vector.extract_strided_slice %183 {offsets = [0, 64], sizes = [16, 32], strides = [1, 1]} : vector<16x96xf32> to vector<16x32xf32>
    %187 = vector.extract_strided_slice %184 {offsets = [0, 0], sizes = [8, 8], strides = [1, 1]} : vector<16x32xf32> to vector<8x8xf32>
    %188 = vector.extract_strided_slice %185 {offsets = [0, 0], sizes = [8, 8], strides = [1, 1]} : vector<16x32xf32> to vector<8x8xf32>
    %cst_76 = arith.constant dense<0.000000e+00> : vector<8x8xf32>
    %189 = tpu.matmul %187, %188, %cst_76 {dimension_numbers = #tpu.dot_dimension_numbers<[1], [1], [0], [0], [0, 0, 1, 0], [], []>} : vector<8x8xf32>, vector<8x8xf32>, vector<8x8xf32> -> vector<8x8xf32>
    %190 = vector.extract_strided_slice %184 {offsets = [0, 8], sizes = [8, 8], strides = [1, 1]} : vector<16x32xf32> to vector<8x8xf32>
    %191 = vector.extract_strided_slice %185 {offsets = [0, 8], sizes = [8, 8], strides = [1, 1]} : vector<16x32xf32> to vector<8x8xf32>
    %cst_77 = arith.constant dense<0.000000e+00> : vector<8x8xf32>
    %192 = tpu.matmul %190, %191, %cst_77 {dimension_numbers = #tpu.dot_dimension_numbers<[1], [1], [0], [0], [0, 0, 1, 0], [], []>} : vector<8x8xf32>, vector<8x8xf32>, vector<8x8xf32> -> vector<8x8xf32>
    %193 = vector.extract_strided_slice %184 {offsets = [0, 16], sizes = [8, 8], strides = [1, 1]} : vector<16x32xf32> to vector<8x8xf32>
    %194 = vector.extract_strided_slice %185 {offsets = [0, 16], sizes = [8, 8], strides = [1, 1]} : vector<16x32xf32> to vector<8x8xf32>
    %cst_78 = arith.constant dense<0.000000e+00> : vector<8x8xf32>
    %195 = tpu.matmul %193, %194, %cst_78 {dimension_numbers = #tpu.dot_dimension_numbers<[1], [1], [0], [0], [0, 0, 1, 0], [], []>} : vector<8x8xf32>, vector<8x8xf32>, vector<8x8xf32> -> vector<8x8xf32>
    %196 = vector.extract_strided_slice %184 {offsets = [0, 24], sizes = [8, 8], strides = [1, 1]} : vector<16x32xf32> to vector<8x8xf32>
    %197 = vector.extract_strided_slice %185 {offsets = [0, 24], sizes = [8, 8], strides = [1, 1]} : vector<16x32xf32> to vector<8x8xf32>
    %cst_79 = arith.constant dense<0.000000e+00> : vector<8x8xf32>
    %198 = tpu.matmul %196, %197, %cst_79 {dimension_numbers = #tpu.dot_dimension_numbers<[1], [1], [0], [0], [0, 0, 1, 0], [], []>} : vector<8x8xf32>, vector<8x8xf32>, vector<8x8xf32> -> vector<8x8xf32>
    %199 = vector.extract_strided_slice %184 {offsets = [8, 0], sizes = [8, 8], strides = [1, 1]} : vector<16x32xf32> to vector<8x8xf32>
    %200 = vector.extract_strided_slice %185 {offsets = [8, 0], sizes = [8, 8], strides = [1, 1]} : vector<16x32xf32> to vector<8x8xf32>
    %cst_80 = arith.constant dense<0.000000e+00> : vector<8x8xf32>
    %201 = tpu.matmul %199, %200, %cst_80 {dimension_numbers = #tpu.dot_dimension_numbers<[1], [1], [0], [0], [0, 0, 1, 0], [], []>} : vector<8x8xf32>, vector<8x8xf32>, vector<8x8xf32> -> vector<8x8xf32>
    %202 = vector.extract_strided_slice %184 {offsets = [8, 8], sizes = [8, 8], strides = [1, 1]} : vector<16x32xf32> to vector<8x8xf32>
    %203 = vector.extract_strided_slice %185 {offsets = [8, 8], sizes = [8, 8], strides = [1, 1]} : vector<16x32xf32> to vector<8x8xf32>
    %cst_81 = arith.constant dense<0.000000e+00> : vector<8x8xf32>
    %204 = tpu.matmul %202, %203, %cst_81 {dimension_numbers = #tpu.dot_dimension_numbers<[1], [1], [0], [0], [0, 0, 1, 0], [], []>} : vector<8x8xf32>, vector<8x8xf32>, vector<8x8xf32> -> vector<8x8xf32>
    %205 = vector.extract_strided_slice %184 {offsets = [8, 16], sizes = [8, 8], strides = [1, 1]} : vector<16x32xf32> to vector<8x8xf32>
    %206 = vector.extract_strided_slice %185 {offsets = [8, 16], sizes = [8, 8], strides = [1, 1]} : vector<16x32xf32> to vector<8x8xf32>
    %cst_82 = arith.constant dense<0.000000e+00> : vector<8x8xf32>
    %207 = tpu.matmul %205, %206, %cst_82 {dimension_numbers = #tpu.dot_dimension_numbers<[1], [1], [0], [0], [0, 0, 1, 0], [], []>} : vector<8x8xf32>, vector<8x8xf32>, vector<8x8xf32> -> vector<8x8xf32>
    %208 = vector.extract_strided_slice %184 {offsets = [8, 24], sizes = [8, 8], strides = [1, 1]} : vector<16x32xf32> to vector<8x8xf32>
    %209 = vector.extract_strided_slice %185 {offsets = [8, 24], sizes = [8, 8], strides = [1, 1]} : vector<16x32xf32> to vector<8x8xf32>
    %cst_83 = arith.constant dense<0.000000e+00> : vector<8x8xf32>
    %210 = tpu.matmul %208, %209, %cst_83 {dimension_numbers = #tpu.dot_dimension_numbers<[1], [1], [0], [0], [0, 0, 1, 0], [], []>} : vector<8x8xf32>, vector<8x8xf32>, vector<8x8xf32> -> vector<8x8xf32>
    %211 = tpu.concatenate %189, %192, %195, %198, %201, %204, %207, %210 in 0 : vector<8x8xf32>, vector<8x8xf32>, vector<8x8xf32>, vector<8x8xf32>, vector<8x8xf32>, vector<8x8xf32>, vector<8x8xf32>, vector<8x8xf32> -> vector<64x8xf32>
    %cst_84 = arith.constant dense<0xFF800000> : vector<64xf32>
    %212 = vector.multi_reduction <maximumf>, %211, %cst_84 [1] : vector<64x8xf32> to vector<64xf32>
    %213 = vector.shape_cast %212 : vector<64xf32> to vector<64x1xf32>
    %214 = vector.broadcast %213 : vector<64x1xf32> to vector<64x8xf32>
    %215 = arith.subf %211, %214 : vector<64x8xf32>
    %216 = math.exp %215 : vector<64x8xf32>
    %cst_85 = arith.constant dense<0.000000e+00> : vector<64xf32>
    %217 = vector.multi_reduction <add>, %216, %cst_85 [1] : vector<64x8xf32> to vector<64xf32>
    %218 = vector.shape_cast %217 : vector<64xf32> to vector<64x1xf32>
    %219 = tpu.reciprocal %218 {approx = true} : vector<64x1xf32> -> vector<64x1xf32>
    %220 = vector.broadcast %219 : vector<64x1xf32> to vector<64x8xf32>
    %221 = arith.mulf %216, %220 : vector<64x8xf32>
    %222 = vector.extract_strided_slice %221 {offsets = [0, 0], sizes = [8, 8], strides = [1, 1]} : vector<64x8xf32> to vector<8x8xf32>
    %223 = vector.extract_strided_slice %186 {offsets = [0, 0], sizes = [8, 8], strides = [1, 1]} : vector<16x32xf32> to vector<8x8xf32>
    %cst_86 = arith.constant dense<0.000000e+00> : vector<8x8xf32>
    %224 = tpu.matmul %222, %223, %cst_86 {dimension_numbers = #tpu.dot_dimension_numbers<[1], [0], [0], [1], [0, 0, 1, 1], [], []>} : vector<8x8xf32>, vector<8x8xf32>, vector<8x8xf32> -> vector<8x8xf32>
    %225 = vector.extract_strided_slice %221 {offsets = [8, 0], sizes = [8, 8], strides = [1, 1]} : vector<64x8xf32> to vector<8x8xf32>
    %226 = vector.extract_strided_slice %186 {offsets = [0, 8], sizes = [8, 8], strides = [1, 1]} : vector<16x32xf32> to vector<8x8xf32>
    %cst_87 = arith.constant dense<0.000000e+00> : vector<8x8xf32>
    %227 = tpu.matmul %225, %226, %cst_87 {dimension_numbers = #tpu.dot_dimension_numbers<[1], [0], [0], [1], [0, 0, 1, 1], [], []>} : vector<8x8xf32>, vector<8x8xf32>, vector<8x8xf32> -> vector<8x8xf32>
    %228 = vector.extract_strided_slice %221 {offsets = [16, 0], sizes = [8, 8], strides = [1, 1]} : vector<64x8xf32> to vector<8x8xf32>
    %229 = vector.extract_strided_slice %186 {offsets = [0, 16], sizes = [8, 8], strides = [1, 1]} : vector<16x32xf32> to vector<8x8xf32>
    %cst_88 = arith.constant dense<0.000000e+00> : vector<8x8xf32>
    %230 = tpu.matmul %228, %229, %cst_88 {dimension_numbers = #tpu.dot_dimension_numbers<[1], [0], [0], [1], [0, 0, 1, 1], [], []>} : vector<8x8xf32>, vector<8x8xf32>, vector<8x8xf32> -> vector<8x8xf32>
    %231 = vector.extract_strided_slice %221 {offsets = [24, 0], sizes = [8, 8], strides = [1, 1]} : vector<64x8xf32> to vector<8x8xf32>
    %232 = vector.extract_strided_slice %186 {offsets = [0, 24], sizes = [8, 8], strides = [1, 1]} : vector<16x32xf32> to vector<8x8xf32>
    %cst_89 = arith.constant dense<0.000000e+00> : vector<8x8xf32>
    %233 = tpu.matmul %231, %232, %cst_89 {dimension_numbers = #tpu.dot_dimension_numbers<[1], [0], [0], [1], [0, 0, 1, 1], [], []>} : vector<8x8xf32>, vector<8x8xf32>, vector<8x8xf32> -> vector<8x8xf32>
    %234 = tpu.concatenate %224, %227, %230, %233 in 1 : vector<8x8xf32>, vector<8x8xf32>, vector<8x8xf32>, vector<8x8xf32> -> vector<8x32xf32>
    %235 = vector.extract_strided_slice %221 {offsets = [32, 0], sizes = [8, 8], strides = [1, 1]} : vector<64x8xf32> to vector<8x8xf32>
    %236 = vector.extract_strided_slice %186 {offsets = [8, 0], sizes = [8, 8], strides = [1, 1]} : vector<16x32xf32> to vector<8x8xf32>
    %cst_90 = arith.constant dense<0.000000e+00> : vector<8x8xf32>
    %237 = tpu.matmul %235, %236, %cst_90 {dimension_numbers = #tpu.dot_dimension_numbers<[1], [0], [0], [1], [0, 0, 1, 1], [], []>} : vector<8x8xf32>, vector<8x8xf32>, vector<8x8xf32> -> vector<8x8xf32>
    %238 = vector.extract_strided_slice %221 {offsets = [40, 0], sizes = [8, 8], strides = [1, 1]} : vector<64x8xf32> to vector<8x8xf32>
    %239 = vector.extract_strided_slice %186 {offsets = [8, 8], sizes = [8, 8], strides = [1, 1]} : vector<16x32xf32> to vector<8x8xf32>
    %cst_91 = arith.constant dense<0.000000e+00> : vector<8x8xf32>
    %240 = tpu.matmul %238, %239, %cst_91 {dimension_numbers = #tpu.dot_dimension_numbers<[1], [0], [0], [1], [0, 0, 1, 1], [], []>} : vector<8x8xf32>, vector<8x8xf32>, vector<8x8xf32> -> vector<8x8xf32>
    %241 = vector.extract_strided_slice %221 {offsets = [48, 0], sizes = [8, 8], strides = [1, 1]} : vector<64x8xf32> to vector<8x8xf32>
    %242 = vector.extract_strided_slice %186 {offsets = [8, 16], sizes = [8, 8], strides = [1, 1]} : vector<16x32xf32> to vector<8x8xf32>
    %cst_92 = arith.constant dense<0.000000e+00> : vector<8x8xf32>
    %243 = tpu.matmul %241, %242, %cst_92 {dimension_numbers = #tpu.dot_dimension_numbers<[1], [0], [0], [1], [0, 0, 1, 1], [], []>} : vector<8x8xf32>, vector<8x8xf32>, vector<8x8xf32> -> vector<8x8xf32>
    %244 = vector.extract_strided_slice %221 {offsets = [56, 0], sizes = [8, 8], strides = [1, 1]} : vector<64x8xf32> to vector<8x8xf32>
    %245 = vector.extract_strided_slice %186 {offsets = [8, 24], sizes = [8, 8], strides = [1, 1]} : vector<16x32xf32> to vector<8x8xf32>
    %cst_93 = arith.constant dense<0.000000e+00> : vector<8x8xf32>
    %246 = tpu.matmul %244, %245, %cst_93 {dimension_numbers = #tpu.dot_dimension_numbers<[1], [0], [0], [1], [0, 0, 1, 1], [], []>} : vector<8x8xf32>, vector<8x8xf32>, vector<8x8xf32> -> vector<8x8xf32>
    %247 = tpu.concatenate %237, %240, %243, %246 in 1 : vector<8x8xf32>, vector<8x8xf32>, vector<8x8xf32>, vector<8x8xf32> -> vector<8x32xf32>
    %248 = tpu.concatenate %234, %247 in 0 : vector<8x32xf32>, vector<8x32xf32> -> vector<16x32xf32>
    %249 = arith.truncf %248 : vector<16x32xf32> to vector<16x32xbf16>
    %c1_94 = arith.constant 1 : index
    %c0_95 = arith.constant 0 : index
    %c0_96 = arith.constant 0 : index
    %250 = vector.load %arg8[%c1_94, %c0_95, %c0_96] : memref<2x32x32xbf16, #tpu.memory_space<vmem>>, vector<1x32x32xbf16>
    %251 = vector.shape_cast %250 : vector<1x32x32xbf16> to vector<32x32xbf16>
    %cst_97 = arith.constant dense<0.000000e+00> : vector<16x32xf32>
    %252 = tpu.matmul %249, %251, %cst_97 {dimension_numbers = #tpu.dot_dimension_numbers<[1], [0], [0], [1], [0, 0, 1, 1], [], []>} : vector<16x32xbf16>, vector<32x32xbf16>, vector<16x32xf32> -> vector<16x32xf32>
    %253 = vector.broadcast %170 : vector<1x32xf32> to vector<16x32xf32>
    %254 = arith.addf %252, %253 : vector<16x32xf32>
    %255 = arith.addf %167, %254 : vector<16x32xf32>
    %cst_98 = arith.constant dense<0.000000e+00> : vector<16xf32>
    %256 = vector.multi_reduction <add>, %255, %cst_98 [1] : vector<16x32xf32> to vector<16xf32>
    %257 = vector.shape_cast %256 : vector<16xf32> to vector<16x1xf32>
    %cst_99 = arith.constant 3.200000e+01 : f32
    %258 = vector.broadcast %cst_99 : f32 to vector<16x1xf32>
    %259 = arith.divf %257, %258 : vector<16x1xf32>
    %260 = vector.broadcast %259 : vector<16x1xf32> to vector<16x32xf32>
    %261 = arith.subf %255, %260 : vector<16x32xf32>
    %262 = arith.mulf %261, %261 : vector<16x32xf32>
    %cst_100 = arith.constant dense<0.000000e+00> : vector<16xf32>
    %263 = vector.multi_reduction <add>, %262, %cst_100 [1] : vector<16x32xf32> to vector<16xf32>
    %264 = vector.shape_cast %263 : vector<16xf32> to vector<16x1xf32>
    %cst_101 = arith.constant 3.200000e+01 : f32
    %265 = vector.broadcast %cst_101 : f32 to vector<16x1xf32>
    %266 = arith.divf %264, %265 : vector<16x1xf32>
    %267 = vector.broadcast %259 : vector<16x1xf32> to vector<16x32xf32>
    %268 = arith.subf %255, %267 : vector<16x32xf32>
    %cst_102 = arith.constant 9.99999974E-6 : f32
    %269 = vector.broadcast %cst_102 : f32 to vector<16x1xf32>
    %270 = arith.addf %266, %269 : vector<16x1xf32>
    %271 = math.rsqrt %270 : vector<16x1xf32>
    %272 = vector.broadcast %271 : vector<16x1xf32> to vector<16x32xf32>
    %273 = arith.mulf %268, %272 : vector<16x32xf32>
    %274 = vector.broadcast %171 : vector<1x32xf32> to vector<16x32xf32>
    %275 = arith.mulf %273, %274 : vector<16x32xf32>
    %276 = vector.broadcast %172 : vector<1x32xf32> to vector<16x32xf32>
    %277 = arith.addf %275, %276 : vector<16x32xf32>
    %278 = arith.truncf %277 : vector<16x32xf32> to vector<16x32xbf16>
    %c1_103 = arith.constant 1 : index
    %c0_104 = arith.constant 0 : index
    %c0_105 = arith.constant 0 : index
    %279 = vector.load %arg9[%c1_103, %c0_104, %c0_105] : memref<2x32x64xbf16, #tpu.memory_space<vmem>>, vector<1x32x64xbf16>
    %280 = vector.shape_cast %279 : vector<1x32x64xbf16> to vector<32x64xbf16>
    %cst_106 = arith.constant dense<0.000000e+00> : vector<16x64xf32>
    %281 = tpu.matmul %278, %280, %cst_106 {dimension_numbers = #tpu.dot_dimension_numbers<[1], [0], [0], [1], [0, 0, 1, 1], [], []>} : vector<16x32xbf16>, vector<32x64xbf16>, vector<16x64xf32> -> vector<16x64xf32>
    %c1_107 = arith.constant 1 : index
    %c0_108 = arith.constant 0 : index
    %c0_109 = arith.constant 0 : index
    %282 = vector.load %arg10[%c1_107, %c0_108, %c0_109] : memref<2x1x64xf32, #tpu.memory_space<vmem>>, vector<1x1x64xf32>
    %283 = vector.shape_cast %282 : vector<1x1x64xf32> to vector<1x64xf32>
    %284 = vector.broadcast %283 : vector<1x64xf32> to vector<16x64xf32>
    %285 = arith.addf %281, %284 : vector<16x64xf32>
    %cst_110 = arith.constant 0.000000e+00 : f32
    %286 = vector.broadcast %cst_110 : f32 to vector<16x64xf32>
    %287 = arith.maximumf %285, %286 : vector<16x64xf32>
    %288 = arith.truncf %287 : vector<16x64xf32> to vector<16x64xbf16>
    %c1_111 = arith.constant 1 : index
    %c0_112 = arith.constant 0 : index
    %c0_113 = arith.constant 0 : index
    %289 = vector.load %arg11[%c1_111, %c0_112, %c0_113] : memref<2x64x32xbf16, #tpu.memory_space<vmem>>, vector<1x64x32xbf16>
    %290 = vector.shape_cast %289 : vector<1x64x32xbf16> to vector<64x32xbf16>
    %cst_114 = arith.constant dense<0.000000e+00> : vector<16x32xf32>
    %291 = tpu.matmul %288, %290, %cst_114 {dimension_numbers = #tpu.dot_dimension_numbers<[1], [0], [0], [1], [0, 0, 1, 1], [], []>} : vector<16x64xbf16>, vector<64x32xbf16>, vector<16x32xf32> -> vector<16x32xf32>
    %292 = vector.broadcast %173 : vector<1x32xf32> to vector<16x32xf32>
    %293 = arith.addf %291, %292 : vector<16x32xf32>
    %294 = arith.addf %277, %293 : vector<16x32xf32>
    %cst_115 = arith.constant dense<0.000000e+00> : vector<16xf32>
    %295 = vector.multi_reduction <add>, %294, %cst_115 [1] : vector<16x32xf32> to vector<16xf32>
    %296 = vector.shape_cast %295 : vector<16xf32> to vector<16x1xf32>
    %cst_116 = arith.constant 3.200000e+01 : f32
    %297 = vector.broadcast %cst_116 : f32 to vector<16x1xf32>
    %298 = arith.divf %296, %297 : vector<16x1xf32>
    %299 = vector.broadcast %298 : vector<16x1xf32> to vector<16x32xf32>
    %300 = arith.subf %294, %299 : vector<16x32xf32>
    %301 = arith.mulf %300, %300 : vector<16x32xf32>
    %cst_117 = arith.constant dense<0.000000e+00> : vector<16xf32>
    %302 = vector.multi_reduction <add>, %301, %cst_117 [1] : vector<16x32xf32> to vector<16xf32>
    %303 = vector.shape_cast %302 : vector<16xf32> to vector<16x1xf32>
    %cst_118 = arith.constant 3.200000e+01 : f32
    %304 = vector.broadcast %cst_118 : f32 to vector<16x1xf32>
    %305 = arith.divf %303, %304 : vector<16x1xf32>
    %306 = vector.broadcast %298 : vector<16x1xf32> to vector<16x32xf32>
    %307 = arith.subf %294, %306 : vector<16x32xf32>
    %cst_119 = arith.constant 9.99999974E-6 : f32
    %308 = vector.broadcast %cst_119 : f32 to vector<16x1xf32>
    %309 = arith.addf %305, %308 : vector<16x1xf32>
    %310 = math.rsqrt %309 : vector<16x1xf32>
    %311 = vector.broadcast %310 : vector<16x1xf32> to vector<16x32xf32>
    %312 = arith.mulf %307, %311 : vector<16x32xf32>
    %313 = vector.broadcast %174 : vector<1x32xf32> to vector<16x32xf32>
    %314 = arith.mulf %312, %313 : vector<16x32xf32>
    %315 = vector.broadcast %175 : vector<1x32xf32> to vector<16x32xf32>
    %316 = arith.addf %314, %315 : vector<16x32xf32>
    %317 = arith.truncf %316 : vector<16x32xf32> to vector<16x32xbf16>
    %c0_120 = arith.constant 0 : index
    %c0_121 = arith.constant 0 : index
    %318 = vector.load %arg13[%c0_120, %c0_121] : memref<32x128xbf16, #tpu.memory_space<vmem>>, vector<32x128xbf16>
    %cst_122 = arith.constant dense<0.000000e+00> : vector<16x128xf32>
    %319 = tpu.matmul %317, %318, %cst_122 {dimension_numbers = #tpu.dot_dimension_numbers<[1], [0], [0], [1], [0, 0, 1, 1], [], []>} : vector<16x32xbf16>, vector<32x128xbf16>, vector<16x128xf32> -> vector<16x128xf32>
    %c0_123 = arith.constant 0 : index
    %c0_124 = arith.constant 0 : index
    %320 = vector.load %arg14[%c0_123, %c0_124] : memref<1x128xf32, #tpu.memory_space<vmem>>, vector<1x128xf32>
    %321 = vector.broadcast %320 : vector<1x128xf32> to vector<16x128xf32>
    %322 = arith.addf %319, %321 : vector<16x128xf32>
    %323 = vector.extract_strided_slice %322 {offsets = [0, 0], sizes = [8, 128], strides = [1, 1]} : vector<16x128xf32> to vector<8x128xf32>
    %c0_125 = arith.constant 0 : index
    %c0_126 = arith.constant 0 : index
    %c0_127 = arith.constant 0 : index
    %324 = vector.load %arg15[%c0_125, %c0_126, %c0_127] : memref<2x8x128xf32, #tpu.memory_space<vmem>>, vector<1x8x128xf32>
    %325 = vector.shape_cast %324 : vector<1x8x128xf32> to vector<8x128xf32>
    %326 = vector.shape_cast %323 : vector<8x128xf32> to vector<1x8x128xf32>
    tpu.vector_store %arg15[%c0_125, %c0_126, %c0_127], %326 {strides = array<i32>} : memref<2x8x128xf32, #tpu.memory_space<vmem>>, vector<1x8x128xf32>,
    %327 = vector.extract_strided_slice %322 {offsets = [8, 0], sizes = [8, 128], strides = [1, 1]} : vector<16x128xf32> to vector<8x128xf32>
    %c1_128 = arith.constant 1 : index
    %c0_129 = arith.constant 0 : index
    %c0_130 = arith.constant 0 : index
    %328 = vector.load %arg15[%c1_128, %c0_129, %c0_130] : memref<2x8x128xf32, #tpu.memory_space<vmem>>, vector<1x8x128xf32>
    %329 = vector.shape_cast %328 : vector<1x8x128xf32> to vector<8x128xf32>
    %330 = vector.shape_cast %327 : vector<8x128xf32> to vector<1x8x128xf32>
    tpu.vector_store %arg15[%c1_128, %c0_129, %c0_130], %330 {strides = array<i32>} : memref<2x8x128xf32, #tpu.memory_space<vmem>>, vector<1x8x128xf32>,
    return
  }
  func.func @transform_0(%arg0: i32) -> (i32, i32, i32) {
    %c0_i32 = arith.constant 0 : i32
    %c0_i32_0 = arith.constant 0 : i32
    %c0_i32_1 = arith.constant 0 : i32
    %c0_i32_2 = arith.constant 0 : i32
    return %c0_i32, %c0_i32_0, %c0_i32_1 : i32, i32, i32
  }
  func.func @transform_1(%arg0: i32) -> (i32, i32) {
    %c0_i32 = arith.constant 0 : i32
    %c0_i32_0 = arith.constant 0 : i32
    %c0_i32_1 = arith.constant 0 : i32
    return %c0_i32, %c0_i32_0 : i32, i32
  }
  func.func @transform_2(%arg0: i32) -> (i32, i32) {
    %c0_i32 = arith.constant 0 : i32
    %c0_i32_0 = arith.constant 0 : i32
    %c0_i32_1 = arith.constant 0 : i32
    return %c0_i32, %c0_i32_0 : i32, i32
  }
  func.func @transform_3(%arg0: i32) -> (i32, i32) {
    %c0_i32 = arith.constant 0 : i32
    %c0_i32_0 = arith.constant 0 : i32
    %c0_i32_1 = arith.constant 0 : i32
    return %c0_i32, %c0_i32_0 : i32, i32
  }
  func.func @transform_4(%arg0: i32) -> (i32, i32) {
    %c0_i32 = arith.constant 0 : i32
    %c0_i32_0 = arith.constant 0 : i32
    %c0_i32_1 = arith.constant 0 : i32
    return %c0_i32, %c0_i32_0 : i32, i32
  }
  func.func @transform_5(%arg0: i32) -> (i32, i32, i32) {
    %c0_i32 = arith.constant 0 : i32
    %c0_i32_0 = arith.constant 0 : i32
    %c0_i32_1 = arith.constant 0 : i32
    %c0_i32_2 = arith.constant 0 : i32
    return %c0_i32, %c0_i32_0, %c0_i32_1 : i32, i32, i32
  }
  func.func @transform_6(%arg0: i32) -> (i32, i32, i32) {
    %c0_i32 = arith.constant 0 : i32
    %c0_i32_0 = arith.constant 0 : i32
    %c0_i32_1 = arith.constant 0 : i32
    %c0_i32_2 = arith.constant 0 : i32
    return %c0_i32, %c0_i32_0, %c0_i32_1 : i32, i32, i32
  }
  func.func @transform_7(%arg0: i32) -> (i32, i32, i32) {
    %c0_i32 = arith.constant 0 : i32
    %c0_i32_0 = arith.constant 0 : i32
    %c0_i32_1 = arith.constant 0 : i32
    %c0_i32_2 = arith.constant 0 : i32
    return %c0_i32, %c0_i32_0, %c0_i32_1 : i32, i32, i32
  }
  func.func @transform_8(%arg0: i32) -> (i32, i32, i32) {
    %c0_i32 = arith.constant 0 : i32
    %c0_i32_0 = arith.constant 0 : i32
    %c0_i32_1 = arith.constant 0 : i32
    %c0_i32_2 = arith.constant 0 : i32
    return %c0_i32, %c0_i32_0, %c0_i32_1 : i32, i32, i32
  }
  func.func @transform_9(%arg0: i32) -> (i32, i32, i32) {
    %c0_i32 = arith.constant 0 : i32
    %c0_i32_0 = arith.constant 0 : i32
    %c0_i32_1 = arith.constant 0 : i32
    %c0_i32_2 = arith.constant 0 : i32
    return %c0_i32, %c0_i32_0, %c0_i32_1 : i32, i32, i32
  }
  func.func @transform_10(%arg0: i32) -> (i32, i32, i32) {
    %c0_i32 = arith.constant 0 : i32
    %c0_i32_0 = arith.constant 0 : i32
    %c0_i32_1 = arith.constant 0 : i32
    %c0_i32_2 = arith.constant 0 : i32
    return %c0_i32, %c0_i32_0, %c0_i32_1 : i32, i32, i32
  }
  func.func @transform_11(%arg0: i32) -> (i32, i32, i32) {
    %c0_i32 = arith.constant 0 : i32
    %c0_i32_0 = arith.constant 0 : i32
    %c0_i32_1 = arith.constant 0 : i32
    %c0_i32_2 = arith.constant 0 : i32
    return %c0_i32, %c0_i32_0, %c0_i32_1 : i32, i32, i32
  }
  func.func @transform_12(%arg0: i32) -> (i32, i32) {
    %c0_i32 = arith.constant 0 : i32
    %c0_i32_0 = arith.constant 0 : i32
    %c0_i32_1 = arith.constant 0 : i32
    return %c0_i32, %c0_i32_0 : i32, i32
  }
  func.func @transform_13(%arg0: i32) -> (i32, i32) {
    %c0_i32 = arith.constant 0 : i32
    %c0_i32_0 = arith.constant 0 : i32
    %c0_i32_1 = arith.constant 0 : i32
    return %c0_i32, %c0_i32_0 : i32, i32
  }
  func.func @transform_14(%arg0: i32) -> (i32, i32, i32) {
    %c0_i32 = arith.constant 0 : i32
    %c0_i32_0 = arith.constant 0 : i32
    %c0_i32_1 = arith.constant 0 : i32
    %c0_i32_2 = arith.constant 0 : i32
    return %c0_i32, %c0_i32_0, %c0_i32_1 : i32, i32, i32
  }
}

</mosaic_0001>

<llo_original>
// kernel: attack_transformer_forward.1
$region0: #{attack_transformer_forward.1}
  #allocation0 [shape = 'u32[]', space=smem, size = 0x4, offset = 0x4, fixed_abs, tag = 'smem constant byte address 0x4 - core index']
  #allocation1 [shape = 'u32[144,128]{1,0:T(1,128)}', space=vmem, size = 0x12000, scoped, tag = 'internal scratch']
  %s0 = inlined_call_operand.vmem [shape: f32[2,8,32], index: 0, kind: input, shape index: {}]
  %s1 = inlined_call_operand.vmem [shape: f32[8,32], index: 1, kind: input, shape index: {}]
  %s2 = inlined_call_operand.vmem [shape: f32[2,32], index: 2, kind: input, shape index: {}]
  %s3 = inlined_call_operand.vmem [shape: f32[2,4], index: 3, kind: input, shape index: {}]
  %s4 = inlined_call_operand.vmem [shape: f32[4,32], index: 4, kind: input, shape index: {}]
  %s5 = inlined_call_operand.vmem [shape: bf16[2,32,96], index: 5, kind: input, shape index: {}]
  %s6 = inlined_call_operand.vmem [shape: f32[2,1,96], index: 6, kind: input, shape index: {}]
  %s7 = inlined_call_operand.vmem [shape: bf16[2,32,32], index: 7, kind: input, shape index: {}]
  %s8 = inlined_call_operand.vmem [shape: bf16[2,32,64], index: 8, kind: input, shape index: {}]
  %s9 = inlined_call_operand.vmem [shape: f32[2,1,64], index: 9, kind: input, shape index: {}]
  %s10 = inlined_call_operand.vmem [shape: bf16[2,64,32], index: 10, kind: input, shape index: {}]
  %s11 = inlined_call_operand.vmem [shape: f32[2,6,32], index: 11, kind: input, shape index: {}]
  %s12 = inlined_call_operand.vmem [shape: bf16[32,128], index: 12, kind: input, shape index: {}]
  %s13 = inlined_call_operand.vmem [shape: f32[1,128], index: 13, kind: input, shape index: {}]
  %s14 = inlined_call_operand.hbm [shape: f32[2,8,128], index: 14, kind: output, shape index: {}]
  %s15 = sld [smem:[#allocation0]]
  $region66: #{attack_transformer_forward.1} parent=0
    _
  %s17 = ssub.s32 1, %s15
  %s18 = scalar_select 0, %s17, %s15
  $region1: #{attack_transformer_forward.1} parent=0
    #allocation2 [shape = 'u8[8192]{0}', space=vmem, size = 0x2000, scoped, tag = 'output window, operand 0, single buffered']
    #allocation3 [shape = 's32[1]{0}', space=sflag, size = 0x4, scoped, tag = 'scoped memory for attack_transformer_forward.1']
    %19 = vsyncpa [#allocation3], 0
    // Predicated region
    $region2: #{attack_transformer_forward.1} parent=1 // pred_check
      _
    $region3: #{attack_transformer_forward.1} parent=1 // pred_check_branch
      %21 = sbr.rel (0) target = $region5
    $region4: #{attack_transformer_forward.1} parent=1 // pred_region
      _
    $region5: #{attack_transformer_forward.1} parent=1 // pred_fallthru
      _
    // Predicated region
    $region6: #{attack_transformer_forward.1} parent=1 // pred_check
      _
    $region7: #{attack_transformer_forward.1} parent=1 // pred_check_branch
      %23 = sbr.rel (0) target = $region9
    $region8: #{attack_transformer_forward.1} parent=1 // pred_region
      _
    $region9: #{attack_transformer_forward.1} parent=1 // pred_fallthru
      _
    // Predicated region
    $region10: #{attack_transformer_forward.1} parent=1 // pred_check
      _
    $region11: #{attack_transformer_forward.1} parent=1 // pred_check_branch
      %25 = sbr.rel (0) target = $region13
    $region12: #{attack_transformer_forward.1} parent=1 // pred_region
      _
    $region13: #{attack_transformer_forward.1} parent=1 // pred_fallthru
      _
    // Predicated region
    $region14: #{attack_transformer_forward.1} parent=1 // pred_check
      _
    $region15: #{attack_transformer_forward.1} parent=1 // pred_check_branch
      %27 = sbr.rel (0) target = $region17
    $region16: #{attack_transformer_forward.1} parent=1 // pred_region
      _
    $region17: #{attack_transformer_forward.1} parent=1 // pred_fallthru
      _
    // Predicated region
    $region18: #{attack_transformer_forward.1} parent=1 // pred_check
      _
    $region19: #{attack_transformer_forward.1} parent=1 // pred_check_branch
      %29 = sbr.rel (0) target = $region21
    $region20: #{attack_transformer_forward.1} parent=1 // pred_region
      _
    $region21: #{attack_transformer_forward.1} parent=1 // pred_fallthru
      _
    // Predicated region
    $region22: #{attack_transformer_forward.1} parent=1 // pred_check
      _
    $region23: #{attack_transformer_forward.1} parent=1 // pred_check_branch
      %31 = sbr.rel (0) target = $region25
    $region24: #{attack_transformer_forward.1} parent=1 // pred_region
      _
    $region25: #{attack_transformer_forward.1} parent=1 // pred_fallthru
      _
    // Predicated region
    $region26: #{attack_transformer_forward.1} parent=1 // pred_check
      _
    $region27: #{attack_transformer_forward.1} parent=1 // pred_check_branch
      %33 = sbr.rel (0) target = $region29
    $region28: #{attack_transformer_forward.1} parent=1 // pred_region
      _
    $region29: #{attack_transformer_forward.1} parent=1 // pred_fallthru
      _
    // Predicated region
    $region30: #{attack_transformer_forward.1} parent=1 // pred_check
      _
    $region31: #{attack_transformer_forward.1} parent=1 // pred_check_branch
      %35 = sbr.rel (0) target = $region33
    $region32: #{attack_transformer_forward.1} parent=1 // pred_region
      _
    $region33: #{attack_transformer_forward.1} parent=1 // pred_fallthru
      _
    // Predicated region
    $region34: #{attack_transformer_forward.1} parent=1 // pred_check
      _
    $region35: #{attack_transformer_forward.1} parent=1 // pred_check_branch
      %37 = sbr.rel (0) target = $region37
    $region36: #{attack_transformer_forward.1} parent=1 // pred_region
      _
    $region37: #{attack_transformer_forward.1} parent=1 // pred_fallthru
      _
    // Predicated region
    $region38: #{attack_transformer_forward.1} parent=1 // pred_check
      _
    $region39: #{attack_transformer_forward.1} parent=1 // pred_check_branch
      %39 = sbr.rel (0) target = $region41
    $region40: #{attack_transformer_forward.1} parent=1 // pred_region
      _
    $region41: #{attack_transformer_forward.1} parent=1 // pred_fallthru
      _
    // Predicated region
    $region42: #{attack_transformer_forward.1} parent=1 // pred_check
      _
    $region43: #{attack_transformer_forward.1} parent=1 // pred_check_branch
      %41 = sbr.rel (0) target = $region45
    $region44: #{attack_transformer_forward.1} parent=1 // pred_region
      _
    $region45: #{attack_transformer_forward.1} parent=1 // pred_fallthru
      _
    // Predicated region
    $region46: #{attack_transformer_forward.1} parent=1 // pred_check
      _
    $region47: #{attack_transformer_forward.1} parent=1 // pred_check_branch
      %43 = sbr.rel (0) target = $region49
    $region48: #{attack_transformer_forward.1} parent=1 // pred_region
      _
    $region49: #{attack_transformer_forward.1} parent=1 // pred_fallthru
      _
    // Predicated region
    $region50: #{attack_transformer_forward.1} parent=1 // pred_check
      _
    $region51: #{attack_transformer_forward.1} parent=1 // pred_check_branch
      %45 = sbr.rel (0) target = $region53
    $region52: #{attack_transformer_forward.1} parent=1 // pred_region
      _
    $region53: #{attack_transformer_forward.1} parent=1 // pred_fallthru
      _
    // Predicated region
    $region54: #{attack_transformer_forward.1} parent=1 // pred_check
      _
    $region55: #{attack_transformer_forward.1} parent=1 // pred_check_branch
      %47 = sbr.rel (0) target = $region57
    $region56: #{attack_transformer_forward.1} parent=1 // pred_region
      _
    $region57: #{attack_transformer_forward.1} parent=1 // pred_fallthru
      _
    %v49 = vld [vmem:[%s1] sm:$0xff]
    %v50 = vld [vmem:[%s3] sm:$0x3]
    %v51 = vld [vmem:[%s4] sm:$0xf]
    %vm52 = vcmask 31744
    %v54 = vsel %vm52, %v50, 0
    %vm56 = vcmask 1043456
    %v58 = vsel %vm56, %v51, 0
    %60 = vmatprep.subr.mxu0 0.0
    %61 = vmatpush1.msra.mxu0 %v58
    %62 = vmatprep.subr.mxu0 0.0
    %63 = vmatpush1.msra.mxu0 0.0
    %64 = vmatprep.subr.mxu0 0.0
    %65 = vmatpush1.msra.mxu0 0.0
    %66 = vmatprep.subr.mxu0 0.0
    %67 = vmatpush1.msra.mxu0 0.0
    %68 = vmatprep.subr.mxu0 0.0
    %69 = vmatpush1.msra.mxu0 0.0
    %70 = vmatprep.subr.mxu0 0.0
    %71 = vmatpush1.msra.mxu0 0.0
    %72 = vmatprep.subr.mxu0 0.0
    %73 = vmatpush1.msra.mxu0 0.0
    %74 = vmatprep.subr.mxu0 0.0
    %75 = vmatpush1.msra.mxu0 0.0
    %76 = vmatprep.subr.mxu0 0.0
    %77 = vmatpush1.msra.mxu0 0.0
    %78 = vmatprep.subr.mxu0 0.0
    %79 = vmatpush1.msra.mxu0 0.0
    %80 = vmatprep.subr.mxu0 0.0
    %81 = vmatpush1.msra.mxu0 0.0
    %82 = vmatprep.subr.mxu0 0.0
    %83 = vmatpush1.msra.mxu0 0.0
    %84 = vmatprep.subr.mxu0 0.0
    %85 = vmatpush1.msra.mxu0 0.0
    %86 = vmatprep.subr.mxu0 0.0
    %87 = vmatpush1.msra.mxu0 0.0
    %88 = vmatprep.subr.mxu0 0.0
    %89 = vmatpush1.msra.mxu0 0.0
    %90 = vmatprep.subr.mxu0 0.0
    %91 = vmatpush1.msra.mxu0 0.0
    %92 = vmatprep.subr.mxu0 0.0
    %93 = vmatpush1.msra.mxu0 0.0
    %94 = vmatprep.subr.mxu0 0.0
    %95 = vmatpush1.msra.mxu0 0.0
    %96 = vmatprep.subr.mxu0 0.0
    %97 = vmatpush1.msra.mxu0 0.0
    %98 = vmatprep.subr.mxu0 0.0
    %99 = vmatpush1.msra.mxu0 0.0
    %100 = vmatprep.subr.mxu0 0.0
    %101 = vmatpush1.msra.mxu0 0.0
    %102 = vmatprep.subr.mxu0 0.0
    %103 = vmatpush1.msra.mxu0 0.0
    %104 = vmatprep.subr.mxu0 0.0
    %105 = vmatpush1.msra.mxu0 0.0
    %106 = vmatprep.subr.mxu0 0.0
    %107 = vmatpush1.msra.mxu0 0.0
    %108 = vmatprep.subr.mxu0 0.0
    %109 = vmatpush1.msra.mxu0 0.0
    %110 = vmatprep.subr.mxu0 0.0
    %111 = vmatpush1.msra.mxu0 0.0
    %112 = vmatprep.subr.mxu0 0.0
    %113 = vmatpush1.msra.mxu0 0.0
    %114 = vmatprep.subr.mxu0 0.0
    %115 = vmatpush1.msra.mxu0 0.0
    %116 = vmatprep.subr.mxu0 0.0
    %117 = vmatpush1.msra.mxu0 0.0
    %118 = vmatprep.subr.mxu0 0.0
    %119 = vmatpush1.msra.mxu0 0.0
    %120 = vmatprep.subr.mxu0 0.0
    %121 = vmatpush1.msra.mxu0 0.0
    %122 = vmatprep.subr.mxu0 0.0
    %123 = vmatpush1.msra.mxu0 0.0
    %124 = vmatprep.mubr.f32.mxu0 0.0
    %125 = vmatmul.mubr.f32.gmra.mrb[0].mxu0 %v54
    %v126 = vpop.f32.mrb[0].mxu0
    %v127 = vadd.f32 0.0, %v126
    %v128 = vpop.f32.mrb[0].mxu0
    %129 = vdwg.mxu0
    %v130 = vld [vmem:[%s2] sm:$0x3]
    %v131 = vadd.f32 %v130, %v127
    %v132 = vld [vmem:[%s0] sm:$0xff]
    %v133 = vadd.f32 %v132, %v49
    %v134 = vlaneseq
    %v135 = vshrl.u32 %v134, 7
    %v136 = vsub.s32 0, %v135
    %v137 = vrot.slane %v131, %v136
    %v138 = vadd.f32 %v133, %v137
    %s139 = scalar_lea.vmem %s0, 8
    %v140 = vld [vmem:[%s139] sm:$0xff]
    %v141 = vadd.f32 %v140, %v49
    %v142 = vlaneseq
    %v143 = vshrl.u32 %v142, 7
    %v144 = vsub.s32 1, %v143
    %v145 = vrot.slane %v131, %v144
    %v146 = vadd.f32 %v141, %v145
    %v147 = vld [vmem:[%s11] sm:$0x3f]
    %v148 = vpack.c.bf16 %v146, %v138
    %v149 = vld [vmem:[%s5] sm:$0xf]
    %v150 = vld [vmem:[%s5 + $0x4] sm:$0xf]
    %v151 = vld [vmem:[%s5 + $0x8] sm:$0xf]
    %v152 = vld [vmem:[%s5 + $0xc] sm:$0xf]
    %v153 = vld [vmem:[%s6] sm:$0x1]
    %v155 = vlaneseq
    %v156 = vshrl.u32 %v155, 7
    %v157 = vsub.s32 0, %v156
    %v158 = vrot.slane %v153, %v157
    %v164 = vunpack.c.l.b16 %v149
    %v165 = vunpack.c.l.b16 %v150
    %v166 = vunpack.c.l.b16 %v151
    %v167 = vunpack.c.l.b16 %v152
    %v168 = vpack.c.b16 %v165, %v164
    %v169 = vpack.c.b16 %v167, %v166
    %vm172 = vcmask 261120
    %v174 = vsel %vm172, %v148, 0
    %176 = vmatprep.subr.bf16.mxu0 0
    %177 = vmatpush1.bf16.msra.mxu0 %v168
    %178 = vmatprep.subr.bf16.mxu0 0
    %179 = vmatpush1.bf16.msra.mxu0 %v169
    %180 = vmatprep.subr.bf16.mxu0 0
    %181 = vmatpush1.bf16.msra.mxu0 0
    %182 = vmatprep.subr.bf16.mxu0 0
    %183 = vmatpush1.bf16.msra.mxu0 0
    %184 = vmatprep.subr.bf16.mxu0 0
    %185 = vmatpush1.bf16.msra.mxu0 0
    %186 = vmatprep.subr.bf16.mxu0 0
    %187 = vmatpush1.bf16.msra.mxu0 0
    %188 = vmatprep.subr.bf16.mxu0 0
    %189 = vmatpush1.bf16.msra.mxu0 0
    %190 = vmatprep.subr.bf16.mxu0 0
    %191 = vmatpush1.bf16.msra.mxu0 0
    %192 = vmatprep.subr.bf16.mxu0 0
    %193 = vmatpush1.bf16.msra.mxu0 0
    %194 = vmatprep.subr.bf16.mxu0 0
    %195 = vmatpush1.bf16.msra.mxu0 0
    %196 = vmatprep.subr.bf16.mxu0 0
    %197 = vmatpush1.bf16.msra.mxu0 0
    %198 = vmatprep.subr.bf16.mxu0 0
    %199 = vmatpush1.bf16.msra.mxu0 0
    %200 = vmatprep.subr.bf16.mxu0 0
    %201 = vmatpush1.bf16.msra.mxu0 0
    %202 = vmatprep.subr.bf16.mxu0 0
    %203 = vmatpush1.bf16.msra.mxu0 0
    %204 = vmatprep.subr.bf16.mxu0 0
    %205 = vmatpush1.bf16.msra.mxu0 0
    %206 = vmatprep.subr.bf16.mxu0 0
    %207 = vmatpush1.bf16.msra.mxu0 0
    %208 = vmatprep.mubr.bf16.mxu0 0
    %209 = vmatmul.mubr.bf16.gmra.mrb[0].mxu0 %v174
    %v210 = vpop.f32.mrb[0].mxu0
    %v211 = vadd.f32 %v158, %v210
    %v212 = vpop.f32.mrb[0].mxu0
    %v213 = vpop.f32.mrb[0].mxu0
    %v214 = vadd.f32 %v158, %v213
    %v215 = vpop.f32.mrb[0].mxu0
    %216 = vdwg.mxu0
    %218 = vrot.lane.b32.xlu0 %v211, 96
    %v219 = vpop.permute.xlu0 %218
    %vm220 = vcmask 64512
    %v221 = vsel %vm220, %v211, 0
    %v223 = vsel %vm220, %v219, 0
    %225 = vmatprep.subr.mxu0 0.0
    %226 = vmatpush1.xpose.msra.mxu0 %v223
    %227 = vmatprep.subr.mxu0 0.0
    %228 = vmatpush1.xpose.msra.mxu0 0.0
    %229 = vmatprep.subr.mxu0 0.0
    %230 = vmatpush1.xpose.msra.mxu0 0.0
    %231 = vmatprep.subr.mxu0 0.0
    %232 = vmatpush1.xpose.msra.mxu0 0.0
    %233 = vmatprep.subr.mxu0 0.0
    %234 = vmatpush1.xpose.msra.mxu0 0.0
    %235 = vmatprep.subr.mxu0 0.0
    %236 = vmatpush1.xpose.msra.mxu0 0.0
    %237 = vmatprep.subr.mxu0 0.0
    %238 = vmatpush1.xpose.msra.mxu0 0.0
    %239 = vmatprep.subr.mxu0 0.0
    %240 = vmatpush1.xpose.msra.mxu0 0.0
    %241 = vmatprep.subr.mxu0 0.0
    %242 = vmatpush1.xpose.msra.mxu0 0.0
    %243 = vmatprep.subr.mxu0 0.0
    %244 = vmatpush1.xpose.msra.mxu0 0.0
    %245 = vmatprep.subr.mxu0 0.0
    %246 = vmatpush1.xpose.msra.mxu0 0.0
    %247 = vmatprep.subr.mxu0 0.0
    %248 = vmatpush1.xpose.msra.mxu0 0.0
    %249 = vmatprep.subr.mxu0 0.0
    %250 = vmatpush1.xpose.msra.mxu0 0.0
    %251 = vmatprep.subr.mxu0 0.0
    %252 = vmatpush1.xpose.msra.mxu0 0.0
    %253 = vmatprep.subr.mxu0 0.0
    %254 = vmatpush1.xpose.msra.mxu0 0.0
    %255 = vmatprep.subr.mxu0 0.0
    %256 = vmatpush1.xpose.msra.mxu0 0.0
    %257 = vmatprep.subr.mxu0 0.0
    %258 = vmatpush1.xpose.msra.mxu0 0.0
    %259 = vmatprep.subr.mxu0 0.0
    %260 = vmatpush1.xpose.msra.mxu0 0.0
    %261 = vmatprep.subr.mxu0 0.0
    %262 = vmatpush1.xpose.msra.mxu0 0.0
    %263 = vmatprep.subr.mxu0 0.0
    %264 = vmatpush1.xpose.msra.mxu0 0.0
    %265 = vmatprep.subr.mxu0 0.0
    %266 = vmatpush1.xpose.msra.mxu0 0.0
    %267 = vmatprep.subr.mxu0 0.0
    %268 = vmatpush1.xpose.msra.mxu0 0.0
    %269 = vmatprep.subr.mxu0 0.0
    %270 = vmatpush1.xpose.msra.mxu0 0.0
    %271 = vmatprep.subr.mxu0 0.0
    %272 = vmatpush1.xpose.msra.mxu0 0.0
    %273 = vmatprep.subr.mxu0 0.0
    %274 = vmatpush1.xpose.msra.mxu0 0.0
    %275 = vmatprep.subr.mxu0 0.0
    %276 = vmatpush1.xpose.msra.mxu0 0.0
    %277 = vmatprep.subr.mxu0 0.0
    %278 = vmatpush1.xpose.msra.mxu0 0.0
    %279 = vmatprep.subr.mxu0 0.0
    %280 = vmatpush1.xpose.msra.mxu0 0.0
    %281 = vmatprep.subr.mxu0 0.0
    %282 = vmatpush1.xpose.msra.mxu0 0.0
    %283 = vmatprep.subr.mxu0 0.0
    %284 = vmatpush1.xpose.msra.mxu0 0.0
    %285 = vmatprep.subr.mxu0 0.0
    %286 = vmatpush1.xpose.msra.mxu0 0.0
    %287 = vmatprep.subr.mxu0 0.0
    %288 = vmatpush1.xpose.msra.mxu0 0.0
    %289 = vmatprep.mubr.f32.mxu0 0.0
    %290 = vmatmul.mubr.f32.gmra.mrb[0].mxu0 %v221
    %v291 = vpop.f32.mrb[0].mxu0
    %v292 = vadd.f32 0.0, %v291
    %v293 = vpop.f32.mrb[0].mxu0
    %294 = vdwg.mxu0
    %295 = vrot.lane.b32.xlu0 %v211, 120
    %v296 = vpop.permute.xlu0 %295
    %297 = vrot.lane.b32.xlu0 %v211, 88
    %v298 = vpop.permute.xlu0 %297
    %v299 = vsel %vm220, %v296, 0
    %v301 = vsel %vm220, %v298, 0
    %303 = vmatprep.subr.mxu0 0.0
    %304 = vmatpush1.xpose.msra.mxu0 %v301
    %305 = vmatprep.subr.mxu0 0.0
    %306 = vmatpush1.xpose.msra.mxu0 0.0
    %307 = vmatprep.subr.mxu0 0.0
    %308 = vmatpush1.xpose.msra.mxu0 0.0
    %309 = vmatprep.subr.mxu0 0.0
    %310 = vmatpush1.xpose.msra.mxu0 0.0
    %311 = vmatprep.subr.mxu0 0.0
    %312 = vmatpush1.xpose.msra.mxu0 0.0
    %313 = vmatprep.subr.mxu0 0.0
    %314 = vmatpush1.xpose.msra.mxu0 0.0
    %315 = vmatprep.subr.mxu0 0.0
    %316 = vmatpush1.xpose.msra.mxu0 0.0
    %317 = vmatprep.subr.mxu0 0.0
    %318 = vmatpush1.xpose.msra.mxu0 0.0
    %319 = vmatprep.subr.mxu0 0.0
    %320 = vmatpush1.xpose.msra.mxu0 0.0
    %321 = vmatprep.subr.mxu0 0.0
    %322 = vmatpush1.xpose.msra.mxu0 0.0
    %323 = vmatprep.subr.mxu0 0.0
    %324 = vmatpush1.xpose.msra.mxu0 0.0
    %325 = vmatprep.subr.mxu0 0.0
    %326 = vmatpush1.xpose.msra.mxu0 0.0
    %327 = vmatprep.subr.mxu0 0.0
    %328 = vmatpush1.xpose.msra.mxu0 0.0
    %329 = vmatprep.subr.mxu0 0.0
    %330 = vmatpush1.xpose.msra.mxu0 0.0
    %331 = vmatprep.subr.mxu0 0.0
    %332 = vmatpush1.xpose.msra.mxu0 0.0
    %333 = vmatprep.subr.mxu0 0.0
    %334 = vmatpush1.xpose.msra.mxu0 0.0
    %335 = vmatprep.subr.mxu0 0.0
    %336 = vmatpush1.xpose.msra.mxu0 0.0
    %337 = vmatprep.subr.mxu0 0.0
    %338 = vmatpush1.xpose.msra.mxu0 0.0
    %339 = vmatprep.subr.mxu0 0.0
    %340 = vmatpush1.xpose.msra.mxu0 0.0
    %341 = vmatprep.subr.mxu0 0.0
    %342 = vmatpush1.xpose.msra.mxu0 0.0
    %343 = vmatprep.subr.mxu0 0.0
    %344 = vmatpush1.xpose.msra.mxu0 0.0
    %345 = vmatprep.subr.mxu0 0.0
    %346 = vmatpush1.xpose.msra.mxu0 0.0
    %347 = vmatprep.subr.mxu0 0.0
    %348 = vmatpush1.xpose.msra.mxu0 0.0
    %349 = vmatprep.subr.mxu0 0.0
    %350 = vmatpush1.xpose.msra.mxu0 0.0
    %351 = vmatprep.subr.mxu0 0.0
    %352 = vmatpush1.xpose.msra.mxu0 0.0
    %353 = vmatprep.subr.mxu0 0.0
    %354 = vmatpush1.xpose.msra.mxu0 0.0
    %355 = vmatprep.subr.mxu0 0.0
    %356 = vmatpush1.xpose.msra.mxu0 0.0
    %357 = vmatprep.subr.mxu0 0.0
    %358 = vmatpush1.xpose.msra.mxu0 0.0
    %359 = vmatprep.subr.mxu0 0.0
    %360 = vmatpush1.xpose.msra.mxu0 0.0
    %361 = vmatprep.subr.mxu0 0.0
    %362 = vmatpush1.xpose.msra.mxu0 0.0
    %363 = vmatprep.subr.mxu0 0.0
    %364 = vmatpush1.xpose.msra.mxu0 0.0
    %365 = vmatprep.subr.mxu0 0.0
    %366 = vmatpush1.xpose.msra.mxu0 0.0
    %367 = vmatprep.mubr.f32.mxu0 0.0
    %368 = vmatmul.mubr.f32.gmra.mrb[0].mxu0 %v299
    %v369 = vpop.f32.mrb[0].mxu0
    %v370 = vadd.f32 0.0, %v369
    %v371 = vpop.f32.mrb[0].mxu0
    %372 = vdwg.mxu0
    %373 = vrot.lane.b32.xlu0 %v211, 112
    %v374 = vpop.permute.xlu0 %373
    %375 = vrot.lane.b32.xlu0 %v211, 80
    %v376 = vpop.permute.xlu0 %375
    %v377 = vsel %vm220, %v374, 0
    %v379 = vsel %vm220, %v376, 0
    %381 = vmatprep.subr.mxu0 0.0
    %382 = vmatpush1.xpose.msra.mxu0 %v379
    %383 = vmatprep.subr.mxu0 0.0
    %384 = vmatpush1.xpose.msra.mxu0 0.0
    %385 = vmatprep.subr.mxu0 0.0
    %386 = vmatpush1.xpose.msra.mxu0 0.0
    %387 = vmatprep.subr.mxu0 0.0
    %388 = vmatpush1.xpose.msra.mxu0 0.0
    %389 = vmatprep.subr.mxu0 0.0
    %390 = vmatpush1.xpose.msra.mxu0 0.0
    %391 = vmatprep.subr.mxu0 0.0
    %392 = vmatpush1.xpose.msra.mxu0 0.0
    %393 = vmatprep.subr.mxu0 0.0
    %394 = vmatpush1.xpose.msra.mxu0 0.0
    %395 = vmatprep.subr.mxu0 0.0
    %396 = vmatpush1.xpose.msra.mxu0 0.0
    %397 = vmatprep.subr.mxu0 0.0
    %398 = vmatpush1.xpose.msra.mxu0 0.0
    %399 = vmatprep.subr.mxu0 0.0
    %400 = vmatpush1.xpose.msra.mxu0 0.0
    %401 = vmatprep.subr.mxu0 0.0
    %402 = vmatpush1.xpose.msra.mxu0 0.0
    %403 = vmatprep.subr.mxu0 0.0
    %404 = vmatpush1.xpose.msra.mxu0 0.0
    %405 = vmatprep.subr.mxu0 0.0
    %406 = vmatpush1.xpose.msra.mxu0 0.0
    %407 = vmatprep.subr.mxu0 0.0
    %408 = vmatpush1.xpose.msra.mxu0 0.0
    %409 = vmatprep.subr.mxu0 0.0
    %410 = vmatpush1.xpose.msra.mxu0 0.0
    %411 = vmatprep.subr.mxu0 0.0
    %412 = vmatpush1.xpose.msra.mxu0 0.0
    %413 = vmatprep.subr.mxu0 0.0
    %414 = vmatpush1.xpose.msra.mxu0 0.0
    %415 = vmatprep.subr.mxu0 0.0
    %416 = vmatpush1.xpose.msra.mxu0 0.0
    %417 = vmatprep.subr.mxu0 0.0
    %418 = vmatpush1.xpose.msra.mxu0 0.0
    %419 = vmatprep.subr.mxu0 0.0
    %420 = vmatpush1.xpose.msra.mxu0 0.0
    %421 = vmatprep.subr.mxu0 0.0
    %422 = vmatpush1.xpose.msra.mxu0 0.0
    %423 = vmatprep.subr.mxu0 0.0
    %424 = vmatpush1.xpose.msra.mxu0 0.0
    %425 = vmatprep.subr.mxu0 0.0
    %426 = vmatpush1.xpose.msra.mxu0 0.0
    %427 = vmatprep.subr.mxu0 0.0
    %428 = vmatpush1.xpose.msra.mxu0 0.0
    %429 = vmatprep.subr.mxu0 0.0
    %430 = vmatpush1.xpose.msra.mxu0 0.0
    %431 = vmatprep.subr.mxu0 0.0
    %432 = vmatpush1.xpose.msra.mxu0 0.0
    %433 = vmatprep.subr.mxu0 0.0
    %434 = vmatpush1.xpose.msra.mxu0 0.0
    %435 = vmatprep.subr.mxu0 0.0
    %436 = vmatpush1.xpose.msra.mxu0 0.0
    %437 = vmatprep.subr.mxu0 0.0
    %438 = vmatpush1.xpose.msra.mxu0 0.0
    %439 = vmatprep.subr.mxu0 0.0
    %440 = vmatpush1.xpose.msra.mxu0 0.0
    %441 = vmatprep.subr.mxu0 0.0
    %442 = vmatpush1.xpose.msra.mxu0 0.0
    %443 = vmatprep.subr.mxu0 0.0
    %444 = vmatpush1.xpose.msra.mxu0 0.0
    %445 = vmatprep.mubr.f32.mxu0 0.0
    %446 = vmatmul.mubr.f32.gmra.mrb[0].mxu0 %v377
    %v447 = vpop.f32.mrb[0].mxu0
    %v448 = vadd.f32 0.0, %v447
    %v449 = vpop.f32.mrb[0].mxu0
    %450 = vdwg.mxu0
    %451 = vrot.lane.b32.xlu0 %v211, 104
    %v452 = vpop.permute.xlu0 %451
    %453 = vrot.lane.b32.xlu0 %v211, 72
    %v454 = vpop.permute.xlu0 %453
    %v455 = vsel %vm220, %v452, 0
    %v457 = vsel %vm220, %v454, 0
    %459 = vmatprep.subr.mxu0 0.0
    %460 = vmatpush1.xpose.msra.mxu0 %v457
    %461 = vmatprep.subr.mxu0 0.0
    %462 = vmatpush1.xpose.msra.mxu0 0.0
    %463 = vmatprep.subr.mxu0 0.0
    %464 = vmatpush1.xpose.msra.mxu0 0.0
    %465 = vmatprep.subr.mxu0 0.0
    %466 = vmatpush1.xpose.msra.mxu0 0.0
    %467 = vmatprep.subr.mxu0 0.0
    %468 = vmatpush1.xpose.msra.mxu0 0.0
    %469 = vmatprep.subr.mxu0 0.0
    %470 = vmatpush1.xpose.msra.mxu0 0.0
    %471 = vmatprep.subr.mxu0 0.0
    %472 = vmatpush1.xpose.msra.mxu0 0.0
    %473 = vmatprep.subr.mxu0 0.0
    %474 = vmatpush1.xpose.msra.mxu0 0.0
    %475 = vmatprep.subr.mxu0 0.0
    %476 = vmatpush1.xpose.msra.mxu0 0.0
    %477 = vmatprep.subr.mxu0 0.0
    %478 = vmatpush1.xpose.msra.mxu0 0.0
    %479 = vmatprep.subr.mxu0 0.0
    %480 = vmatpush1.xpose.msra.mxu0 0.0
    %481 = vmatprep.subr.mxu0 0.0
    %482 = vmatpush1.xpose.msra.mxu0 0.0
    %483 = vmatprep.subr.mxu0 0.0
    %484 = vmatpush1.xpose.msra.mxu0 0.0
    %485 = vmatprep.subr.mxu0 0.0
    %486 = vmatpush1.xpose.msra.mxu0 0.0
    %487 = vmatprep.subr.mxu0 0.0
    %488 = vmatpush1.xpose.msra.mxu0 0.0
    %489 = vmatprep.subr.mxu0 0.0
    %490 = vmatpush1.xpose.msra.mxu0 0.0
    %491 = vmatprep.subr.mxu0 0.0
    %492 = vmatpush1.xpose.msra.mxu0 0.0
    %493 = vmatprep.subr.mxu0 0.0
    %494 = vmatpush1.xpose.msra.mxu0 0.0
    %495 = vmatprep.subr.mxu0 0.0
    %496 = vmatpush1.xpose.msra.mxu0 0.0
    %497 = vmatprep.subr.mxu0 0.0
    %498 = vmatpush1.xpose.msra.mxu0 0.0
    %499 = vmatprep.subr.mxu0 0.0
    %500 = vmatpush1.xpose.msra.mxu0 0.0
    %501 = vmatprep.subr.mxu0 0.0
    %502 = vmatpush1.xpose.msra.mxu0 0.0
    %503 = vmatprep.subr.mxu0 0.0
    %504 = vmatpush1.xpose.msra.mxu0 0.0
    %505 = vmatprep.subr.mxu0 0.0
    %506 = vmatpush1.xpose.msra.mxu0 0.0
    %507 = vmatprep.subr.mxu0 0.0
    %508 = vmatpush1.xpose.msra.mxu0 0.0
    %509 = vmatprep.subr.mxu0 0.0
    %510 = vmatpush1.xpose.msra.mxu0 0.0
    %511 = vmatprep.subr.mxu0 0.0
    %512 = vmatpush1.xpose.msra.mxu0 0.0
    %513 = vmatprep.subr.mxu0 0.0
    %514 = vmatpush1.xpose.msra.mxu0 0.0
    %515 = vmatprep.subr.mxu0 0.0
    %516 = vmatpush1.xpose.msra.mxu0 0.0
    %517 = vmatprep.subr.mxu0 0.0
    %518 = vmatpush1.xpose.msra.mxu0 0.0
    %519 = vmatprep.subr.mxu0 0.0
    %520 = vmatpush1.xpose.msra.mxu0 0.0
    %521 = vmatprep.subr.mxu0 0.0
    %522 = vmatpush1.xpose.msra.mxu0 0.0
    %523 = vmatprep.mubr.f32.mxu0 0.0
    %524 = vmatmul.mubr.f32.gmra.mrb[0].mxu0 %v455
    %v525 = vpop.f32.mrb[0].mxu0
    %v526 = vadd.f32 0.0, %v525
    %v527 = vpop.f32.mrb[0].mxu0
    %528 = vdwg.mxu0
    %530 = vrot.lane.b32.xlu0 %v214, 96
    %v531 = vpop.permute.xlu0 %530
    %v532 = vsel %vm220, %v214, 0
    %v534 = vsel %vm220, %v531, 0
    %536 = vmatprep.subr.mxu0 0.0
    %537 = vmatpush1.xpose.msra.mxu0 %v534
    %538 = vmatprep.subr.mxu0 0.0
    %539 = vmatpush1.xpose.msra.mxu0 0.0
    %540 = vmatprep.subr.mxu0 0.0
    %541 = vmatpush1.xpose.msra.mxu0 0.0
    %542 = vmatprep.subr.mxu0 0.0
    %543 = vmatpush1.xpose.msra.mxu0 0.0
    %544 = vmatprep.subr.mxu0 0.0
    %545 = vmatpush1.xpose.msra.mxu0 0.0
    %546 = vmatprep.subr.mxu0 0.0
    %547 = vmatpush1.xpose.msra.mxu0 0.0
    %548 = vmatprep.subr.mxu0 0.0
    %549 = vmatpush1.xpose.msra.mxu0 0.0
    %550 = vmatprep.subr.mxu0 0.0
    %551 = vmatpush1.xpose.msra.mxu0 0.0
    %552 = vmatprep.subr.mxu0 0.0
    %553 = vmatpush1.xpose.msra.mxu0 0.0
    %554 = vmatprep.subr.mxu0 0.0
    %555 = vmatpush1.xpose.msra.mxu0 0.0
    %556 = vmatprep.subr.mxu0 0.0
    %557 = vmatpush1.xpose.msra.mxu0 0.0
    %558 = vmatprep.subr.mxu0 0.0
    %559 = vmatpush1.xpose.msra.mxu0 0.0
    %560 = vmatprep.subr.mxu0 0.0
    %561 = vmatpush1.xpose.msra.mxu0 0.0
    %562 = vmatprep.subr.mxu0 0.0
    %563 = vmatpush1.xpose.msra.mxu0 0.0
    %564 = vmatprep.subr.mxu0 0.0
    %565 = vmatpush1.xpose.msra.mxu0 0.0
    %566 = vmatprep.subr.mxu0 0.0
    %567 = vmatpush1.xpose.msra.mxu0 0.0
    %568 = vmatprep.subr.mxu0 0.0
    %569 = vmatpush1.xpose.msra.mxu0 0.0
    %570 = vmatprep.subr.mxu0 0.0
    %571 = vmatpush1.xpose.msra.mxu0 0.0
    %572 = vmatprep.subr.mxu0 0.0
    %573 = vmatpush1.xpose.msra.mxu0 0.0
    %574 = vmatprep.subr.mxu0 0.0
    %575 = vmatpush1.xpose.msra.mxu0 0.0
    %576 = vmatprep.subr.mxu0 0.0
    %577 = vmatpush1.xpose.msra.mxu0 0.0
    %578 = vmatprep.subr.mxu0 0.0
    %579 = vmatpush1.xpose.msra.mxu0 0.0
    %580 = vmatprep.subr.mxu0 0.0
    %581 = vmatpush1.xpose.msra.mxu0 0.0
    %582 = vmatprep.subr.mxu0 0.0
    %583 = vmatpush1.xpose.msra.mxu0 0.0
    %584 = vmatprep.subr.mxu0 0.0
    %585 = vmatpush1.xpose.msra.mxu0 0.0
    %586 = vmatprep.subr.mxu0 0.0
    %587 = vmatpush1.xpose.msra.mxu0 0.0
    %588 = vmatprep.subr.mxu0 0.0
    %589 = vmatpush1.xpose.msra.mxu0 0.0
    %590 = vmatprep.subr.mxu0 0.0
    %591 = vmatpush1.xpose.msra.mxu0 0.0
    %592 = vmatprep.subr.mxu0 0.0
    %593 = vmatpush1.xpose.msra.mxu0 0.0
    %594 = vmatprep.subr.mxu0 0.0
    %595 = vmatpush1.xpose.msra.mxu0 0.0
    %596 = vmatprep.subr.mxu0 0.0
    %597 = vmatpush1.xpose.msra.mxu0 0.0
    %598 = vmatprep.subr.mxu0 0.0
    %599 = vmatpush1.xpose.msra.mxu0 0.0
    %600 = vmatprep.mubr.f32.mxu0 0.0
    %601 = vmatmul.mubr.f32.gmra.mrb[0].mxu0 %v532
    %v602 = vpop.f32.mrb[0].mxu0
    %v603 = vadd.f32 0.0, %v602
    %v604 = vpop.f32.mrb[0].mxu0
    %605 = vdwg.mxu0
    %606 = vrot.lane.b32.xlu0 %v214, 120
    %v607 = vpop.permute.xlu0 %606
    %608 = vrot.lane.b32.xlu0 %v214, 88
    %v609 = vpop.permute.xlu0 %608
    %v610 = vsel %vm220, %v607, 0
    %v612 = vsel %vm220, %v609, 0
    %614 = vmatprep.subr.mxu0 0.0
    %615 = vmatpush1.xpose.msra.mxu0 %v612
    %616 = vmatprep.subr.mxu0 0.0
    %617 = vmatpush1.xpose.msra.mxu0 0.0
    %618 = vmatprep.subr.mxu0 0.0
    %619 = vmatpush1.xpose.msra.mxu0 0.0
    %620 = vmatprep.subr.mxu0 0.0
    %621 = vmatpush1.xpose.msra.mxu0 0.0
    %622 = vmatprep.subr.mxu0 0.0
    %623 = vmatpush1.xpose.msra.mxu0 0.0
    %624 = vmatprep.subr.mxu0 0.0
    %625 = vmatpush1.xpose.msra.mxu0 0.0
    %626 = vmatprep.subr.mxu0 0.0
    %627 = vmatpush1.xpose.msra.mxu0 0.0
    %628 = vmatprep.subr.mxu0 0.0
    %629 = vmatpush1.xpose.msra.mxu0 0.0
    %630 = vmatprep.subr.mxu0 0.0
    %631 = vmatpush1.xpose.msra.mxu0 0.0
    %632 = vmatprep.subr.mxu0 0.0
    %633 = vmatpush1.xpose.msra.mxu0 0.0
    %634 = vmatprep.subr.mxu0 0.0
    %635 = vmatpush1.xpose.msra.mxu0 0.0
    %636 = vmatprep.subr.mxu0 0.0
    %637 = vmatpush1.xpose.msra.mxu0 0.0
    %638 = vmatprep.subr.mxu0 0.0
    %639 = vmatpush1.xpose.msra.mxu0 0.0
    %640 = vmatprep.subr.mxu0 0.0
    %641 = vmatpush1.xpose.msra.mxu0 0.0
    %642 = vmatprep.subr.mxu0 0.0
    %643 = vmatpush1.xpose.msra.mxu0 0.0
    %644 = vmatprep.subr.mxu0 0.0
    %645 = vmatpush1.xpose.msra.mxu0 0.0
    %646 = vmatprep.subr.mxu0 0.0
    %647 = vmatpush1.xpose.msra.mxu0 0.0
    %648 = vmatprep.subr.mxu0 0.0
    %649 = vmatpush1.xpose.msra.mxu0 0.0
    %650 = vmatprep.subr.mxu0 0.0
    %651 = vmatpush1.xpose.msra.mxu0 0.0
    %652 = vmatprep.subr.mxu0 0.0
    %653 = vmatpush1.xpose.msra.mxu0 0.0
    %654 = vmatprep.subr.mxu0 0.0
    %655 = vmatpush1.xpose.msra.mxu0 0.0
    %656 = vmatprep.subr.mxu0 0.0
    %657 = vmatpush1.xpose.msra.mxu0 0.0
    %658 = vmatprep.subr.mxu0 0.0
    %659 = vmatpush1.xpose.msra.mxu0 0.0
    %660 = vmatprep.subr.mxu0 0.0
    %661 = vmatpush1.xpose.msra.mxu0 0.0
    %662 = vmatprep.subr.mxu0 0.0
    %663 = vmatpush1.xpose.msra.mxu0 0.0
    %664 = vmatprep.subr.mxu0 0.0
    %665 = vmatpush1.xpose.msra.mxu0 0.0
    %666 = vmatprep.subr.mxu0 0.0
    %667 = vmatpush1.xpose.msra.mxu0 0.0
    %668 = vmatprep.subr.mxu0 0.0
    %669 = vmatpush1.xpose.msra.mxu0 0.0
    %670 = vmatprep.subr.mxu0 0.0
    %671 = vmatpush1.xpose.msra.mxu0 0.0
    %672 = vmatprep.subr.mxu0 0.0
    %673 = vmatpush1.xpose.msra.mxu0 0.0
    %674 = vmatprep.subr.mxu0 0.0
    %675 = vmatpush1.xpose.msra.mxu0 0.0
    %676 = vmatprep.subr.mxu0 0.0
    %677 = vmatpush1.xpose.msra.mxu0 0.0
    %678 = vmatprep.mubr.f32.mxu0 0.0
    %679 = vmatmul.mubr.f32.gmra.mrb[0].mxu0 %v610
    %v680 = vpop.f32.mrb[0].mxu0
    %v681 = vadd.f32 0.0, %v680
    %v682 = vpop.f32.mrb[0].mxu0
    %683 = vdwg.mxu0
    %684 = vrot.lane.b32.xlu0 %v214, 112
    %v685 = vpop.permute.xlu0 %684
    %686 = vrot.lane.b32.xlu0 %v214, 80
    %v687 = vpop.permute.xlu0 %686
    %v688 = vsel %vm220, %v685, 0
    %v690 = vsel %vm220, %v687, 0
    %692 = vmatprep.subr.mxu0 0.0
    %693 = vmatpush1.xpose.msra.mxu0 %v690
    %694 = vmatprep.subr.mxu0 0.0
    %695 = vmatpush1.xpose.msra.mxu0 0.0
    %696 = vmatprep.subr.mxu0 0.0
    %697 = vmatpush1.xpose.msra.mxu0 0.0
    %698 = vmatprep.subr.mxu0 0.0
    %699 = vmatpush1.xpose.msra.mxu0 0.0
    %700 = vmatprep.subr.mxu0 0.0
    %701 = vmatpush1.xpose.msra.mxu0 0.0
    %702 = vmatprep.subr.mxu0 0.0
    %703 = vmatpush1.xpose.msra.mxu0 0.0
    %704 = vmatprep.subr.mxu0 0.0
    %705 = vmatpush1.xpose.msra.mxu0 0.0
    %706 = vmatprep.subr.mxu0 0.0
    %707 = vmatpush1.xpose.msra.mxu0 0.0
    %708 = vmatprep.subr.mxu0 0.0
    %709 = vmatpush1.xpose.msra.mxu0 0.0
    %710 = vmatprep.subr.mxu0 0.0
    %711 = vmatpush1.xpose.msra.mxu0 0.0
    %712 = vmatprep.subr.mxu0 0.0
    %713 = vmatpush1.xpose.msra.mxu0 0.0
    %714 = vmatprep.subr.mxu0 0.0
    %715 = vmatpush1.xpose.msra.mxu0 0.0
    %716 = vmatprep.subr.mxu0 0.0
    %717 = vmatpush1.xpose.msra.mxu0 0.0
    %718 = vmatprep.subr.mxu0 0.0
    %719 = vmatpush1.xpose.msra.mxu0 0.0
    %720 = vmatprep.subr.mxu0 0.0
    %721 = vmatpush1.xpose.msra.mxu0 0.0
    %722 = vmatprep.subr.mxu0 0.0
    %723 = vmatpush1.xpose.msra.mxu0 0.0
    %724 = vmatprep.subr.mxu0 0.0
    %725 = vmatpush1.xpose.msra.mxu0 0.0
    %726 = vmatprep.subr.mxu0 0.0
    %727 = vmatpush1.xpose.msra.mxu0 0.0
    %728 = vmatprep.subr.mxu0 0.0
    %729 = vmatpush1.xpose.msra.mxu0 0.0
    %730 = vmatprep.subr.mxu0 0.0
    %731 = vmatpush1.xpose.msra.mxu0 0.0
    %732 = vmatprep.subr.mxu0 0.0
    %733 = vmatpush1.xpose.msra.mxu0 0.0
    %734 = vmatprep.subr.mxu0 0.0
    %735 = vmatpush1.xpose.msra.mxu0 0.0
    %736 = vmatprep.subr.mxu0 0.0
    %737 = vmatpush1.xpose.msra.mxu0 0.0
    %738 = vmatprep.subr.mxu0 0.0
    %739 = vmatpush1.xpose.msra.mxu0 0.0
    %740 = vmatprep.subr.mxu0 0.0
    %741 = vmatpush1.xpose.msra.mxu0 0.0
    %742 = vmatprep.subr.mxu0 0.0
    %743 = vmatpush1.xpose.msra.mxu0 0.0
    %744 = vmatprep.subr.mxu0 0.0
    %745 = vmatpush1.xpose.msra.mxu0 0.0
    %746 = vmatprep.subr.mxu0 0.0
    %747 = vmatpush1.xpose.msra.mxu0 0.0
    %748 = vmatprep.subr.mxu0 0.0
    %749 = vmatpush1.xpose.msra.mxu0 0.0
    %750 = vmatprep.subr.mxu0 0.0
    %751 = vmatpush1.xpose.msra.mxu0 0.0
    %752 = vmatprep.subr.mxu0 0.0
    %753 = vmatpush1.xpose.msra.mxu0 0.0
    %754 = vmatprep.subr.mxu0 0.0
    %755 = vmatpush1.xpose.msra.mxu0 0.0
    %756 = vmatprep.mubr.f32.mxu0 0.0
    %757 = vmatmul.mubr.f32.gmra.mrb[0].mxu0 %v688
    %v758 = vpop.f32.mrb[0].mxu0
    %v759 = vadd.f32 0.0, %v758
    %v760 = vpop.f32.mrb[0].mxu0
    %761 = vdwg.mxu0
    %762 = vrot.lane.b32.xlu0 %v214, 104
    %v763 = vpop.permute.xlu0 %762
    %764 = vrot.lane.b32.xlu0 %v214, 72
    %v765 = vpop.permute.xlu0 %764
    %v766 = vsel %vm220, %v763, 0
    %v768 = vsel %vm220, %v765, 0
    %770 = vmatprep.subr.mxu0 0.0
    %771 = vmatpush1.xpose.msra.mxu0 %v768
    %772 = vmatprep.subr.mxu0 0.0
    %773 = vmatpush1.xpose.msra.mxu0 0.0
    %774 = vmatprep.subr.mxu0 0.0
    %775 = vmatpush1.xpose.msra.mxu0 0.0
    %776 = vmatprep.subr.mxu0 0.0
    %777 = vmatpush1.xpose.msra.mxu0 0.0
    %778 = vmatprep.subr.mxu0 0.0
    %779 = vmatpush1.xpose.msra.mxu0 0.0
    %780 = vmatprep.subr.mxu0 0.0
    %781 = vmatpush1.xpose.msra.mxu0 0.0
    %782 = vmatprep.subr.mxu0 0.0
    %783 = vmatpush1.xpose.msra.mxu0 0.0
    %784 = vmatprep.subr.mxu0 0.0
    %785 = vmatpush1.xpose.msra.mxu0 0.0
    %786 = vmatprep.subr.mxu0 0.0
    %787 = vmatpush1.xpose.msra.mxu0 0.0
    %788 = vmatprep.subr.mxu0 0.0
    %789 = vmatpush1.xpose.msra.mxu0 0.0
    %790 = vmatprep.subr.mxu0 0.0
    %791 = vmatpush1.xpose.msra.mxu0 0.0
    %792 = vmatprep.subr.mxu0 0.0
    %793 = vmatpush1.xpose.msra.mxu0 0.0
    %794 = vmatprep.subr.mxu0 0.0
    %795 = vmatpush1.xpose.msra.mxu0 0.0
    %796 = vmatprep.subr.mxu0 0.0
    %797 = vmatpush1.xpose.msra.mxu0 0.0
    %798 = vmatprep.subr.mxu0 0.0
    %799 = vmatpush1.xpose.msra.mxu0 0.0
    %800 = vmatprep.subr.mxu0 0.0
    %801 = vmatpush1.xpose.msra.mxu0 0.0
    %802 = vmatprep.subr.mxu0 0.0
    %803 = vmatpush1.xpose.msra.mxu0 0.0
    %804 = vmatprep.subr.mxu0 0.0
    %805 = vmatpush1.xpose.msra.mxu0 0.0
    %806 = vmatprep.subr.mxu0 0.0
    %807 = vmatpush1.xpose.msra.mxu0 0.0
    %808 = vmatprep.subr.mxu0 0.0
    %809 = vmatpush1.xpose.msra.mxu0 0.0
    %810 = vmatprep.subr.mxu0 0.0
    %811 = vmatpush1.xpose.msra.mxu0 0.0
    %812 = vmatprep.subr.mxu0 0.0
    %813 = vmatpush1.xpose.msra.mxu0 0.0
    %814 = vmatprep.subr.mxu0 0.0
    %815 = vmatpush1.xpose.msra.mxu0 0.0
    %816 = vmatprep.subr.mxu0 0.0
    %817 = vmatpush1.xpose.msra.mxu0 0.0
    %818 = vmatprep.subr.mxu0 0.0
    %819 = vmatpush1.xpose.msra.mxu0 0.0
    %820 = vmatprep.subr.mxu0 0.0
    %821 = vmatpush1.xpose.msra.mxu0 0.0
    %822 = vmatprep.subr.mxu0 0.0
    %823 = vmatpush1.xpose.msra.mxu0 0.0
    %824 = vmatprep.subr.mxu0 0.0
    %825 = vmatpush1.xpose.msra.mxu0 0.0
    %826 = vmatprep.subr.mxu0 0.0
    %827 = vmatpush1.xpose.msra.mxu0 0.0
    %828 = vmatprep.subr.mxu0 0.0
    %829 = vmatpush1.xpose.msra.mxu0 0.0
    %830 = vmatprep.subr.mxu0 0.0
    %831 = vmatpush1.xpose.msra.mxu0 0.0
    %832 = vmatprep.subr.mxu0 0.0
    %833 = vmatpush1.xpose.msra.mxu0 0.0
    %834 = vmatprep.mubr.f32.mxu0 0.0
    %835 = vmatmul.mubr.f32.gmra.mrb[0].mxu0 %v766
    %v836 = vpop.f32.mrb[0].mxu0
    %v837 = vadd.f32 0.0, %v836
    %v838 = vpop.f32.mrb[0].mxu0
    %839 = vdwg.mxu0
    %v840 = vsel %vm220, %v292, -inf
    %841 = vmax.xlane.f32.xlu0 %v840
    %v842 = vpop.xlane.xlu0 %841
    %v843 = vsel %vm220, %v370, -inf
    %844 = vmax.xlane.f32.xlu0 %v843
    %v845 = vpop.xlane.xlu0 %844
    %v846 = vsel %vm220, %v448, -inf
    %847 = vmax.xlane.f32.xlu0 %v846
    %v848 = vpop.xlane.xlu0 %847
    %v849 = vsel %vm220, %v526, -inf
    %850 = vmax.xlane.f32.xlu0 %v849
    %v851 = vpop.xlane.xlu0 %850
    %v852 = vsel %vm220, %v603, -inf
    %853 = vmax.xlane.f32.xlu0 %v852
    %v854 = vpop.xlane.xlu0 %853
    %v855 = vsel %vm220, %v681, -inf
    %856 = vmax.xlane.f32.xlu0 %v855
    %v857 = vpop.xlane.xlu0 %856
    %v858 = vsel %vm220, %v759, -inf
    %859 = vmax.xlane.f32.xlu0 %v858
    %v860 = vpop.xlane.xlu0 %859
    %v861 = vsel %vm220, %v837, -inf
    %862 = vmax.xlane.f32.xlu0 %v861
    %v863 = vpop.xlane.xlu0 %862
    %v864 = vsub.f32 %v292, %v842
    %v865 = vsub.f32 %v370, %v845
    %v866 = vsub.f32 %v448, %v848
    %v867 = vsub.f32 %v526, %v851
    %v868 = vsub.f32 %v603, %v854
    %v869 = vsub.f32 %v681, %v857
    %v870 = vsub.f32 %v759, %v860
    %v871 = vsub.f32 %v837, %v863
    %v872 = vmul.f32 %v864, 1.442695
    %v873 = vpow.pop %v872
    %v874 = vmul.f32 %v865, 1.442695
    %v875 = vpow.pop %v874
    %v876 = vmul.f32 %v866, 1.442695
    %v877 = vpow.pop %v876
    %v878 = vmul.f32 %v867, 1.442695
    %v879 = vpow.pop %v878
    %v880 = vmul.f32 %v868, 1.442695
    %v881 = vpow.pop %v880
    %v882 = vmul.f32 %v869, 1.442695
    %v883 = vpow.pop %v882
    %v884 = vmul.f32 %v870, 1.442695
    %v885 = vpow.pop %v884
    %v886 = vmul.f32 %v871, 1.442695
    %v887 = vpow.pop %v886
    %v888 = vsel %vm220, %v873, 0.0
    %889 = vadd.xlane.f32.xlu0 %v888
    %v890 = vpop.xlane.xlu0 %889
    %v891 = vsel %vm220, %v875, 0.0
    %892 = vadd.xlane.f32.xlu0 %v891
    %v893 = vpop.xlane.xlu0 %892
    %v894 = vsel %vm220, %v877, 0.0
    %895 = vadd.xlane.f32.xlu0 %v894
    %v896 = vpop.xlane.xlu0 %895
    %v897 = vsel %vm220, %v879, 0.0
    %898 = vadd.xlane.f32.xlu0 %v897
    %v899 = vpop.xlane.xlu0 %898
    %v900 = vsel %vm220, %v881, 0.0
    %901 = vadd.xlane.f32.xlu0 %v900
    %v902 = vpop.xlane.xlu0 %901
    %v903 = vsel %vm220, %v883, 0.0
    %904 = vadd.xlane.f32.xlu0 %v903
    %v905 = vpop.xlane.xlu0 %904
    %v906 = vsel %vm220, %v885, 0.0
    %907 = vadd.xlane.f32.xlu0 %v906
    %v908 = vpop.xlane.xlu0 %907
    %v909 = vsel %vm220, %v887, 0.0
    %910 = vadd.xlane.f32.xlu0 %v909
    %v911 = vpop.xlane.xlu0 %910
    %v912 = vrcp.pop %v890
    %v913 = vrcp.pop %v893
    %v914 = vrcp.pop %v896
    %v915 = vrcp.pop %v899
    %v916 = vrcp.pop %v902
    %v917 = vrcp.pop %v905
    %v918 = vrcp.pop %v908
    %v919 = vrcp.pop %v911
    %v920 = vmul.f32 %v873, %v912
    %v921 = vmul.f32 %v875, %v913
    %v922 = vmul.f32 %v877, %v914
    %v923 = vmul.f32 %v879, %v915
    %v924 = vmul.f32 %v881, %v916
    %v925 = vmul.f32 %v883, %v917
    %v926 = vmul.f32 %v885, %v918
    %v927 = vmul.f32 %v887, %v919
    %928 = vrot.lane.b32.xlu0 %v211, 64
    %v929 = vpop.permute.xlu0 %928
    %v932 = vsel %vm220, %v920, 0
    %934 = vmatprep.subr.mxu0 0.0
    %935 = vmatpush1.msra.mxu0 %v929
    %936 = vmatprep.subr.mxu0 0.0
    %937 = vmatpush1.msra.mxu0 0.0
    %938 = vmatprep.subr.mxu0 0.0
    %939 = vmatpush1.msra.mxu0 0.0
    %940 = vmatprep.subr.mxu0 0.0
    %941 = vmatpush1.msra.mxu0 0.0
    %942 = vmatprep.subr.mxu0 0.0
    %943 = vmatpush1.msra.mxu0 0.0
    %944 = vmatprep.subr.mxu0 0.0
    %945 = vmatpush1.msra.mxu0 0.0
    %946 = vmatprep.subr.mxu0 0.0
    %947 = vmatpush1.msra.mxu0 0.0
    %948 = vmatprep.subr.mxu0 0.0
    %949 = vmatpush1.msra.mxu0 0.0
    %950 = vmatprep.subr.mxu0 0.0
    %951 = vmatpush1.msra.mxu0 0.0
    %952 = vmatprep.subr.mxu0 0.0
    %953 = vmatpush1.msra.mxu0 0.0
    %954 = vmatprep.subr.mxu0 0.0
    %955 = vmatpush1.msra.mxu0 0.0
    %956 = vmatprep.subr.mxu0 0.0
    %957 = vmatpush1.msra.mxu0 0.0
    %958 = vmatprep.subr.mxu0 0.0
    %959 = vmatpush1.msra.mxu0 0.0
    %960 = vmatprep.subr.mxu0 0.0
    %961 = vmatpush1.msra.mxu0 0.0
    %962 = vmatprep.subr.mxu0 0.0
    %963 = vmatpush1.msra.mxu0 0.0
    %964 = vmatprep.subr.mxu0 0.0
    %965 = vmatpush1.msra.mxu0 0.0
    %966 = vmatprep.subr.mxu0 0.0
    %967 = vmatpush1.msra.mxu0 0.0
    %968 = vmatprep.subr.mxu0 0.0
    %969 = vmatpush1.msra.mxu0 0.0
    %970 = vmatprep.subr.mxu0 0.0
    %971 = vmatpush1.msra.mxu0 0.0
    %972 = vmatprep.subr.mxu0 0.0
    %973 = vmatpush1.msra.mxu0 0.0
    %974 = vmatprep.subr.mxu0 0.0
    %975 = vmatpush1.msra.mxu0 0.0
    %976 = vmatprep.subr.mxu0 0.0
    %977 = vmatpush1.msra.mxu0 0.0
    %978 = vmatprep.subr.mxu0 0.0
    %979 = vmatpush1.msra.mxu0 0.0
    %980 = vmatprep.subr.mxu0 0.0
    %981 = vmatpush1.msra.mxu0 0.0
    %982 = vmatprep.subr.mxu0 0.0
    %983 = vmatpush1.msra.mxu0 0.0
    %984 = vmatprep.subr.mxu0 0.0
    %985 = vmatpush1.msra.mxu0 0.0
    %986 = vmatprep.subr.mxu0 0.0
    %987 = vmatpush1.msra.mxu0 0.0
    %988 = vmatprep.subr.mxu0 0.0
    %989 = vmatpush1.msra.mxu0 0.0
    %990 = vmatprep.subr.mxu0 0.0
    %991 = vmatpush1.msra.mxu0 0.0
    %992 = vmatprep.subr.mxu0 0.0
    %993 = vmatpush1.msra.mxu0 0.0
    %994 = vmatprep.subr.mxu0 0.0
    %995 = vmatpush1.msra.mxu0 0.0
    %996 = vmatprep.subr.mxu0 0.0
    %997 = vmatpush1.msra.mxu0 0.0
    %998 = vmatprep.mubr.f32.mxu0 0.0
    %999 = vmatmul.mubr.f32.gmra.mrb[0].mxu0 %v932
    %v1000 = vpop.f32.mrb[0].mxu0
    %v1001 = vadd.f32 0.0, %v1000
    %v1002 = vpop.f32.mrb[0].mxu0
    %1003 = vdwg.mxu0
    %1004 = vrot.lane.b32.xlu0 %v211, 56
    %v1005 = vpop.permute.xlu0 %1004
    %v1008 = vsel %vm220, %v921, 0
    %1010 = vmatprep.subr.mxu0 0.0
    %1011 = vmatpush1.msra.mxu0 %v1005
    %1012 = vmatprep.subr.mxu0 0.0
    %1013 = vmatpush1.msra.mxu0 0.0
    %1014 = vmatprep.subr.mxu0 0.0
    %1015 = vmatpush1.msra.mxu0 0.0
    %1016 = vmatprep.subr.mxu0 0.0
    %1017 = vmatpush1.msra.mxu0 0.0
    %1018 = vmatprep.subr.mxu0 0.0
    %1019 = vmatpush1.msra.mxu0 0.0
    %1020 = vmatprep.subr.mxu0 0.0
    %1021 = vmatpush1.msra.mxu0 0.0
    %1022 = vmatprep.subr.mxu0 0.0
    %1023 = vmatpush1.msra.mxu0 0.0
    %1024 = vmatprep.subr.mxu0 0.0
    %1025 = vmatpush1.msra.mxu0 0.0
    %1026 = vmatprep.subr.mxu0 0.0
    %1027 = vmatpush1.msra.mxu0 0.0
    %1028 = vmatprep.subr.mxu0 0.0
    %1029 = vmatpush1.msra.mxu0 0.0
    %1030 = vmatprep.subr.mxu0 0.0
    %1031 = vmatpush1.msra.mxu0 0.0
    %1032 = vmatprep.subr.mxu0 0.0
    %1033 = vmatpush1.msra.mxu0 0.0
    %1034 = vmatprep.subr.mxu0 0.0
    %1035 = vmatpush1.msra.mxu0 0.0
    %1036 = vmatprep.subr.mxu0 0.0
    %1037 = vmatpush1.msra.mxu0 0.0
    %1038 = vmatprep.subr.mxu0 0.0
    %1039 = vmatpush1.msra.mxu0 0.0
    %1040 = vmatprep.subr.mxu0 0.0
    %1041 = vmatpush1.msra.mxu0 0.0
    %1042 = vmatprep.subr.mxu0 0.0
    %1043 = vmatpush1.msra.mxu0 0.0
    %1044 = vmatprep.subr.mxu0 0.0
    %1045 = vmatpush1.msra.mxu0 0.0
    %1046 = vmatprep.subr.mxu0 0.0
    %1047 = vmatpush1.msra.mxu0 0.0
    %1048 = vmatprep.subr.mxu0 0.0
    %1049 = vmatpush1.msra.mxu0 0.0
    %1050 = vmatprep.subr.mxu0 0.0
    %1051 = vmatpush1.msra.mxu0 0.0
    %1052 = vmatprep.subr.mxu0 0.0
    %1053 = vmatpush1.msra.mxu0 0.0
    %1054 = vmatprep.subr.mxu0 0.0
    %1055 = vmatpush1.msra.mxu0 0.0
    %1056 = vmatprep.subr.mxu0 0.0
    %1057 = vmatpush1.msra.mxu0 0.0
    %1058 = vmatprep.subr.mxu0 0.0
    %1059 = vmatpush1.msra.mxu0 0.0
    %1060 = vmatprep.subr.mxu0 0.0
    %1061 = vmatpush1.msra.mxu0 0.0
    %1062 = vmatprep.subr.mxu0 0.0
    %1063 = vmatpush1.msra.mxu0 0.0
    %1064 = vmatprep.subr.mxu0 0.0
    %1065 = vmatpush1.msra.mxu0 0.0
    %1066 = vmatprep.subr.mxu0 0.0
    %1067 = vmatpush1.msra.mxu0 0.0
    %1068 = vmatprep.subr.mxu0 0.0
    %1069 = vmatpush1.msra.mxu0 0.0
    %1070 = vmatprep.subr.mxu0 0.0
    %1071 = vmatpush1.msra.mxu0 0.0
    %1072 = vmatprep.subr.mxu0 0.0
    %1073 = vmatpush1.msra.mxu0 0.0
    %1074 = vmatprep.mubr.f32.mxu0 0.0
    %1075 = vmatmul.mubr.f32.gmra.mrb[0].mxu0 %v1008
    %v1076 = vpop.f32.mrb[0].mxu0
    %v1077 = vadd.f32 0.0, %v1076
    %v1078 = vpop.f32.mrb[0].mxu0
    %1079 = vdwg.mxu0
    %1080 = vrot.lane.b32.xlu0 %v211, 48
    %v1081 = vpop.permute.xlu0 %1080
    %v1084 = vsel %vm220, %v922, 0
    %1086 = vmatprep.subr.mxu0 0.0
    %1087 = vmatpush1.msra.mxu0 %v1081
    %1088 = vmatprep.subr.mxu0 0.0
    %1089 = vmatpush1.msra.mxu0 0.0
    %1090 = vmatprep.subr.mxu0 0.0
    %1091 = vmatpush1.msra.mxu0 0.0
    %1092 = vmatprep.subr.mxu0 0.0
    %1093 = vmatpush1.msra.mxu0 0.0
    %1094 = vmatprep.subr.mxu0 0.0
    %1095 = vmatpush1.msra.mxu0 0.0
    %1096 = vmatprep.subr.mxu0 0.0
    %1097 = vmatpush1.msra.mxu0 0.0
    %1098 = vmatprep.subr.mxu0 0.0
    %1099 = vmatpush1.msra.mxu0 0.0
    %1100 = vmatprep.subr.mxu0 0.0
    %1101 = vmatpush1.msra.mxu0 0.0
    %1102 = vmatprep.subr.mxu0 0.0
    %1103 = vmatpush1.msra.mxu0 0.0
    %1104 = vmatprep.subr.mxu0 0.0
    %1105 = vmatpush1.msra.mxu0 0.0
    %1106 = vmatprep.subr.mxu0 0.0
    %1107 = vmatpush1.msra.mxu0 0.0
    %1108 = vmatprep.subr.mxu0 0.0
    %1109 = vmatpush1.msra.mxu0 0.0
    %1110 = vmatprep.subr.mxu0 0.0
    %1111 = vmatpush1.msra.mxu0 0.0
    %1112 = vmatprep.subr.mxu0 0.0
    %1113 = vmatpush1.msra.mxu0 0.0
    %1114 = vmatprep.subr.mxu0 0.0
    %1115 = vmatpush1.msra.mxu0 0.0
    %1116 = vmatprep.subr.mxu0 0.0
    %1117 = vmatpush1.msra.mxu0 0.0
    %1118 = vmatprep.subr.mxu0 0.0
    %1119 = vmatpush1.msra.mxu0 0.0
    %1120 = vmatprep.subr.mxu0 0.0
    %1121 = vmatpush1.msra.mxu0 0.0
    %1122 = vmatprep.subr.mxu0 0.0
    %1123 = vmatpush1.msra.mxu0 0.0
    %1124 = vmatprep.subr.mxu0 0.0
    %1125 = vmatpush1.msra.mxu0 0.0
    %1126 = vmatprep.subr.mxu0 0.0
    %1127 = vmatpush1.msra.mxu0 0.0
    %1128 = vmatprep.subr.mxu0 0.0
    %1129 = vmatpush1.msra.mxu0 0.0
    %1130 = vmatprep.subr.mxu0 0.0
    %1131 = vmatpush1.msra.mxu0 0.0
    %1132 = vmatprep.subr.mxu0 0.0
    %1133 = vmatpush1.msra.mxu0 0.0
    %1134 = vmatprep.subr.mxu0 0.0
    %1135 = vmatpush1.msra.mxu0 0.0
    %1136 = vmatprep.subr.mxu0 0.0
    %1137 = vmatpush1.msra.mxu0 0.0
    %1138 = vmatprep.subr.mxu0 0.0
    %1139 = vmatpush1.msra.mxu0 0.0
    %1140 = vmatprep.subr.mxu0 0.0
    %1141 = vmatpush1.msra.mxu0 0.0
    %1142 = vmatprep.subr.mxu0 0.0
    %1143 = vmatpush1.msra.mxu0 0.0
    %1144 = vmatprep.subr.mxu0 0.0
    %1145 = vmatpush1.msra.mxu0 0.0
    %1146 = vmatprep.subr.mxu0 0.0
    %1147 = vmatpush1.msra.mxu0 0.0
    %1148 = vmatprep.subr.mxu0 0.0
    %1149 = vmatpush1.msra.mxu0 0.0
    %1150 = vmatprep.mubr.f32.mxu0 0.0
    %1151 = vmatmul.mubr.f32.gmra.mrb[0].mxu0 %v1084
    %v1152 = vpop.f32.mrb[0].mxu0
    %v1153 = vadd.f32 0.0, %v1152
    %v1154 = vpop.f32.mrb[0].mxu0
    %1155 = vdwg.mxu0
    %1156 = vrot.lane.b32.xlu0 %v211, 40
    %v1157 = vpop.permute.xlu0 %1156
    %v1160 = vsel %vm220, %v923, 0
    %1162 = vmatprep.subr.mxu0 0.0
    %1163 = vmatpush1.msra.mxu0 %v1157
    %1164 = vmatprep.subr.mxu0 0.0
    %1165 = vmatpush1.msra.mxu0 0.0
    %1166 = vmatprep.subr.mxu0 0.0
    %1167 = vmatpush1.msra.mxu0 0.0
    %1168 = vmatprep.subr.mxu0 0.0
    %1169 = vmatpush1.msra.mxu0 0.0
    %1170 = vmatprep.subr.mxu0 0.0
    %1171 = vmatpush1.msra.mxu0 0.0
    %1172 = vmatprep.subr.mxu0 0.0
    %1173 = vmatpush1.msra.mxu0 0.0
    %1174 = vmatprep.subr.mxu0 0.0
    %1175 = vmatpush1.msra.mxu0 0.0
    %1176 = vmatprep.subr.mxu0 0.0
    %1177 = vmatpush1.msra.mxu0 0.0
    %1178 = vmatprep.subr.mxu0 0.0
    %1179 = vmatpush1.msra.mxu0 0.0
    %1180 = vmatprep.subr.mxu0 0.0
    %1181 = vmatpush1.msra.mxu0 0.0
    %1182 = vmatprep.subr.mxu0 0.0
    %1183 = vmatpush1.msra.mxu0 0.0
    %1184 = vmatprep.subr.mxu0 0.0
    %1185 = vmatpush1.msra.mxu0 0.0
    %1186 = vmatprep.subr.mxu0 0.0
    %1187 = vmatpush1.msra.mxu0 0.0
    %1188 = vmatprep.subr.mxu0 0.0
    %1189 = vmatpush1.msra.mxu0 0.0
    %1190 = vmatprep.subr.mxu0 0.0
    %1191 = vmatpush1.msra.mxu0 0.0
    %1192 = vmatprep.subr.mxu0 0.0
    %1193 = vmatpush1.msra.mxu0 0.0
    %1194 = vmatprep.subr.mxu0 0.0
    %1195 = vmatpush1.msra.mxu0 0.0
    %1196 = vmatprep.subr.mxu0 0.0
    %1197 = vmatpush1.msra.mxu0 0.0
    %1198 = vmatprep.subr.mxu0 0.0
    %1199 = vmatpush1.msra.mxu0 0.0
    %1200 = vmatprep.subr.mxu0 0.0
    %1201 = vmatpush1.msra.mxu0 0.0
    %1202 = vmatprep.subr.mxu0 0.0
    %1203 = vmatpush1.msra.mxu0 0.0
    %1204 = vmatprep.subr.mxu0 0.0
    %1205 = vmatpush1.msra.mxu0 0.0
    %1206 = vmatprep.subr.mxu0 0.0
    %1207 = vmatpush1.msra.mxu0 0.0
    %1208 = vmatprep.subr.mxu0 0.0
    %1209 = vmatpush1.msra.mxu0 0.0
    %1210 = vmatprep.subr.mxu0 0.0
    %1211 = vmatpush1.msra.mxu0 0.0
    %1212 = vmatprep.subr.mxu0 0.0
    %1213 = vmatpush1.msra.mxu0 0.0
    %1214 = vmatprep.subr.mxu0 0.0
    %1215 = vmatpush1.msra.mxu0 0.0
    %1216 = vmatprep.subr.mxu0 0.0
    %1217 = vmatpush1.msra.mxu0 0.0
    %1218 = vmatprep.subr.mxu0 0.0
    %1219 = vmatpush1.msra.mxu0 0.0
    %1220 = vmatprep.subr.mxu0 0.0
    %1221 = vmatpush1.msra.mxu0 0.0
    %1222 = vmatprep.subr.mxu0 0.0
    %1223 = vmatpush1.msra.mxu0 0.0
    %1224 = vmatprep.subr.mxu0 0.0
    %1225 = vmatpush1.msra.mxu0 0.0
    %1226 = vmatprep.mubr.f32.mxu0 0.0
    %1227 = vmatmul.mubr.f32.gmra.mrb[0].mxu0 %v1160
    %v1228 = vpop.f32.mrb[0].mxu0
    %v1229 = vadd.f32 0.0, %v1228
    %v1230 = vpop.f32.mrb[0].mxu0
    %1231 = vdwg.mxu0
    %1233 = vrot.lane.b32.xlu0 %v1077, 8
    %v1234 = vpop.permute.xlu0 %1233
    %1237 = vrot.lane.b32.xlu0 %v1153, 16
    %v1238 = vpop.permute.xlu0 %1237
    %1241 = vrot.lane.b32.xlu0 %v1229, 24
    %v1242 = vpop.permute.xlu0 %1241
    %v1244 = vsel %vm220, %v1001, %v1234
    %vm1245 = vcmask 130048
    %v1246 = vsel %vm1245, %v1244, %v1238
    %vm1247 = vcmask 195584
    %v1248 = vsel %vm1247, %v1246, %v1242
    %1249 = vrot.lane.b32.xlu0 %v214, 64
    %v1250 = vpop.permute.xlu0 %1249
    %v1253 = vsel %vm220, %v924, 0
    %1255 = vmatprep.subr.mxu0 0.0
    %1256 = vmatpush1.msra.mxu0 %v1250
    %1257 = vmatprep.subr.mxu0 0.0
    %1258 = vmatpush1.msra.mxu0 0.0
    %1259 = vmatprep.subr.mxu0 0.0
    %1260 = vmatpush1.msra.mxu0 0.0
    %1261 = vmatprep.subr.mxu0 0.0
    %1262 = vmatpush1.msra.mxu0 0.0
    %1263 = vmatprep.subr.mxu0 0.0
    %1264 = vmatpush1.msra.mxu0 0.0
    %1265 = vmatprep.subr.mxu0 0.0
    %1266 = vmatpush1.msra.mxu0 0.0
    %1267 = vmatprep.subr.mxu0 0.0
    %1268 = vmatpush1.msra.mxu0 0.0
    %1269 = vmatprep.subr.mxu0 0.0
    %1270 = vmatpush1.msra.mxu0 0.0
    %1271 = vmatprep.subr.mxu0 0.0
    %1272 = vmatpush1.msra.mxu0 0.0
    %1273 = vmatprep.subr.mxu0 0.0
    %1274 = vmatpush1.msra.mxu0 0.0
    %1275 = vmatprep.subr.mxu0 0.0
    %1276 = vmatpush1.msra.mxu0 0.0
    %1277 = vmatprep.subr.mxu0 0.0
    %1278 = vmatpush1.msra.mxu0 0.0
    %1279 = vmatprep.subr.mxu0 0.0
    %1280 = vmatpush1.msra.mxu0 0.0
    %1281 = vmatprep.subr.mxu0 0.0
    %1282 = vmatpush1.msra.mxu0 0.0
    %1283 = vmatprep.subr.mxu0 0.0
    %1284 = vmatpush1.msra.mxu0 0.0
    %1285 = vmatprep.subr.mxu0 0.0
    %1286 = vmatpush1.msra.mxu0 0.0
    %1287 = vmatprep.subr.mxu0 0.0
    %1288 = vmatpush1.msra.mxu0 0.0
    %1289 = vmatprep.subr.mxu0 0.0
    %1290 = vmatpush1.msra.mxu0 0.0
    %1291 = vmatprep.subr.mxu0 0.0
    %1292 = vmatpush1.msra.mxu0 0.0
    %1293 = vmatprep.subr.mxu0 0.0
    %1294 = vmatpush1.msra.mxu0 0.0
    %1295 = vmatprep.subr.mxu0 0.0
    %1296 = vmatpush1.msra.mxu0 0.0
    %1297 = vmatprep.subr.mxu0 0.0
    %1298 = vmatpush1.msra.mxu0 0.0
    %1299 = vmatprep.subr.mxu0 0.0
    %1300 = vmatpush1.msra.mxu0 0.0
    %1301 = vmatprep.subr.mxu0 0.0
    %1302 = vmatpush1.msra.mxu0 0.0
    %1303 = vmatprep.subr.mxu0 0.0
    %1304 = vmatpush1.msra.mxu0 0.0
    %1305 = vmatprep.subr.mxu0 0.0
    %1306 = vmatpush1.msra.mxu0 0.0
    %1307 = vmatprep.subr.mxu0 0.0
    %1308 = vmatpush1.msra.mxu0 0.0
    %1309 = vmatprep.subr.mxu0 0.0
    %1310 = vmatpush1.msra.mxu0 0.0
    %1311 = vmatprep.subr.mxu0 0.0
    %1312 = vmatpush1.msra.mxu0 0.0
    %1313 = vmatprep.subr.mxu0 0.0
    %1314 = vmatpush1.msra.mxu0 0.0
    %1315 = vmatprep.subr.mxu0 0.0
    %1316 = vmatpush1.msra.mxu0 0.0
    %1317 = vmatprep.subr.mxu0 0.0
    %1318 = vmatpush1.msra.mxu0 0.0
    %1319 = vmatprep.mubr.f32.mxu0 0.0
    %1320 = vmatmul.mubr.f32.gmra.mrb[0].mxu0 %v1253
    %v1321 = vpop.f32.mrb[0].mxu0
    %v1322 = vadd.f32 0.0, %v1321
    %v1323 = vpop.f32.mrb[0].mxu0
    %1324 = vdwg.mxu0
    %1325 = vrot.lane.b32.xlu0 %v214, 56
    %v1326 = vpop.permute.xlu0 %1325
    %v1329 = vsel %vm220, %v925, 0
    %1331 = vmatprep.subr.mxu0 0.0
    %1332 = vmatpush1.msra.mxu0 %v1326
    %1333 = vmatprep.subr.mxu0 0.0
    %1334 = vmatpush1.msra.mxu0 0.0
    %1335 = vmatprep.subr.mxu0 0.0
    %1336 = vmatpush1.msra.mxu0 0.0
    %1337 = vmatprep.subr.mxu0 0.0
    %1338 = vmatpush1.msra.mxu0 0.0
    %1339 = vmatprep.subr.mxu0 0.0
    %1340 = vmatpush1.msra.mxu0 0.0
    %1341 = vmatprep.subr.mxu0 0.0
    %1342 = vmatpush1.msra.mxu0 0.0
    %1343 = vmatprep.subr.mxu0 0.0
    %1344 = vmatpush1.msra.mxu0 0.0
    %1345 = vmatprep.subr.mxu0 0.0
    %1346 = vmatpush1.msra.mxu0 0.0
    %1347 = vmatprep.subr.mxu0 0.0
    %1348 = vmatpush1.msra.mxu0 0.0
    %1349 = vmatprep.subr.mxu0 0.0
    %1350 = vmatpush1.msra.mxu0 0.0
    %1351 = vmatprep.subr.mxu0 0.0
    %1352 = vmatpush1.msra.mxu0 0.0
    %1353 = vmatprep.subr.mxu0 0.0
    %1354 = vmatpush1.msra.mxu0 0.0
    %1355 = vmatprep.subr.mxu0 0.0
    %1356 = vmatpush1.msra.mxu0 0.0
    %1357 = vmatprep.subr.mxu0 0.0
    %1358 = vmatpush1.msra.mxu0 0.0
    %1359 = vmatprep.subr.mxu0 0.0
    %1360 = vmatpush1.msra.mxu0 0.0
    %1361 = vmatprep.subr.mxu0 0.0
    %1362 = vmatpush1.msra.mxu0 0.0
    %1363 = vmatprep.subr.mxu0 0.0
    %1364 = vmatpush1.msra.mxu0 0.0
    %1365 = vmatprep.subr.mxu0 0.0
    %1366 = vmatpush1.msra.mxu0 0.0
    %1367 = vmatprep.subr.mxu0 0.0
    %1368 = vmatpush1.msra.mxu0 0.0
    %1369 = vmatprep.subr.mxu0 0.0
    %1370 = vmatpush1.msra.mxu0 0.0
    %1371 = vmatprep.subr.mxu0 0.0
    %1372 = vmatpush1.msra.mxu0 0.0
    %1373 = vmatprep.subr.mxu0 0.0
    %1374 = vmatpush1.msra.mxu0 0.0
    %1375 = vmatprep.subr.mxu0 0.0
    %1376 = vmatpush1.msra.mxu0 0.0
    %1377 = vmatprep.subr.mxu0 0.0
    %1378 = vmatpush1.msra.mxu0 0.0
    %1379 = vmatprep.subr.mxu0 0.0
    %1380 = vmatpush1.msra.mxu0 0.0
    %1381 = vmatprep.subr.mxu0 0.0
    %1382 = vmatpush1.msra.mxu0 0.0
    %1383 = vmatprep.subr.mxu0 0.0
    %1384 = vmatpush1.msra.mxu0 0.0
    %1385 = vmatprep.subr.mxu0 0.0
    %1386 = vmatpush1.msra.mxu0 0.0
    %1387 = vmatprep.subr.mxu0 0.0
    %1388 = vmatpush1.msra.mxu0 0.0
    %1389 = vmatprep.subr.mxu0 0.0
    %1390 = vmatpush1.msra.mxu0 0.0
    %1391 = vmatprep.subr.mxu0 0.0
    %1392 = vmatpush1.msra.mxu0 0.0
    %1393 = vmatprep.subr.mxu0 0.0
    %1394 = vmatpush1.msra.mxu0 0.0
    %1395 = vmatprep.mubr.f32.mxu0 0.0
    %1396 = vmatmul.mubr.f32.gmra.mrb[0].mxu0 %v1329
    %v1397 = vpop.f32.mrb[0].mxu0
    %v1398 = vadd.f32 0.0, %v1397
    %v1399 = vpop.f32.mrb[0].mxu0
    %1400 = vdwg.mxu0
    %1401 = vrot.lane.b32.xlu0 %v214, 48
    %v1402 = vpop.permute.xlu0 %1401
    %v1405 = vsel %vm220, %v926, 0
    %1407 = vmatprep.subr.mxu0 0.0
    %1408 = vmatpush1.msra.mxu0 %v1402
    %1409 = vmatprep.subr.mxu0 0.0
    %1410 = vmatpush1.msra.mxu0 0.0
    %1411 = vmatprep.subr.mxu0 0.0
    %1412 = vmatpush1.msra.mxu0 0.0
    %1413 = vmatprep.subr.mxu0 0.0
    %1414 = vmatpush1.msra.mxu0 0.0
    %1415 = vmatprep.subr.mxu0 0.0
    %1416 = vmatpush1.msra.mxu0 0.0
    %1417 = vmatprep.subr.mxu0 0.0
    %1418 = vmatpush1.msra.mxu0 0.0
    %1419 = vmatprep.subr.mxu0 0.0
    %1420 = vmatpush1.msra.mxu0 0.0
    %1421 = vmatprep.subr.mxu0 0.0
    %1422 = vmatpush1.msra.mxu0 0.0
    %1423 = vmatprep.subr.mxu0 0.0
    %1424 = vmatpush1.msra.mxu0 0.0
    %1425 = vmatprep.subr.mxu0 0.0
    %1426 = vmatpush1.msra.mxu0 0.0
    %1427 = vmatprep.subr.mxu0 0.0
    %1428 = vmatpush1.msra.mxu0 0.0
    %1429 = vmatprep.subr.mxu0 0.0
    %1430 = vmatpush1.msra.mxu0 0.0
    %1431 = vmatprep.subr.mxu0 0.0
    %1432 = vmatpush1.msra.mxu0 0.0
    %1433 = vmatprep.subr.mxu0 0.0
    %1434 = vmatpush1.msra.mxu0 0.0
    %1435 = vmatprep.subr.mxu0 0.0
    %1436 = vmatpush1.msra.mxu0 0.0
    %1437 = vmatprep.subr.mxu0 0.0
    %1438 = vmatpush1.msra.mxu0 0.0
    %1439 = vmatprep.subr.mxu0 0.0
    %1440 = vmatpush1.msra.mxu0 0.0
    %1441 = vmatprep.subr.mxu0 0.0
    %1442 = vmatpush1.msra.mxu0 0.0
    %1443 = vmatprep.subr.mxu0 0.0
    %1444 = vmatpush1.msra.mxu0 0.0
    %1445 = vmatprep.subr.mxu0 0.0
    %1446 = vmatpush1.msra.mxu0 0.0
    %1447 = vmatprep.subr.mxu0 0.0
    %1448 = vmatpush1.msra.mxu0 0.0
    %1449 = vmatprep.subr.mxu0 0.0
    %1450 = vmatpush1.msra.mxu0 0.0
    %1451 = vmatprep.subr.mxu0 0.0
    %1452 = vmatpush1.msra.mxu0 0.0
    %1453 = vmatprep.subr.mxu0 0.0
    %1454 = vmatpush1.msra.mxu0 0.0
    %1455 = vmatprep.subr.mxu0 0.0
    %1456 = vmatpush1.msra.mxu0 0.0
    %1457 = vmatprep.subr.mxu0 0.0
    %1458 = vmatpush1.msra.mxu0 0.0
    %1459 = vmatprep.subr.mxu0 0.0
    %1460 = vmatpush1.msra.mxu0 0.0
    %1461 = vmatprep.subr.mxu0 0.0
    %1462 = vmatpush1.msra.mxu0 0.0
    %1463 = vmatprep.subr.mxu0 0.0
    %1464 = vmatpush1.msra.mxu0 0.0
    %1465 = vmatprep.subr.mxu0 0.0
    %1466 = vmatpush1.msra.mxu0 0.0
    %1467 = vmatprep.subr.mxu0 0.0
    %1468 = vmatpush1.msra.mxu0 0.0
    %1469 = vmatprep.subr.mxu0 0.0
    %1470 = vmatpush1.msra.mxu0 0.0
    %1471 = vmatprep.mubr.f32.mxu0 0.0
    %1472 = vmatmul.mubr.f32.gmra.mrb[0].mxu0 %v1405
    %v1473 = vpop.f32.mrb[0].mxu0
    %v1474 = vadd.f32 0.0, %v1473
    %v1475 = vpop.f32.mrb[0].mxu0
    %1476 = vdwg.mxu0
    %1477 = vrot.lane.b32.xlu0 %v214, 40
    %v1478 = vpop.permute.xlu0 %1477
    %v1481 = vsel %vm220, %v927, 0
    %1483 = vmatprep.subr.mxu0 0.0
    %1484 = vmatpush1.msra.mxu0 %v1478
    %1485 = vmatprep.subr.mxu0 0.0
    %1486 = vmatpush1.msra.mxu0 0.0
    %1487 = vmatprep.subr.mxu0 0.0
    %1488 = vmatpush1.msra.mxu0 0.0
    %1489 = vmatprep.subr.mxu0 0.0
    %1490 = vmatpush1.msra.mxu0 0.0
    %1491 = vmatprep.subr.mxu0 0.0
    %1492 = vmatpush1.msra.mxu0 0.0
    %1493 = vmatprep.subr.mxu0 0.0
    %1494 = vmatpush1.msra.mxu0 0.0
    %1495 = vmatprep.subr.mxu0 0.0
    %1496 = vmatpush1.msra.mxu0 0.0
    %1497 = vmatprep.subr.mxu0 0.0
    %1498 = vmatpush1.msra.mxu0 0.0
    %1499 = vmatprep.subr.mxu0 0.0
    %1500 = vmatpush1.msra.mxu0 0.0
    %1501 = vmatprep.subr.mxu0 0.0
    %1502 = vmatpush1.msra.mxu0 0.0
    %1503 = vmatprep.subr.mxu0 0.0
    %1504 = vmatpush1.msra.mxu0 0.0
    %1505 = vmatprep.subr.mxu0 0.0
    %1506 = vmatpush1.msra.mxu0 0.0
    %1507 = vmatprep.subr.mxu0 0.0
    %1508 = vmatpush1.msra.mxu0 0.0
    %1509 = vmatprep.subr.mxu0 0.0
    %1510 = vmatpush1.msra.mxu0 0.0
    %1511 = vmatprep.subr.mxu0 0.0
    %1512 = vmatpush1.msra.mxu0 0.0
    %1513 = vmatprep.subr.mxu0 0.0
    %1514 = vmatpush1.msra.mxu0 0.0
    %1515 = vmatprep.subr.mxu0 0.0
    %1516 = vmatpush1.msra.mxu0 0.0
    %1517 = vmatprep.subr.mxu0 0.0
    %1518 = vmatpush1.msra.mxu0 0.0
    %1519 = vmatprep.subr.mxu0 0.0
    %1520 = vmatpush1.msra.mxu0 0.0
    %1521 = vmatprep.subr.mxu0 0.0
    %1522 = vmatpush1.msra.mxu0 0.0
    %1523 = vmatprep.subr.mxu0 0.0
    %1524 = vmatpush1.msra.mxu0 0.0
    %1525 = vmatprep.subr.mxu0 0.0
    %1526 = vmatpush1.msra.mxu0 0.0
    %1527 = vmatprep.subr.mxu0 0.0
    %1528 = vmatpush1.msra.mxu0 0.0
    %1529 = vmatprep.subr.mxu0 0.0
    %1530 = vmatpush1.msra.mxu0 0.0
    %1531 = vmatprep.subr.mxu0 0.0
    %1532 = vmatpush1.msra.mxu0 0.0
    %1533 = vmatprep.subr.mxu0 0.0
    %1534 = vmatpush1.msra.mxu0 0.0
    %1535 = vmatprep.subr.mxu0 0.0
    %1536 = vmatpush1.msra.mxu0 0.0
    %1537 = vmatprep.subr.mxu0 0.0
    %1538 = vmatpush1.msra.mxu0 0.0
    %1539 = vmatprep.subr.mxu0 0.0
    %1540 = vmatpush1.msra.mxu0 0.0
    %1541 = vmatprep.subr.mxu0 0.0
    %1542 = vmatpush1.msra.mxu0 0.0
    %1543 = vmatprep.subr.mxu0 0.0
    %1544 = vmatpush1.msra.mxu0 0.0
    %1545 = vmatprep.subr.mxu0 0.0
    %1546 = vmatpush1.msra.mxu0 0.0
    %1547 = vmatprep.mubr.f32.mxu0 0.0
    %1548 = vmatmul.mubr.f32.gmra.mrb[0].mxu0 %v1481
    %v1549 = vpop.f32.mrb[0].mxu0
    %v1550 = vadd.f32 0.0, %v1549
    %v1551 = vpop.f32.mrb[0].mxu0
    %1552 = vdwg.mxu0
    %1554 = vrot.lane.b32.xlu0 %v1398, 8
    %v1555 = vpop.permute.xlu0 %1554
    %1558 = vrot.lane.b32.xlu0 %v1474, 16
    %v1559 = vpop.permute.xlu0 %1558
    %1562 = vrot.lane.b32.xlu0 %v1550, 24
    %v1563 = vpop.permute.xlu0 %1562
    %v1565 = vsel %vm220, %v1322, %v1555
    %v1566 = vsel %vm1245, %v1565, %v1559
    %v1567 = vsel %vm1247, %v1566, %v1563
    %v1568 = vpack.c.bf16 %v1567, %v1248
    %v1569 = vld [vmem:[%s7] sm:$0xf]
    %v1570 = vld [vmem:[%s7 + $0x4] sm:$0xf]
    %v1571 = vld [vmem:[%s7 + $0x8] sm:$0xf]
    %v1572 = vld [vmem:[%s7 + $0xc] sm:$0xf]
    %v1573 = vlaneseq
    %v1574 = vshrl.u32 %v1573, 7
    %v1575 = vsub.s32 0, %v1574
    %v1576 = vrot.slane %v147, %v1575
    %v1581 = vunpack.c.l.b16 %v1569
    %v1582 = vunpack.c.l.b16 %v1570
    %v1583 = vunpack.c.l.b16 %v1571
    %v1584 = vunpack.c.l.b16 %v1572
    %v1585 = vpack.c.b16 %v1582, %v1581
    %v1586 = vpack.c.b16 %v1584, %v1583
    %v1590 = vsel %vm172, %v1568, 0
    %1592 = vmatprep.subr.bf16.mxu0 0
    %1593 = vmatpush1.bf16.msra.mxu0 %v1585
    %1594 = vmatprep.subr.bf16.mxu0 0
    %1595 = vmatpush1.bf16.msra.mxu0 %v1586
    %1596 = vmatprep.subr.bf16.mxu0 0
    %1597 = vmatpush1.bf16.msra.mxu0 0
    %1598 = vmatprep.subr.bf16.mxu0 0
    %1599 = vmatpush1.bf16.msra.mxu0 0
    %1600 = vmatprep.subr.bf16.mxu0 0
    %1601 = vmatpush1.bf16.msra.mxu0 0
    %1602 = vmatprep.subr.bf16.mxu0 0
    %1603 = vmatpush1.bf16.msra.mxu0 0
    %1604 = vmatprep.subr.bf16.mxu0 0
    %1605 = vmatpush1.bf16.msra.mxu0 0
    %1606 = vmatprep.subr.bf16.mxu0 0
    %1607 = vmatpush1.bf16.msra.mxu0 0
    %1608 = vmatprep.subr.bf16.mxu0 0
    %1609 = vmatpush1.bf16.msra.mxu0 0
    %1610 = vmatprep.subr.bf16.mxu0 0
    %1611 = vmatpush1.bf16.msra.mxu0 0
    %1612 = vmatprep.subr.bf16.mxu0 0
    %1613 = vmatpush1.bf16.msra.mxu0 0
    %1614 = vmatprep.subr.bf16.mxu0 0
    %1615 = vmatpush1.bf16.msra.mxu0 0
    %1616 = vmatprep.subr.bf16.mxu0 0
    %1617 = vmatpush1.bf16.msra.mxu0 0
    %1618 = vmatprep.subr.bf16.mxu0 0
    %1619 = vmatpush1.bf16.msra.mxu0 0
    %1620 = vmatprep.subr.bf16.mxu0 0
    %1621 = vmatpush1.bf16.msra.mxu0 0
    %1622 = vmatprep.subr.bf16.mxu0 0
    %1623 = vmatpush1.bf16.msra.mxu0 0
    %1624 = vmatprep.mubr.bf16.mxu0 0
    %1625 = vmatmul.mubr.bf16.gmra.mrb[0].mxu0 %v1590
    %v1626 = vpop.f32.mrb[0].mxu0
    %v1627 = vadd.f32 %v1576, %v1626
    %v1628 = vpop.f32.mrb[0].mxu0
    %v1629 = vpop.f32.mrb[0].mxu0
    %v1630 = vadd.f32 %v1576, %v1629
    %v1631 = vpop.f32.mrb[0].mxu0
    %1632 = vdwg.mxu0
    %v1633 = vadd.f32 %v138, %v1627
    %v1634 = vadd.f32 %v146, %v1630
    %v1635 = vsel %vm172, %v1633, 0.0
    %1636 = vadd.xlane.f32.xlu0 %v1635
    %v1637 = vpop.xlane.xlu0 %1636
    %v1638 = vsel %vm172, %v1634, 0.0
    %1639 = vadd.xlane.f32.xlu0 %v1638
    %v1640 = vpop.xlane.xlu0 %1639
    %v1641 = vrcp.pop 32.0
    %v1642 = vmul.f32 %v1637, %v1641
    %v1643 = vmul.f32 %v1640, %v1641
    %v1644 = vsub.f32 %v1633, %v1642
    %v1645 = vsub.f32 %v1634, %v1643
    %v1646 = vmul.f32 %v1644, %v1644
    %v1647 = vmul.f32 %v1645, %v1645
    %v1648 = vsel %vm172, %v1646, 0.0
    %1649 = vadd.xlane.f32.xlu0 %v1648
    %v1650 = vpop.xlane.xlu0 %1649
    %v1651 = vsel %vm172, %v1647, 0.0
    %1652 = vadd.xlane.f32.xlu0 %v1651
    %v1653 = vpop.xlane.xlu0 %1652
    %v1654 = vmul.f32 %v1650, %v1641
    %v1655 = vmul.f32 %v1653, %v1641
    %v1656 = vadd.f32 %v1654, 1e-05
    %v1657 = vadd.f32 %v1655, 1e-05
    %v1658 = vrsqrt.pop %v1656
    %v1659 = vrsqrt.pop %v1657
    %v1660 = vmul.f32 %v1644, %v1658
    %v1661 = vmul.f32 %v1645, %v1659
    %v1662 = vlaneseq
    %v1663 = vshrl.u32 %v1662, 7
    %v1664 = vsub.s32 1, %v1663
    %v1665 = vrot.slane %v147, %v1664
    %v1666 = vmul.f32 %v1660, %v1665
    %v1667 = vmul.f32 %v1661, %v1665
    %v1668 = vlaneseq
    %v1669 = vshrl.u32 %v1668, 7
    %v1670 = vsub.s32 2, %v1669
    %v1671 = vrot.slane %v147, %v1670
    %v1672 = vadd.f32 %v1666, %v1671
    %v1673 = vadd.f32 %v1667, %v1671
    %v1674 = vpack.c.bf16 %v1673, %v1672
    %v1675 = vld [vmem:[%s8] sm:$0xf]
    %v1676 = vld [vmem:[%s8 + $0x4] sm:$0xf]
    %v1677 = vld [vmem:[%s8 + $0x8] sm:$0xf]
    %v1678 = vld [vmem:[%s8 + $0xc] sm:$0xf]
    %v1679 = vld [vmem:[%s9] sm:$0x1]
    %v1681 = vlaneseq
    %v1682 = vshrl.u32 %v1681, 7
    %v1683 = vsub.s32 0, %v1682
    %v1684 = vrot.slane %v1679, %v1683
    %v1690 = vunpack.c.l.b16 %v1675
    %v1691 = vunpack.c.l.b16 %v1676
    %v1692 = vunpack.c.l.b16 %v1677
    %v1693 = vunpack.c.l.b16 %v1678
    %v1694 = vpack.c.b16 %v1691, %v1690
    %v1695 = vpack.c.b16 %v1693, %v1692
    %v1699 = vsel %vm172, %v1674, 0
    %1701 = vmatprep.subr.bf16.mxu0 0
    %1702 = vmatpush1.bf16.msra.mxu0 %v1694
    %1703 = vmatprep.subr.bf16.mxu0 0
    %1704 = vmatpush1.bf16.msra.mxu0 %v1695
    %1705 = vmatprep.subr.bf16.mxu0 0
    %1706 = vmatpush1.bf16.msra.mxu0 0
    %1707 = vmatprep.subr.bf16.mxu0 0
    %1708 = vmatpush1.bf16.msra.mxu0 0
    %1709 = vmatprep.subr.bf16.mxu0 0
    %1710 = vmatpush1.bf16.msra.mxu0 0
    %1711 = vmatprep.subr.bf16.mxu0 0
    %1712 = vmatpush1.bf16.msra.mxu0 0
    %1713 = vmatprep.subr.bf16.mxu0 0
    %1714 = vmatpush1.bf16.msra.mxu0 0
    %1715 = vmatprep.subr.bf16.mxu0 0
    %1716 = vmatpush1.bf16.msra.mxu0 0
    %1717 = vmatprep.subr.bf16.mxu0 0
    %1718 = vmatpush1.bf16.msra.mxu0 0
    %1719 = vmatprep.subr.bf16.mxu0 0
    %1720 = vmatpush1.bf16.msra.mxu0 0
    %1721 = vmatprep.subr.bf16.mxu0 0
    %1722 = vmatpush1.bf16.msra.mxu0 0
    %1723 = vmatprep.subr.bf16.mxu0 0
    %1724 = vmatpush1.bf16.msra.mxu0 0
    %1725 = vmatprep.subr.bf16.mxu0 0
    %1726 = vmatpush1.bf16.msra.mxu0 0
    %1727 = vmatprep.subr.bf16.mxu0 0
    %1728 = vmatpush1.bf16.msra.mxu0 0
    %1729 = vmatprep.subr.bf16.mxu0 0
    %1730 = vmatpush1.bf16.msra.mxu0 0
    %1731 = vmatprep.subr.bf16.mxu0 0
    %1732 = vmatpush1.bf16.msra.mxu0 0
    %1733 = vmatprep.mubr.bf16.mxu0 0
    %1734 = vmatmul.mubr.bf16.gmra.mrb[0].mxu0 %v1699
    %v1735 = vpop.f32.mrb[0].mxu0
    %v1736 = vadd.f32 %v1684, %v1735
    %v1737 = vpop.f32.mrb[0].mxu0
    %v1738 = vpop.f32.mrb[0].mxu0
    %v1739 = vadd.f32 %v1684, %v1738
    %v1740 = vpop.f32.mrb[0].mxu0
    %1741 = vdwg.mxu0
    %v1742 = vmax.f32 %v1736, 0.0
    %v1743 = vmax.f32 %v1739, 0.0
    %v1744 = vpack.c.bf16 %v1743, %v1742
    %v1745 = vld [vmem:[%s10] sm:$0xf]
    %v1746 = vld [vmem:[%s10 + $0x4] sm:$0xf]
    %v1747 = vld [vmem:[%s10 + $0x8] sm:$0xf]
    %v1748 = vld [vmem:[%s10 + $0xc] sm:$0xf]
    %v1749 = vld [vmem:[%s10 + $0x10] sm:$0xf]
    %v1750 = vld [vmem:[%s10 + $0x14] sm:$0xf]
    %v1751 = vld [vmem:[%s10 + $0x18] sm:$0xf]
    %v1752 = vld [vmem:[%s10 + $0x1c] sm:$0xf]
    %v1753 = vlaneseq
    %v1754 = vshrl.u32 %v1753, 7
    %v1755 = vsub.s32 3, %v1754
    %v1756 = vrot.slane %v147, %v1755
    %v1765 = vunpack.c.l.b16 %v1745
    %v1766 = vunpack.c.l.b16 %v1746
    %v1767 = vunpack.c.l.b16 %v1747
    %v1768 = vunpack.c.l.b16 %v1748
    %v1769 = vunpack.c.l.b16 %v1749
    %v1770 = vunpack.c.l.b16 %v1750
    %v1771 = vunpack.c.l.b16 %v1751
    %v1772 = vunpack.c.l.b16 %v1752
    %v1773 = vpack.c.b16 %v1766, %v1765
    %v1774 = vpack.c.b16 %v1768, %v1767
    %v1775 = vpack.c.b16 %v1770, %v1769
    %v1776 = vpack.c.b16 %v1772, %v1771
    %vm1781 = vcmask 523264
    %v1783 = vsel %vm1781, %v1744, 0
    %1785 = vmatprep.subr.bf16.mxu0 0
    %1786 = vmatpush1.bf16.msra.mxu0 %v1773
    %1787 = vmatprep.subr.bf16.mxu0 0
    %1788 = vmatpush1.bf16.msra.mxu0 %v1774
    %1789 = vmatprep.subr.bf16.mxu0 0
    %1790 = vmatpush1.bf16.msra.mxu0 %v1775
    %1791 = vmatprep.subr.bf16.mxu0 0
    %1792 = vmatpush1.bf16.msra.mxu0 %v1776
    %1793 = vmatprep.subr.bf16.mxu0 0
    %1794 = vmatpush1.bf16.msra.mxu0 0
    %1795 = vmatprep.subr.bf16.mxu0 0
    %1796 = vmatpush1.bf16.msra.mxu0 0
    %1797 = vmatprep.subr.bf16.mxu0 0
    %1798 = vmatpush1.bf16.msra.mxu0 0
    %1799 = vmatprep.subr.bf16.mxu0 0
    %1800 = vmatpush1.bf16.msra.mxu0 0
    %1801 = vmatprep.subr.bf16.mxu0 0
    %1802 = vmatpush1.bf16.msra.mxu0 0
    %1803 = vmatprep.subr.bf16.mxu0 0
    %1804 = vmatpush1.bf16.msra.mxu0 0
    %1805 = vmatprep.subr.bf16.mxu0 0
    %1806 = vmatpush1.bf16.msra.mxu0 0
    %1807 = vmatprep.subr.bf16.mxu0 0
    %1808 = vmatpush1.bf16.msra.mxu0 0
    %1809 = vmatprep.subr.bf16.mxu0 0
    %1810 = vmatpush1.bf16.msra.mxu0 0
    %1811 = vmatprep.subr.bf16.mxu0 0
    %1812 = vmatpush1.bf16.msra.mxu0 0
    %1813 = vmatprep.subr.bf16.mxu0 0
    %1814 = vmatpush1.bf16.msra.mxu0 0
    %1815 = vmatprep.subr.bf16.mxu0 0
    %1816 = vmatpush1.bf16.msra.mxu0 0
    %1817 = vmatprep.mubr.bf16.mxu0 0
    %1818 = vmatmul.mubr.bf16.gmra.mrb[0].mxu0 %v1783
    %v1819 = vpop.f32.mrb[0].mxu0
    %v1820 = vadd.f32 %v1756, %v1819
    %v1821 = vpop.f32.mrb[0].mxu0
    %v1822 = vpop.f32.mrb[0].mxu0
    %v1823 = vadd.f32 %v1756, %v1822
    %v1824 = vpop.f32.mrb[0].mxu0
    %1825 = vdwg.mxu0
    %v1826 = vadd.f32 %v1672, %v1820
    %v1827 = vadd.f32 %v1673, %v1823
    %v1828 = vsel %vm172, %v1826, 0.0
    %1829 = vadd.xlane.f32.xlu0 %v1828
    %v1830 = vpop.xlane.xlu0 %1829
    %v1831 = vsel %vm172, %v1827, 0.0
    %1832 = vadd.xlane.f32.xlu0 %v1831
    %v1833 = vpop.xlane.xlu0 %1832
    %v1834 = vmul.f32 %v1830, %v1641
    %v1835 = vmul.f32 %v1833, %v1641
    %v1836 = vsub.f32 %v1826, %v1834
    %v1837 = vsub.f32 %v1827, %v1835
    %v1838 = vmul.f32 %v1836, %v1836
    %v1839 = vmul.f32 %v1837, %v1837
    %v1840 = vsel %vm172, %v1838, 0.0
    %1841 = vadd.xlane.f32.xlu0 %v1840
    %v1842 = vpop.xlane.xlu0 %1841
    %v1843 = vsel %vm172, %v1839, 0.0
    %1844 = vadd.xlane.f32.xlu0 %v1843
    %v1845 = vpop.xlane.xlu0 %1844
    %v1846 = vmul.f32 %v1842, %v1641
    %v1847 = vmul.f32 %v1845, %v1641
    %v1848 = vadd.f32 %v1846, 1e-05
    %v1849 = vadd.f32 %v1847, 1e-05
    %v1850 = vrsqrt.pop %v1848
    %v1851 = vrsqrt.pop %v1849
    %v1852 = vmul.f32 %v1836, %v1850
    %v1853 = vmul.f32 %v1837, %v1851
    %v1854 = vlaneseq
    %v1855 = vshrl.u32 %v1854, 7
    %v1856 = vsub.s32 4, %v1855
    %v1857 = vrot.slane %v147, %v1856
    %v1858 = vmul.f32 %v1852, %v1857
    %v1859 = vmul.f32 %v1853, %v1857
    %v1860 = vlaneseq
    %v1861 = vshrl.u32 %v1860, 7
    %v1862 = vsub.s32 5, %v1861
    %v1863 = vrot.slane %v147, %v1862
    %v1864 = vadd.f32 %v1858, %v1863
    %v1865 = vadd.f32 %v1859, %v1863
    %s1866 = scalar_lea.vmem %s11, 8
    %v1867 = vld [vmem:[%s1866] sm:$0x3f]
    %v1868 = vpack.c.bf16 %v1865, %v1864
    %s1869 = scalar_lea.vmem %s5, 16
    %v1870 = vld [vmem:[%s1869] sm:$0xf]
    %v1871 = vld [vmem:[%s1869 + $0x4] sm:$0xf]
    %v1872 = vld [vmem:[%s1869 + $0x8] sm:$0xf]
    %v1873 = vld [vmem:[%s1869 + $0xc] sm:$0xf]
    %s1874 = scalar_lea.vmem %s6, 1
    %v1875 = vld [vmem:[%s1874] sm:$0x1]
    %v1877 = vlaneseq
    %v1878 = vshrl.u32 %v1877, 7
    %v1879 = vsub.s32 0, %v1878
    %v1880 = vrot.slane %v1875, %v1879
    %v1886 = vunpack.c.l.b16 %v1870
    %v1887 = vunpack.c.l.b16 %v1871
    %v1888 = vunpack.c.l.b16 %v1872
    %v1889 = vunpack.c.l.b16 %v1873
    %v1890 = vpack.c.b16 %v1887, %v1886
    %v1891 = vpack.c.b16 %v1889, %v1888
    %v1895 = vsel %vm172, %v1868, 0
    %1897 = vmatprep.subr.bf16.mxu0 0
    %1898 = vmatpush1.bf16.msra.mxu0 %v1890
    %1899 = vmatprep.subr.bf16.mxu0 0
    %1900 = vmatpush1.bf16.msra.mxu0 %v1891
    %1901 = vmatprep.subr.bf16.mxu0 0
    %1902 = vmatpush1.bf16.msra.mxu0 0
    %1903 = vmatprep.subr.bf16.mxu0 0
    %1904 = vmatpush1.bf16.msra.mxu0 0
    %1905 = vmatprep.subr.bf16.mxu0 0
    %1906 = vmatpush1.bf16.msra.mxu0 0
    %1907 = vmatprep.subr.bf16.mxu0 0
    %1908 = vmatpush1.bf16.msra.mxu0 0
    %1909 = vmatprep.subr.bf16.mxu0 0
    %1910 = vmatpush1.bf16.msra.mxu0 0
    %1911 = vmatprep.subr.bf16.mxu0 0
    %1912 = vmatpush1.bf16.msra.mxu0 0
    %1913 = vmatprep.subr.bf16.mxu0 0
    %1914 = vmatpush1.bf16.msra.mxu0 0
    %1915 = vmatprep.subr.bf16.mxu0 0
    %1916 = vmatpush1.bf16.msra.mxu0 0
    %1917 = vmatprep.subr.bf16.mxu0 0
    %1918 = vmatpush1.bf16.msra.mxu0 0
    %1919 = vmatprep.subr.bf16.mxu0 0
    %1920 = vmatpush1.bf16.msra.mxu0 0
    %1921 = vmatprep.subr.bf16.mxu0 0
    %1922 = vmatpush1.bf16.msra.mxu0 0
    %1923 = vmatprep.subr.bf16.mxu0 0
    %1924 = vmatpush1.bf16.msra.mxu0 0
    %1925 = vmatprep.subr.bf16.mxu0 0
    %1926 = vmatpush1.bf16.msra.mxu0 0
    %1927 = vmatprep.subr.bf16.mxu0 0
    %1928 = vmatpush1.bf16.msra.mxu0 0
    %1929 = vmatprep.mubr.bf16.mxu0 0
    %1930 = vmatmul.mubr.bf16.gmra.mrb[0].mxu0 %v1895
    %v1931 = vpop.f32.mrb[0].mxu0
    %v1932 = vadd.f32 %v1880, %v1931
    %v1933 = vpop.f32.mrb[0].mxu0
    %v1934 = vpop.f32.mrb[0].mxu0
    %v1935 = vadd.f32 %v1880, %v1934
    %v1936 = vpop.f32.mrb[0].mxu0
    %1937 = vdwg.mxu0
    %1939 = vrot.lane.b32.xlu0 %v1932, 96
    %v1940 = vpop.permute.xlu0 %1939
    %v1941 = vsel %vm220, %v1932, 0
    %v1943 = vsel %vm220, %v1940, 0
    %1945 = vmatprep.subr.mxu0 0.0
    %1946 = vmatpush1.xpose.msra.mxu0 %v1943
    %1947 = vmatprep.subr.mxu0 0.0
    %1948 = vmatpush1.xpose.msra.mxu0 0.0
    %1949 = vmatprep.subr.mxu0 0.0
    %1950 = vmatpush1.xpose.msra.mxu0 0.0
    %1951 = vmatprep.subr.mxu0 0.0
    %1952 = vmatpush1.xpose.msra.mxu0 0.0
    %1953 = vmatprep.subr.mxu0 0.0
    %1954 = vmatpush1.xpose.msra.mxu0 0.0
    %1955 = vmatprep.subr.mxu0 0.0
    %1956 = vmatpush1.xpose.msra.mxu0 0.0
    %1957 = vmatprep.subr.mxu0 0.0
    %1958 = vmatpush1.xpose.msra.mxu0 0.0
    %1959 = vmatprep.subr.mxu0 0.0
    %1960 = vmatpush1.xpose.msra.mxu0 0.0
    %1961 = vmatprep.subr.mxu0 0.0
    %1962 = vmatpush1.xpose.msra.mxu0 0.0
    %1963 = vmatprep.subr.mxu0 0.0
    %1964 = vmatpush1.xpose.msra.mxu0 0.0
    %1965 = vmatprep.subr.mxu0 0.0
    %1966 = vmatpush1.xpose.msra.mxu0 0.0
    %1967 = vmatprep.subr.mxu0 0.0
    %1968 = vmatpush1.xpose.msra.mxu0 0.0
    %1969 = vmatprep.subr.mxu0 0.0
    %1970 = vmatpush1.xpose.msra.mxu0 0.0
    %1971 = vmatprep.subr.mxu0 0.0
    %1972 = vmatpush1.xpose.msra.mxu0 0.0
    %1973 = vmatprep.subr.mxu0 0.0
    %1974 = vmatpush1.xpose.msra.mxu0 0.0
    %1975 = vmatprep.subr.mxu0 0.0
    %1976 = vmatpush1.xpose.msra.mxu0 0.0
    %1977 = vmatprep.subr.mxu0 0.0
    %1978 = vmatpush1.xpose.msra.mxu0 0.0
    %1979 = vmatprep.subr.mxu0 0.0
    %1980 = vmatpush1.xpose.msra.mxu0 0.0
    %1981 = vmatprep.subr.mxu0 0.0
    %1982 = vmatpush1.xpose.msra.mxu0 0.0
    %1983 = vmatprep.subr.mxu0 0.0
    %1984 = vmatpush1.xpose.msra.mxu0 0.0
    %1985 = vmatprep.subr.mxu0 0.0
    %1986 = vmatpush1.xpose.msra.mxu0 0.0
    %1987 = vmatprep.subr.mxu0 0.0
    %1988 = vmatpush1.xpose.msra.mxu0 0.0
    %1989 = vmatprep.subr.mxu0 0.0
    %1990 = vmatpush1.xpose.msra.mxu0 0.0
    %1991 = vmatprep.subr.mxu0 0.0
    %1992 = vmatpush1.xpose.msra.mxu0 0.0
    %1993 = vmatprep.subr.mxu0 0.0
    %1994 = vmatpush1.xpose.msra.mxu0 0.0
    %1995 = vmatprep.subr.mxu0 0.0
    %1996 = vmatpush1.xpose.msra.mxu0 0.0
    %1997 = vmatprep.subr.mxu0 0.0
    %1998 = vmatpush1.xpose.msra.mxu0 0.0
    %1999 = vmatprep.subr.mxu0 0.0
    %2000 = vmatpush1.xpose.msra.mxu0 0.0
    %2001 = vmatprep.subr.mxu0 0.0
    %2002 = vmatpush1.xpose.msra.mxu0 0.0
    %2003 = vmatprep.subr.mxu0 0.0
    %2004 = vmatpush1.xpose.msra.mxu0 0.0
    %2005 = vmatprep.subr.mxu0 0.0
    %2006 = vmatpush1.xpose.msra.mxu0 0.0
    %2007 = vmatprep.subr.mxu0 0.0
    %2008 = vmatpush1.xpose.msra.mxu0 0.0
    %2009 = vmatprep.mubr.f32.mxu0 0.0
    %2010 = vmatmul.mubr.f32.gmra.mrb[0].mxu0 %v1941
    %v2011 = vpop.f32.mrb[0].mxu0
    %v2012 = vadd.f32 0.0, %v2011
    %v2013 = vpop.f32.mrb[0].mxu0
    %2014 = vdwg.mxu0
    %2015 = vrot.lane.b32.xlu0 %v1932, 120
    %v2016 = vpop.permute.xlu0 %2015
    %2017 = vrot.lane.b32.xlu0 %v1932, 88
    %v2018 = vpop.permute.xlu0 %2017
    %v2019 = vsel %vm220, %v2016, 0
    %v2021 = vsel %vm220, %v2018, 0
    %2023 = vmatprep.subr.mxu0 0.0
    %2024 = vmatpush1.xpose.msra.mxu0 %v2021
    %2025 = vmatprep.subr.mxu0 0.0
    %2026 = vmatpush1.xpose.msra.mxu0 0.0
    %2027 = vmatprep.subr.mxu0 0.0
    %2028 = vmatpush1.xpose.msra.mxu0 0.0
    %2029 = vmatprep.subr.mxu0 0.0
    %2030 = vmatpush1.xpose.msra.mxu0 0.0
    %2031 = vmatprep.subr.mxu0 0.0
    %2032 = vmatpush1.xpose.msra.mxu0 0.0
    %2033 = vmatprep.subr.mxu0 0.0
    %2034 = vmatpush1.xpose.msra.mxu0 0.0
    %2035 = vmatprep.subr.mxu0 0.0
    %2036 = vmatpush1.xpose.msra.mxu0 0.0
    %2037 = vmatprep.subr.mxu0 0.0
    %2038 = vmatpush1.xpose.msra.mxu0 0.0
    %2039 = vmatprep.subr.mxu0 0.0
    %2040 = vmatpush1.xpose.msra.mxu0 0.0
    %2041 = vmatprep.subr.mxu0 0.0
    %2042 = vmatpush1.xpose.msra.mxu0 0.0
    %2043 = vmatprep.subr.mxu0 0.0
    %2044 = vmatpush1.xpose.msra.mxu0 0.0
    %2045 = vmatprep.subr.mxu0 0.0
    %2046 = vmatpush1.xpose.msra.mxu0 0.0
    %2047 = vmatprep.subr.mxu0 0.0
    %2048 = vmatpush1.xpose.msra.mxu0 0.0
    %2049 = vmatprep.subr.mxu0 0.0
    %2050 = vmatpush1.xpose.msra.mxu0 0.0
    %2051 = vmatprep.subr.mxu0 0.0
    %2052 = vmatpush1.xpose.msra.mxu0 0.0
    %2053 = vmatprep.subr.mxu0 0.0
    %2054 = vmatpush1.xpose.msra.mxu0 0.0
    %2055 = vmatprep.subr.mxu0 0.0
    %2056 = vmatpush1.xpose.msra.mxu0 0.0
    %2057 = vmatprep.subr.mxu0 0.0
    %2058 = vmatpush1.xpose.msra.mxu0 0.0
    %2059 = vmatprep.subr.mxu0 0.0
    %2060 = vmatpush1.xpose.msra.mxu0 0.0
    %2061 = vmatprep.subr.mxu0 0.0
    %2062 = vmatpush1.xpose.msra.mxu0 0.0
    %2063 = vmatprep.subr.mxu0 0.0
    %2064 = vmatpush1.xpose.msra.mxu0 0.0
    %2065 = vmatprep.subr.mxu0 0.0
    %2066 = vmatpush1.xpose.msra.mxu0 0.0
    %2067 = vmatprep.subr.mxu0 0.0
    %2068 = vmatpush1.xpose.msra.mxu0 0.0
    %2069 = vmatprep.subr.mxu0 0.0
    %2070 = vmatpush1.xpose.msra.mxu0 0.0
    %2071 = vmatprep.subr.mxu0 0.0
    %2072 = vmatpush1.xpose.msra.mxu0 0.0
    %2073 = vmatprep.subr.mxu0 0.0
    %2074 = vmatpush1.xpose.msra.mxu0 0.0
    %2075 = vmatprep.subr.mxu0 0.0
    %2076 = vmatpush1.xpose.msra.mxu0 0.0
    %2077 = vmatprep.subr.mxu0 0.0
    %2078 = vmatpush1.xpose.msra.mxu0 0.0
    %2079 = vmatprep.subr.mxu0 0.0
    %2080 = vmatpush1.xpose.msra.mxu0 0.0
    %2081 = vmatprep.subr.mxu0 0.0
    %2082 = vmatpush1.xpose.msra.mxu0 0.0
    %2083 = vmatprep.subr.mxu0 0.0
    %2084 = vmatpush1.xpose.msra.mxu0 0.0
    %2085 = vmatprep.subr.mxu0 0.0
    %2086 = vmatpush1.xpose.msra.mxu0 0.0
    %2087 = vmatprep.mubr.f32.mxu0 0.0
    %2088 = vmatmul.mubr.f32.gmra.mrb[0].mxu0 %v2019
    %v2089 = vpop.f32.mrb[0].mxu0
    %v2090 = vadd.f32 0.0, %v2089
    %v2091 = vpop.f32.mrb[0].mxu0
    %2092 = vdwg.mxu0
    %2093 = vrot.lane.b32.xlu0 %v1932, 112
    %v2094 = vpop.permute.xlu0 %2093
    %2095 = vrot.lane.b32.xlu0 %v1932, 80
    %v2096 = vpop.permute.xlu0 %2095
    %v2097 = vsel %vm220, %v2094, 0
    %v2099 = vsel %vm220, %v2096, 0
    %2101 = vmatprep.subr.mxu0 0.0
    %2102 = vmatpush1.xpose.msra.mxu0 %v2099
    %2103 = vmatprep.subr.mxu0 0.0
    %2104 = vmatpush1.xpose.msra.mxu0 0.0
    %2105 = vmatprep.subr.mxu0 0.0
    %2106 = vmatpush1.xpose.msra.mxu0 0.0
    %2107 = vmatprep.subr.mxu0 0.0
    %2108 = vmatpush1.xpose.msra.mxu0 0.0
    %2109 = vmatprep.subr.mxu0 0.0
    %2110 = vmatpush1.xpose.msra.mxu0 0.0
    %2111 = vmatprep.subr.mxu0 0.0
    %2112 = vmatpush1.xpose.msra.mxu0 0.0
    %2113 = vmatprep.subr.mxu0 0.0
    %2114 = vmatpush1.xpose.msra.mxu0 0.0
    %2115 = vmatprep.subr.mxu0 0.0
    %2116 = vmatpush1.xpose.msra.mxu0 0.0
    %2117 = vmatprep.subr.mxu0 0.0
    %2118 = vmatpush1.xpose.msra.mxu0 0.0
    %2119 = vmatprep.subr.mxu0 0.0
    %2120 = vmatpush1.xpose.msra.mxu0 0.0
    %2121 = vmatprep.subr.mxu0 0.0
    %2122 = vmatpush1.xpose.msra.mxu0 0.0
    %2123 = vmatprep.subr.mxu0 0.0
    %2124 = vmatpush1.xpose.msra.mxu0 0.0
    %2125 = vmatprep.subr.mxu0 0.0
    %2126 = vmatpush1.xpose.msra.mxu0 0.0
    %2127 = vmatprep.subr.mxu0 0.0
    %2128 = vmatpush1.xpose.msra.mxu0 0.0
    %2129 = vmatprep.subr.mxu0 0.0
    %2130 = vmatpush1.xpose.msra.mxu0 0.0
    %2131 = vmatprep.subr.mxu0 0.0
    %2132 = vmatpush1.xpose.msra.mxu0 0.0
    %2133 = vmatprep.subr.mxu0 0.0
    %2134 = vmatpush1.xpose.msra.mxu0 0.0
    %2135 = vmatprep.subr.mxu0 0.0
    %2136 = vmatpush1.xpose.msra.mxu0 0.0
    %2137 = vmatprep.subr.mxu0 0.0
    %2138 = vmatpush1.xpose.msra.mxu0 0.0
    %2139 = vmatprep.subr.mxu0 0.0
    %2140 = vmatpush1.xpose.msra.mxu0 0.0
    %2141 = vmatprep.subr.mxu0 0.0
    %2142 = vmatpush1.xpose.msra.mxu0 0.0
    %2143 = vmatprep.subr.mxu0 0.0
    %2144 = vmatpush1.xpose.msra.mxu0 0.0
    %2145 = vmatprep.subr.mxu0 0.0
    %2146 = vmatpush1.xpose.msra.mxu0 0.0
    %2147 = vmatprep.subr.mxu0 0.0
    %2148 = vmatpush1.xpose.msra.mxu0 0.0
    %2149 = vmatprep.subr.mxu0 0.0
    %2150 = vmatpush1.xpose.msra.mxu0 0.0
    %2151 = vmatprep.subr.mxu0 0.0
    %2152 = vmatpush1.xpose.msra.mxu0 0.0
    %2153 = vmatprep.subr.mxu0 0.0
    %2154 = vmatpush1.xpose.msra.mxu0 0.0
    %2155 = vmatprep.subr.mxu0 0.0
    %2156 = vmatpush1.xpose.msra.mxu0 0.0
    %2157 = vmatprep.subr.mxu0 0.0
    %2158 = vmatpush1.xpose.msra.mxu0 0.0
    %2159 = vmatprep.subr.mxu0 0.0
    %2160 = vmatpush1.xpose.msra.mxu0 0.0
    %2161 = vmatprep.subr.mxu0 0.0
    %2162 = vmatpush1.xpose.msra.mxu0 0.0
    %2163 = vmatprep.subr.mxu0 0.0
    %2164 = vmatpush1.xpose.msra.mxu0 0.0
    %2165 = vmatprep.mubr.f32.mxu0 0.0
    %2166 = vmatmul.mubr.f32.gmra.mrb[0].mxu0 %v2097
    %v2167 = vpop.f32.mrb[0].mxu0
    %v2168 = vadd.f32 0.0, %v2167
    %v2169 = vpop.f32.mrb[0].mxu0
    %2170 = vdwg.mxu0
    %2171 = vrot.lane.b32.xlu0 %v1932, 104
    %v2172 = vpop.permute.xlu0 %2171
    %2173 = vrot.lane.b32.xlu0 %v1932, 72
    %v2174 = vpop.permute.xlu0 %2173
    %v2175 = vsel %vm220, %v2172, 0
    %v2177 = vsel %vm220, %v2174, 0
    %2179 = vmatprep.subr.mxu0 0.0
    %2180 = vmatpush1.xpose.msra.mxu0 %v2177
    %2181 = vmatprep.subr.mxu0 0.0
    %2182 = vmatpush1.xpose.msra.mxu0 0.0
    %2183 = vmatprep.subr.mxu0 0.0
    %2184 = vmatpush1.xpose.msra.mxu0 0.0
    %2185 = vmatprep.subr.mxu0 0.0
    %2186 = vmatpush1.xpose.msra.mxu0 0.0
    %2187 = vmatprep.subr.mxu0 0.0
    %2188 = vmatpush1.xpose.msra.mxu0 0.0
    %2189 = vmatprep.subr.mxu0 0.0
    %2190 = vmatpush1.xpose.msra.mxu0 0.0
    %2191 = vmatprep.subr.mxu0 0.0
    %2192 = vmatpush1.xpose.msra.mxu0 0.0
    %2193 = vmatprep.subr.mxu0 0.0
    %2194 = vmatpush1.xpose.msra.mxu0 0.0
    %2195 = vmatprep.subr.mxu0 0.0
    %2196 = vmatpush1.xpose.msra.mxu0 0.0
    %2197 = vmatprep.subr.mxu0 0.0
    %2198 = vmatpush1.xpose.msra.mxu0 0.0
    %2199 = vmatprep.subr.mxu0 0.0
    %2200 = vmatpush1.xpose.msra.mxu0 0.0
    %2201 = vmatprep.subr.mxu0 0.0
    %2202 = vmatpush1.xpose.msra.mxu0 0.0
    %2203 = vmatprep.subr.mxu0 0.0
    %2204 = vmatpush1.xpose.msra.mxu0 0.0
    %2205 = vmatprep.subr.mxu0 0.0
    %2206 = vmatpush1.xpose.msra.mxu0 0.0
    %2207 = vmatprep.subr.mxu0 0.0
    %2208 = vmatpush1.xpose.msra.mxu0 0.0
    %2209 = vmatprep.subr.mxu0 0.0
    %2210 = vmatpush1.xpose.msra.mxu0 0.0
    %2211 = vmatprep.subr.mxu0 0.0
    %2212 = vmatpush1.xpose.msra.mxu0 0.0
    %2213 = vmatprep.subr.mxu0 0.0
    %2214 = vmatpush1.xpose.msra.mxu0 0.0
    %2215 = vmatprep.subr.mxu0 0.0
    %2216 = vmatpush1.xpose.msra.mxu0 0.0
    %2217 = vmatprep.subr.mxu0 0.0
    %2218 = vmatpush1.xpose.msra.mxu0 0.0
    %2219 = vmatprep.subr.mxu0 0.0
    %2220 = vmatpush1.xpose.msra.mxu0 0.0
    %2221 = vmatprep.subr.mxu0 0.0
    %2222 = vmatpush1.xpose.msra.mxu0 0.0
    %2223 = vmatprep.subr.mxu0 0.0
    %2224 = vmatpush1.xpose.msra.mxu0 0.0
    %2225 = vmatprep.subr.mxu0 0.0
    %2226 = vmatpush1.xpose.msra.mxu0 0.0
    %2227 = vmatprep.subr.mxu0 0.0
    %2228 = vmatpush1.xpose.msra.mxu0 0.0
    %2229 = vmatprep.subr.mxu0 0.0
    %2230 = vmatpush1.xpose.msra.mxu0 0.0
    %2231 = vmatprep.subr.mxu0 0.0
    %2232 = vmatpush1.xpose.msra.mxu0 0.0
    %2233 = vmatprep.subr.mxu0 0.0
    %2234 = vmatpush1.xpose.msra.mxu0 0.0
    %2235 = vmatprep.subr.mxu0 0.0
    %2236 = vmatpush1.xpose.msra.mxu0 0.0
    %2237 = vmatprep.subr.mxu0 0.0
    %2238 = vmatpush1.xpose.msra.mxu0 0.0
    %2239 = vmatprep.subr.mxu0 0.0
    %2240 = vmatpush1.xpose.msra.mxu0 0.0
    %2241 = vmatprep.subr.mxu0 0.0
    %2242 = vmatpush1.xpose.msra.mxu0 0.0
    %2243 = vmatprep.mubr.f32.mxu0 0.0
    %2244 = vmatmul.mubr.f32.gmra.mrb[0].mxu0 %v2175
    %v2245 = vpop.f32.mrb[0].mxu0
    %v2246 = vadd.f32 0.0, %v2245
    %v2247 = vpop.f32.mrb[0].mxu0
    %2248 = vdwg.mxu0
    %2250 = vrot.lane.b32.xlu0 %v1935, 96
    %v2251 = vpop.permute.xlu0 %2250
    %v2252 = vsel %vm220, %v1935, 0
    %v2254 = vsel %vm220, %v2251, 0
    %2256 = vmatprep.subr.mxu0 0.0
    %2257 = vmatpush1.xpose.msra.mxu0 %v2254
    %2258 = vmatprep.subr.mxu0 0.0
    %2259 = vmatpush1.xpose.msra.mxu0 0.0
    %2260 = vmatprep.subr.mxu0 0.0
    %2261 = vmatpush1.xpose.msra.mxu0 0.0
    %2262 = vmatprep.subr.mxu0 0.0
    %2263 = vmatpush1.xpose.msra.mxu0 0.0
    %2264 = vmatprep.subr.mxu0 0.0
    %2265 = vmatpush1.xpose.msra.mxu0 0.0
    %2266 = vmatprep.subr.mxu0 0.0
    %2267 = vmatpush1.xpose.msra.mxu0 0.0
    %2268 = vmatprep.subr.mxu0 0.0
    %2269 = vmatpush1.xpose.msra.mxu0 0.0
    %2270 = vmatprep.subr.mxu0 0.0
    %2271 = vmatpush1.xpose.msra.mxu0 0.0
    %2272 = vmatprep.subr.mxu0 0.0
    %2273 = vmatpush1.xpose.msra.mxu0 0.0
    %2274 = vmatprep.subr.mxu0 0.0
    %2275 = vmatpush1.xpose.msra.mxu0 0.0
    %2276 = vmatprep.subr.mxu0 0.0
    %2277 = vmatpush1.xpose.msra.mxu0 0.0
    %2278 = vmatprep.subr.mxu0 0.0
    %2279 = vmatpush1.xpose.msra.mxu0 0.0
    %2280 = vmatprep.subr.mxu0 0.0
    %2281 = vmatpush1.xpose.msra.mxu0 0.0
    %2282 = vmatprep.subr.mxu0 0.0
    %2283 = vmatpush1.xpose.msra.mxu0 0.0
    %2284 = vmatprep.subr.mxu0 0.0
    %2285 = vmatpush1.xpose.msra.mxu0 0.0
    %2286 = vmatprep.subr.mxu0 0.0
    %2287 = vmatpush1.xpose.msra.mxu0 0.0
    %2288 = vmatprep.subr.mxu0 0.0
    %2289 = vmatpush1.xpose.msra.mxu0 0.0
    %2290 = vmatprep.subr.mxu0 0.0
    %2291 = vmatpush1.xpose.msra.mxu0 0.0
    %2292 = vmatprep.subr.mxu0 0.0
    %2293 = vmatpush1.xpose.msra.mxu0 0.0
    %2294 = vmatprep.subr.mxu0 0.0
    %2295 = vmatpush1.xpose.msra.mxu0 0.0
    %2296 = vmatprep.subr.mxu0 0.0
    %2297 = vmatpush1.xpose.msra.mxu0 0.0
    %2298 = vmatprep.subr.mxu0 0.0
    %2299 = vmatpush1.xpose.msra.mxu0 0.0
    %2300 = vmatprep.subr.mxu0 0.0
    %2301 = vmatpush1.xpose.msra.mxu0 0.0
    %2302 = vmatprep.subr.mxu0 0.0
    %2303 = vmatpush1.xpose.msra.mxu0 0.0
    %2304 = vmatprep.subr.mxu0 0.0
    %2305 = vmatpush1.xpose.msra.mxu0 0.0
    %2306 = vmatprep.subr.mxu0 0.0
    %2307 = vmatpush1.xpose.msra.mxu0 0.0
    %2308 = vmatprep.subr.mxu0 0.0
    %2309 = vmatpush1.xpose.msra.mxu0 0.0
    %2310 = vmatprep.subr.mxu0 0.0
    %2311 = vmatpush1.xpose.msra.mxu0 0.0
    %2312 = vmatprep.subr.mxu0 0.0
    %2313 = vmatpush1.xpose.msra.mxu0 0.0
    %2314 = vmatprep.subr.mxu0 0.0
    %2315 = vmatpush1.xpose.msra.mxu0 0.0
    %2316 = vmatprep.subr.mxu0 0.0
    %2317 = vmatpush1.xpose.msra.mxu0 0.0
    %2318 = vmatprep.subr.mxu0 0.0
    %2319 = vmatpush1.xpose.msra.mxu0 0.0
    %2320 = vmatprep.mubr.f32.mxu0 0.0
    %2321 = vmatmul.mubr.f32.gmra.mrb[0].mxu0 %v2252
    %v2322 = vpop.f32.mrb[0].mxu0
    %v2323 = vadd.f32 0.0, %v2322
    %v2324 = vpop.f32.mrb[0].mxu0
    %2325 = vdwg.mxu0
    %2326 = vrot.lane.b32.xlu0 %v1935, 120
    %v2327 = vpop.permute.xlu0 %2326
    %2328 = vrot.lane.b32.xlu0 %v1935, 88
    %v2329 = vpop.permute.xlu0 %2328
    %v2330 = vsel %vm220, %v2327, 0
    %v2332 = vsel %vm220, %v2329, 0
    %2334 = vmatprep.subr.mxu0 0.0
    %2335 = vmatpush1.xpose.msra.mxu0 %v2332
    %2336 = vmatprep.subr.mxu0 0.0
    %2337 = vmatpush1.xpose.msra.mxu0 0.0
    %2338 = vmatprep.subr.mxu0 0.0
    %2339 = vmatpush1.xpose.msra.mxu0 0.0
    %2340 = vmatprep.subr.mxu0 0.0
    %2341 = vmatpush1.xpose.msra.mxu0 0.0
    %2342 = vmatprep.subr.mxu0 0.0
    %2343 = vmatpush1.xpose.msra.mxu0 0.0
    %2344 = vmatprep.subr.mxu0 0.0
    %2345 = vmatpush1.xpose.msra.mxu0 0.0
    %2346 = vmatprep.subr.mxu0 0.0
    %2347 = vmatpush1.xpose.msra.mxu0 0.0
    %2348 = vmatprep.subr.mxu0 0.0
    %2349 = vmatpush1.xpose.msra.mxu0 0.0
    %2350 = vmatprep.subr.mxu0 0.0
    %2351 = vmatpush1.xpose.msra.mxu0 0.0
    %2352 = vmatprep.subr.mxu0 0.0
    %2353 = vmatpush1.xpose.msra.mxu0 0.0
    %2354 = vmatprep.subr.mxu0 0.0
    %2355 = vmatpush1.xpose.msra.mxu0 0.0
    %2356 = vmatprep.subr.mxu0 0.0
    %2357 = vmatpush1.xpose.msra.mxu0 0.0
    %2358 = vmatprep.subr.mxu0 0.0
    %2359 = vmatpush1.xpose.msra.mxu0 0.0
    %2360 = vmatprep.subr.mxu0 0.0
    %2361 = vmatpush1.xpose.msra.mxu0 0.0
    %2362 = vmatprep.subr.mxu0 0.0
    %2363 = vmatpush1.xpose.msra.mxu0 0.0
    %2364 = vmatprep.subr.mxu0 0.0
    %2365 = vmatpush1.xpose.msra.mxu0 0.0
    %2366 = vmatprep.subr.mxu0 0.0
    %2367 = vmatpush1.xpose.msra.mxu0 0.0
    %2368 = vmatprep.subr.mxu0 0.0
    %2369 = vmatpush1.xpose.msra.mxu0 0.0
    %2370 = vmatprep.subr.mxu0 0.0
    %2371 = vmatpush1.xpose.msra.mxu0 0.0
    %2372 = vmatprep.subr.mxu0 0.0
    %2373 = vmatpush1.xpose.msra.mxu0 0.0
    %2374 = vmatprep.subr.mxu0 0.0
    %2375 = vmatpush1.xpose.msra.mxu0 0.0
    %2376 = vmatprep.subr.mxu0 0.0
    %2377 = vmatpush1.xpose.msra.mxu0 0.0
    %2378 = vmatprep.subr.mxu0 0.0
    %2379 = vmatpush1.xpose.msra.mxu0 0.0
    %2380 = vmatprep.subr.mxu0 0.0
    %2381 = vmatpush1.xpose.msra.mxu0 0.0
    %2382 = vmatprep.subr.mxu0 0.0
    %2383 = vmatpush1.xpose.msra.mxu0 0.0
    %2384 = vmatprep.subr.mxu0 0.0
    %2385 = vmatpush1.xpose.msra.mxu0 0.0
    %2386 = vmatprep.subr.mxu0 0.0
    %2387 = vmatpush1.xpose.msra.mxu0 0.0
    %2388 = vmatprep.subr.mxu0 0.0
    %2389 = vmatpush1.xpose.msra.mxu0 0.0
    %2390 = vmatprep.subr.mxu0 0.0
    %2391 = vmatpush1.xpose.msra.mxu0 0.0
    %2392 = vmatprep.subr.mxu0 0.0
    %2393 = vmatpush1.xpose.msra.mxu0 0.0
    %2394 = vmatprep.subr.mxu0 0.0
    %2395 = vmatpush1.xpose.msra.mxu0 0.0
    %2396 = vmatprep.subr.mxu0 0.0
    %2397 = vmatpush1.xpose.msra.mxu0 0.0
    %2398 = vmatprep.mubr.f32.mxu0 0.0
    %2399 = vmatmul.mubr.f32.gmra.mrb[0].mxu0 %v2330
    %v2400 = vpop.f32.mrb[0].mxu0
    %v2401 = vadd.f32 0.0, %v2400
    %v2402 = vpop.f32.mrb[0].mxu0
    %2403 = vdwg.mxu0
    %2404 = vrot.lane.b32.xlu0 %v1935, 112
    %v2405 = vpop.permute.xlu0 %2404
    %2406 = vrot.lane.b32.xlu0 %v1935, 80
    %v2407 = vpop.permute.xlu0 %2406
    %v2408 = vsel %vm220, %v2405, 0
    %v2410 = vsel %vm220, %v2407, 0
    %2412 = vmatprep.subr.mxu0 0.0
    %2413 = vmatpush1.xpose.msra.mxu0 %v2410
    %2414 = vmatprep.subr.mxu0 0.0
    %2415 = vmatpush1.xpose.msra.mxu0 0.0
    %2416 = vmatprep.subr.mxu0 0.0
    %2417 = vmatpush1.xpose.msra.mxu0 0.0
    %2418 = vmatprep.subr.mxu0 0.0
    %2419 = vmatpush1.xpose.msra.mxu0 0.0
    %2420 = vmatprep.subr.mxu0 0.0
    %2421 = vmatpush1.xpose.msra.mxu0 0.0
    %2422 = vmatprep.subr.mxu0 0.0
    %2423 = vmatpush1.xpose.msra.mxu0 0.0
    %2424 = vmatprep.subr.mxu0 0.0
    %2425 = vmatpush1.xpose.msra.mxu0 0.0
    %2426 = vmatprep.subr.mxu0 0.0
    %2427 = vmatpush1.xpose.msra.mxu0 0.0
    %2428 = vmatprep.subr.mxu0 0.0
    %2429 = vmatpush1.xpose.msra.mxu0 0.0
    %2430 = vmatprep.subr.mxu0 0.0
    %2431 = vmatpush1.xpose.msra.mxu0 0.0
    %2432 = vmatprep.subr.mxu0 0.0
    %2433 = vmatpush1.xpose.msra.mxu0 0.0
    %2434 = vmatprep.subr.mxu0 0.0
    %2435 = vmatpush1.xpose.msra.mxu0 0.0
    %2436 = vmatprep.subr.mxu0 0.0
    %2437 = vmatpush1.xpose.msra.mxu0 0.0
    %2438 = vmatprep.subr.mxu0 0.0
    %2439 = vmatpush1.xpose.msra.mxu0 0.0
    %2440 = vmatprep.subr.mxu0 0.0
    %2441 = vmatpush1.xpose.msra.mxu0 0.0
    %2442 = vmatprep.subr.mxu0 0.0
    %2443 = vmatpush1.xpose.msra.mxu0 0.0
    %2444 = vmatprep.subr.mxu0 0.0
    %2445 = vmatpush1.xpose.msra.mxu0 0.0
    %2446 = vmatprep.subr.mxu0 0.0
    %2447 = vmatpush1.xpose.msra.mxu0 0.0
    %2448 = vmatprep.subr.mxu0 0.0
    %2449 = vmatpush1.xpose.msra.mxu0 0.0
    %2450 = vmatprep.subr.mxu0 0.0
    %2451 = vmatpush1.xpose.msra.mxu0 0.0
    %2452 = vmatprep.subr.mxu0 0.0
    %2453 = vmatpush1.xpose.msra.mxu0 0.0
    %2454 = vmatprep.subr.mxu0 0.0
    %2455 = vmatpush1.xpose.msra.mxu0 0.0
    %2456 = vmatprep.subr.mxu0 0.0
    %2457 = vmatpush1.xpose.msra.mxu0 0.0
    %2458 = vmatprep.subr.mxu0 0.0
    %2459 = vmatpush1.xpose.msra.mxu0 0.0
    %2460 = vmatprep.subr.mxu0 0.0
    %2461 = vmatpush1.xpose.msra.mxu0 0.0
    %2462 = vmatprep.subr.mxu0 0.0
    %2463 = vmatpush1.xpose.msra.mxu0 0.0
    %2464 = vmatprep.subr.mxu0 0.0
    %2465 = vmatpush1.xpose.msra.mxu0 0.0
    %2466 = vmatprep.subr.mxu0 0.0
    %2467 = vmatpush1.xpose.msra.mxu0 0.0
    %2468 = vmatprep.subr.mxu0 0.0
    %2469 = vmatpush1.xpose.msra.mxu0 0.0
    %2470 = vmatprep.subr.mxu0 0.0
    %2471 = vmatpush1.xpose.msra.mxu0 0.0
    %2472 = vmatprep.subr.mxu0 0.0
    %2473 = vmatpush1.xpose.msra.mxu0 0.0
    %2474 = vmatprep.subr.mxu0 0.0
    %2475 = vmatpush1.xpose.msra.mxu0 0.0
    %2476 = vmatprep.mubr.f32.mxu0 0.0
    %2477 = vmatmul.mubr.f32.gmra.mrb[0].mxu0 %v2408
    %v2478 = vpop.f32.mrb[0].mxu0
    %v2479 = vadd.f32 0.0, %v2478
    %v2480 = vpop.f32.mrb[0].mxu0
    %2481 = vdwg.mxu0
    %2482 = vrot.lane.b32.xlu0 %v1935, 104
    %v2483 = vpop.permute.xlu0 %2482
    %2484 = vrot.lane.b32.xlu0 %v1935, 72
    %v2485 = vpop.permute.xlu0 %2484
    %v2486 = vsel %vm220, %v2483, 0
    %v2488 = vsel %vm220, %v2485, 0
    %2490 = vmatprep.subr.mxu0 0.0
    %2491 = vmatpush1.xpose.msra.mxu0 %v2488
    %2492 = vmatprep.subr.mxu0 0.0
    %2493 = vmatpush1.xpose.msra.mxu0 0.0
    %2494 = vmatprep.subr.mxu0 0.0
    %2495 = vmatpush1.xpose.msra.mxu0 0.0
    %2496 = vmatprep.subr.mxu0 0.0
    %2497 = vmatpush1.xpose.msra.mxu0 0.0
    %2498 = vmatprep.subr.mxu0 0.0
    %2499 = vmatpush1.xpose.msra.mxu0 0.0
    %2500 = vmatprep.subr.mxu0 0.0
    %2501 = vmatpush1.xpose.msra.mxu0 0.0
    %2502 = vmatprep.subr.mxu0 0.0
    %2503 = vmatpush1.xpose.msra.mxu0 0.0
    %2504 = vmatprep.subr.mxu0 0.0
    %2505 = vmatpush1.xpose.msra.mxu0 0.0
    %2506 = vmatprep.subr.mxu0 0.0
    %2507 = vmatpush1.xpose.msra.mxu0 0.0
    %2508 = vmatprep.subr.mxu0 0.0
    %2509 = vmatpush1.xpose.msra.mxu0 0.0
    %2510 = vmatprep.subr.mxu0 0.0
    %2511 = vmatpush1.xpose.msra.mxu0 0.0
    %2512 = vmatprep.subr.mxu0 0.0
    %2513 = vmatpush1.xpose.msra.mxu0 0.0
    %2514 = vmatprep.subr.mxu0 0.0
    %2515 = vmatpush1.xpose.msra.mxu0 0.0
    %2516 = vmatprep.subr.mxu0 0.0
    %2517 = vmatpush1.xpose.msra.mxu0 0.0
    %2518 = vmatprep.subr.mxu0 0.0
    %2519 = vmatpush1.xpose.msra.mxu0 0.0
    %2520 = vmatprep.subr.mxu0 0.0
    %2521 = vmatpush1.xpose.msra.mxu0 0.0
    %2522 = vmatprep.subr.mxu0 0.0
    %2523 = vmatpush1.xpose.msra.mxu0 0.0
    %2524 = vmatprep.subr.mxu0 0.0
    %2525 = vmatpush1.xpose.msra.mxu0 0.0
    %2526 = vmatprep.subr.mxu0 0.0
    %2527 = vmatpush1.xpose.msra.mxu0 0.0
    %2528 = vmatprep.subr.mxu0 0.0
    %2529 = vmatpush1.xpose.msra.mxu0 0.0
    %2530 = vmatprep.subr.mxu0 0.0
    %2531 = vmatpush1.xpose.msra.mxu0 0.0
    %2532 = vmatprep.subr.mxu0 0.0
    %2533 = vmatpush1.xpose.msra.mxu0 0.0
    %2534 = vmatprep.subr.mxu0 0.0
    %2535 = vmatpush1.xpose.msra.mxu0 0.0
    %2536 = vmatprep.subr.mxu0 0.0
    %2537 = vmatpush1.xpose.msra.mxu0 0.0
    %2538 = vmatprep.subr.mxu0 0.0
    %2539 = vmatpush1.xpose.msra.mxu0 0.0
    %2540 = vmatprep.subr.mxu0 0.0
    %2541 = vmatpush1.xpose.msra.mxu0 0.0
    %2542 = vmatprep.subr.mxu0 0.0
    %2543 = vmatpush1.xpose.msra.mxu0 0.0
    %2544 = vmatprep.subr.mxu0 0.0
    %2545 = vmatpush1.xpose.msra.mxu0 0.0
    %2546 = vmatprep.subr.mxu0 0.0
    %2547 = vmatpush1.xpose.msra.mxu0 0.0
    %2548 = vmatprep.subr.mxu0 0.0
    %2549 = vmatpush1.xpose.msra.mxu0 0.0
    %2550 = vmatprep.subr.mxu0 0.0
    %2551 = vmatpush1.xpose.msra.mxu0 0.0
    %2552 = vmatprep.subr.mxu0 0.0
    %2553 = vmatpush1.xpose.msra.mxu0 0.0
    %2554 = vmatprep.mubr.f32.mxu0 0.0
    %2555 = vmatmul.mubr.f32.gmra.mrb[0].mxu0 %v2486
    %v2556 = vpop.f32.mrb[0].mxu0
    %v2557 = vadd.f32 0.0, %v2556
    %v2558 = vpop.f32.mrb[0].mxu0
    %2559 = vdwg.mxu0
    %v2560 = vsel %vm220, %v2012, -inf
    %2561 = vmax.xlane.f32.xlu0 %v2560
    %v2562 = vpop.xlane.xlu0 %2561
    %v2563 = vsel %vm220, %v2090, -inf
    %2564 = vmax.xlane.f32.xlu0 %v2563
    %v2565 = vpop.xlane.xlu0 %2564
    %v2566 = vsel %vm220, %v2168, -inf
    %2567 = vmax.xlane.f32.xlu0 %v2566
    %v2568 = vpop.xlane.xlu0 %2567
    %v2569 = vsel %vm220, %v2246, -inf
    %2570 = vmax.xlane.f32.xlu0 %v2569
    %v2571 = vpop.xlane.xlu0 %2570
    %v2572 = vsel %vm220, %v2323, -inf
    %2573 = vmax.xlane.f32.xlu0 %v2572
    %v2574 = vpop.xlane.xlu0 %2573
    %v2575 = vsel %vm220, %v2401, -inf
    %2576 = vmax.xlane.f32.xlu0 %v2575
    %v2577 = vpop.xlane.xlu0 %2576
    %v2578 = vsel %vm220, %v2479, -inf
    %2579 = vmax.xlane.f32.xlu0 %v2578
    %v2580 = vpop.xlane.xlu0 %2579
    %v2581 = vsel %vm220, %v2557, -inf
    %2582 = vmax.xlane.f32.xlu0 %v2581
    %v2583 = vpop.xlane.xlu0 %2582
    %v2584 = vsub.f32 %v2012, %v2562
    %v2585 = vsub.f32 %v2090, %v2565
    %v2586 = vsub.f32 %v2168, %v2568
    %v2587 = vsub.f32 %v2246, %v2571
    %v2588 = vsub.f32 %v2323, %v2574
    %v2589 = vsub.f32 %v2401, %v2577
    %v2590 = vsub.f32 %v2479, %v2580
    %v2591 = vsub.f32 %v2557, %v2583
    %v2592 = vmul.f32 %v2584, 1.442695
    %v2593 = vpow.pop %v2592
    %v2594 = vmul.f32 %v2585, 1.442695
    %v2595 = vpow.pop %v2594
    %v2596 = vmul.f32 %v2586, 1.442695
    %v2597 = vpow.pop %v2596
    %v2598 = vmul.f32 %v2587, 1.442695
    %v2599 = vpow.pop %v2598
    %v2600 = vmul.f32 %v2588, 1.442695
    %v2601 = vpow.pop %v2600
    %v2602 = vmul.f32 %v2589, 1.442695
    %v2603 = vpow.pop %v2602
    %v2604 = vmul.f32 %v2590, 1.442695
    %v2605 = vpow.pop %v2604
    %v2606 = vmul.f32 %v2591, 1.442695
    %v2607 = vpow.pop %v2606
    %v2608 = vsel %vm220, %v2593, 0.0
    %2609 = vadd.xlane.f32.xlu0 %v2608
    %v2610 = vpop.xlane.xlu0 %2609
    %v2611 = vsel %vm220, %v2595, 0.0
    %2612 = vadd.xlane.f32.xlu0 %v2611
    %v2613 = vpop.xlane.xlu0 %2612
    %v2614 = vsel %vm220, %v2597, 0.0
    %2615 = vadd.xlane.f32.xlu0 %v2614
    %v2616 = vpop.xlane.xlu0 %2615
    %v2617 = vsel %vm220, %v2599, 0.0
    %2618 = vadd.xlane.f32.xlu0 %v2617
    %v2619 = vpop.xlane.xlu0 %2618
    %v2620 = vsel %vm220, %v2601, 0.0
    %2621 = vadd.xlane.f32.xlu0 %v2620
    %v2622 = vpop.xlane.xlu0 %2621
    %v2623 = vsel %vm220, %v2603, 0.0
    %2624 = vadd.xlane.f32.xlu0 %v2623
    %v2625 = vpop.xlane.xlu0 %2624
    %v2626 = vsel %vm220, %v2605, 0.0
    %2627 = vadd.xlane.f32.xlu0 %v2626
    %v2628 = vpop.xlane.xlu0 %2627
    %v2629 = vsel %vm220, %v2607, 0.0
    %2630 = vadd.xlane.f32.xlu0 %v2629
    %v2631 = vpop.xlane.xlu0 %2630
    %v2632 = vrcp.pop %v2610
    %v2633 = vrcp.pop %v2613
    %v2634 = vrcp.pop %v2616
    %v2635 = vrcp.pop %v2619
    %v2636 = vrcp.pop %v2622
    %v2637 = vrcp.pop %v2625
    %v2638 = vrcp.pop %v2628
    %v2639 = vrcp.pop %v2631
    %v2640 = vmul.f32 %v2593, %v2632
    %v2641 = vmul.f32 %v2595, %v2633
    %v2642 = vmul.f32 %v2597, %v2634
    %v2643 = vmul.f32 %v2599, %v2635
    %v2644 = vmul.f32 %v2601, %v2636
    %v2645 = vmul.f32 %v2603, %v2637
    %v2646 = vmul.f32 %v2605, %v2638
    %v2647 = vmul.f32 %v2607, %v2639
    %2648 = vrot.lane.b32.xlu0 %v1932, 64
    %v2649 = vpop.permute.xlu0 %2648
    %v2652 = vsel %vm220, %v2640, 0
    %2654 = vmatprep.subr.mxu0 0.0
    %2655 = vmatpush1.msra.mxu0 %v2649
    %2656 = vmatprep.subr.mxu0 0.0
    %2657 = vmatpush1.msra.mxu0 0.0
    %2658 = vmatprep.subr.mxu0 0.0
    %2659 = vmatpush1.msra.mxu0 0.0
    %2660 = vmatprep.subr.mxu0 0.0
    %2661 = vmatpush1.msra.mxu0 0.0
    %2662 = vmatprep.subr.mxu0 0.0
    %2663 = vmatpush1.msra.mxu0 0.0
    %2664 = vmatprep.subr.mxu0 0.0
    %2665 = vmatpush1.msra.mxu0 0.0
    %2666 = vmatprep.subr.mxu0 0.0
    %2667 = vmatpush1.msra.mxu0 0.0
    %2668 = vmatprep.subr.mxu0 0.0
    %2669 = vmatpush1.msra.mxu0 0.0
    %2670 = vmatprep.subr.mxu0 0.0
    %2671 = vmatpush1.msra.mxu0 0.0
    %2672 = vmatprep.subr.mxu0 0.0
    %2673 = vmatpush1.msra.mxu0 0.0
    %2674 = vmatprep.subr.mxu0 0.0
    %2675 = vmatpush1.msra.mxu0 0.0
    %2676 = vmatprep.subr.mxu0 0.0
    %2677 = vmatpush1.msra.mxu0 0.0
    %2678 = vmatprep.subr.mxu0 0.0
    %2679 = vmatpush1.msra.mxu0 0.0
    %2680 = vmatprep.subr.mxu0 0.0
    %2681 = vmatpush1.msra.mxu0 0.0
    %2682 = vmatprep.subr.mxu0 0.0
    %2683 = vmatpush1.msra.mxu0 0.0
    %2684 = vmatprep.subr.mxu0 0.0
    %2685 = vmatpush1.msra.mxu0 0.0
    %2686 = vmatprep.subr.mxu0 0.0
    %2687 = vmatpush1.msra.mxu0 0.0
    %2688 = vmatprep.subr.mxu0 0.0
    %2689 = vmatpush1.msra.mxu0 0.0
    %2690 = vmatprep.subr.mxu0 0.0
    %2691 = vmatpush1.msra.mxu0 0.0
    %2692 = vmatprep.subr.mxu0 0.0
    %2693 = vmatpush1.msra.mxu0 0.0
    %2694 = vmatprep.subr.mxu0 0.0
    %2695 = vmatpush1.msra.mxu0 0.0
    %2696 = vmatprep.subr.mxu0 0.0
    %2697 = vmatpush1.msra.mxu0 0.0
    %2698 = vmatprep.subr.mxu0 0.0
    %2699 = vmatpush1.msra.mxu0 0.0
    %2700 = vmatprep.subr.mxu0 0.0
    %2701 = vmatpush1.msra.mxu0 0.0
    %2702 = vmatprep.subr.mxu0 0.0
    %2703 = vmatpush1.msra.mxu0 0.0
    %2704 = vmatprep.subr.mxu0 0.0
    %2705 = vmatpush1.msra.mxu0 0.0
    %2706 = vmatprep.subr.mxu0 0.0
    %2707 = vmatpush1.msra.mxu0 0.0
    %2708 = vmatprep.subr.mxu0 0.0
    %2709 = vmatpush1.msra.mxu0 0.0
    %2710 = vmatprep.subr.mxu0 0.0
    %2711 = vmatpush1.msra.mxu0 0.0
    %2712 = vmatprep.subr.mxu0 0.0
    %2713 = vmatpush1.msra.mxu0 0.0
    %2714 = vmatprep.subr.mxu0 0.0
    %2715 = vmatpush1.msra.mxu0 0.0
    %2716 = vmatprep.subr.mxu0 0.0
    %2717 = vmatpush1.msra.mxu0 0.0
    %2718 = vmatprep.mubr.f32.mxu0 0.0
    %2719 = vmatmul.mubr.f32.gmra.mrb[0].mxu0 %v2652
    %v2720 = vpop.f32.mrb[0].mxu0
    %v2721 = vadd.f32 0.0, %v2720
    %v2722 = vpop.f32.mrb[0].mxu0
    %2723 = vdwg.mxu0
    %2724 = vrot.lane.b32.xlu0 %v1932, 56
    %v2725 = vpop.permute.xlu0 %2724
    %v2728 = vsel %vm220, %v2641, 0
    %2730 = vmatprep.subr.mxu0 0.0
    %2731 = vmatpush1.msra.mxu0 %v2725
    %2732 = vmatprep.subr.mxu0 0.0
    %2733 = vmatpush1.msra.mxu0 0.0
    %2734 = vmatprep.subr.mxu0 0.0
    %2735 = vmatpush1.msra.mxu0 0.0
    %2736 = vmatprep.subr.mxu0 0.0
    %2737 = vmatpush1.msra.mxu0 0.0
    %2738 = vmatprep.subr.mxu0 0.0
    %2739 = vmatpush1.msra.mxu0 0.0
    %2740 = vmatprep.subr.mxu0 0.0
    %2741 = vmatpush1.msra.mxu0 0.0
    %2742 = vmatprep.subr.mxu0 0.0
    %2743 = vmatpush1.msra.mxu0 0.0
    %2744 = vmatprep.subr.mxu0 0.0
    %2745 = vmatpush1.msra.mxu0 0.0
    %2746 = vmatprep.subr.mxu0 0.0
    %2747 = vmatpush1.msra.mxu0 0.0
    %2748 = vmatprep.subr.mxu0 0.0
    %2749 = vmatpush1.msra.mxu0 0.0
    %2750 = vmatprep.subr.mxu0 0.0
    %2751 = vmatpush1.msra.mxu0 0.0
    %2752 = vmatprep.subr.mxu0 0.0
    %2753 = vmatpush1.msra.mxu0 0.0
    %2754 = vmatprep.subr.mxu0 0.0
    %2755 = vmatpush1.msra.mxu0 0.0
    %2756 = vmatprep.subr.mxu0 0.0
    %2757 = vmatpush1.msra.mxu0 0.0
    %2758 = vmatprep.subr.mxu0 0.0
    %2759 = vmatpush1.msra.mxu0 0.0
    %2760 = vmatprep.subr.mxu0 0.0
    %2761 = vmatpush1.msra.mxu0 0.0
    %2762 = vmatprep.subr.mxu0 0.0
    %2763 = vmatpush1.msra.mxu0 0.0
    %2764 = vmatprep.subr.mxu0 0.0
    %2765 = vmatpush1.msra.mxu0 0.0
    %2766 = vmatprep.subr.mxu0 0.0
    %2767 = vmatpush1.msra.mxu0 0.0
    %2768 = vmatprep.subr.mxu0 0.0
    %2769 = vmatpush1.msra.mxu0 0.0
    %2770 = vmatprep.subr.mxu0 0.0
    %2771 = vmatpush1.msra.mxu0 0.0
    %2772 = vmatprep.subr.mxu0 0.0
    %2773 = vmatpush1.msra.mxu0 0.0
    %2774 = vmatprep.subr.mxu0 0.0
    %2775 = vmatpush1.msra.mxu0 0.0
    %2776 = vmatprep.subr.mxu0 0.0
    %2777 = vmatpush1.msra.mxu0 0.0
    %2778 = vmatprep.subr.mxu0 0.0
    %2779 = vmatpush1.msra.mxu0 0.0
    %2780 = vmatprep.subr.mxu0 0.0
    %2781 = vmatpush1.msra.mxu0 0.0
    %2782 = vmatprep.subr.mxu0 0.0
    %2783 = vmatpush1.msra.mxu0 0.0
    %2784 = vmatprep.subr.mxu0 0.0
    %2785 = vmatpush1.msra.mxu0 0.0
    %2786 = vmatprep.subr.mxu0 0.0
    %2787 = vmatpush1.msra.mxu0 0.0
    %2788 = vmatprep.subr.mxu0 0.0
    %2789 = vmatpush1.msra.mxu0 0.0
    %2790 = vmatprep.subr.mxu0 0.0
    %2791 = vmatpush1.msra.mxu0 0.0
    %2792 = vmatprep.subr.mxu0 0.0
    %2793 = vmatpush1.msra.mxu0 0.0
    %2794 = vmatprep.mubr.f32.mxu0 0.0
    %2795 = vmatmul.mubr.f32.gmra.mrb[0].mxu0 %v2728
    %v2796 = vpop.f32.mrb[0].mxu0
    %v2797 = vadd.f32 0.0, %v2796
    %v2798 = vpop.f32.mrb[0].mxu0
    %2799 = vdwg.mxu0
    %2800 = vrot.lane.b32.xlu0 %v1932, 48
    %v2801 = vpop.permute.xlu0 %2800
    %v2804 = vsel %vm220, %v2642, 0
    %2806 = vmatprep.subr.mxu0 0.0
    %2807 = vmatpush1.msra.mxu0 %v2801
    %2808 = vmatprep.subr.mxu0 0.0
    %2809 = vmatpush1.msra.mxu0 0.0
    %2810 = vmatprep.subr.mxu0 0.0
    %2811 = vmatpush1.msra.mxu0 0.0
    %2812 = vmatprep.subr.mxu0 0.0
    %2813 = vmatpush1.msra.mxu0 0.0
    %2814 = vmatprep.subr.mxu0 0.0
    %2815 = vmatpush1.msra.mxu0 0.0
    %2816 = vmatprep.subr.mxu0 0.0
    %2817 = vmatpush1.msra.mxu0 0.0
    %2818 = vmatprep.subr.mxu0 0.0
    %2819 = vmatpush1.msra.mxu0 0.0
    %2820 = vmatprep.subr.mxu0 0.0
    %2821 = vmatpush1.msra.mxu0 0.0
    %2822 = vmatprep.subr.mxu0 0.0
    %2823 = vmatpush1.msra.mxu0 0.0
    %2824 = vmatprep.subr.mxu0 0.0
    %2825 = vmatpush1.msra.mxu0 0.0
    %2826 = vmatprep.subr.mxu0 0.0
    %2827 = vmatpush1.msra.mxu0 0.0
    %2828 = vmatprep.subr.mxu0 0.0
    %2829 = vmatpush1.msra.mxu0 0.0
    %2830 = vmatprep.subr.mxu0 0.0
    %2831 = vmatpush1.msra.mxu0 0.0
    %2832 = vmatprep.subr.mxu0 0.0
    %2833 = vmatpush1.msra.mxu0 0.0
    %2834 = vmatprep.subr.mxu0 0.0
    %2835 = vmatpush1.msra.mxu0 0.0
    %2836 = vmatprep.subr.mxu0 0.0
    %2837 = vmatpush1.msra.mxu0 0.0
    %2838 = vmatprep.subr.mxu0 0.0
    %2839 = vmatpush1.msra.mxu0 0.0
    %2840 = vmatprep.subr.mxu0 0.0
    %2841 = vmatpush1.msra.mxu0 0.0
    %2842 = vmatprep.subr.mxu0 0.0
    %2843 = vmatpush1.msra.mxu0 0.0
    %2844 = vmatprep.subr.mxu0 0.0
    %2845 = vmatpush1.msra.mxu0 0.0
    %2846 = vmatprep.subr.mxu0 0.0
    %2847 = vmatpush1.msra.mxu0 0.0
    %2848 = vmatprep.subr.mxu0 0.0
    %2849 = vmatpush1.msra.mxu0 0.0
    %2850 = vmatprep.subr.mxu0 0.0
    %2851 = vmatpush1.msra.mxu0 0.0
    %2852 = vmatprep.subr.mxu0 0.0
    %2853 = vmatpush1.msra.mxu0 0.0
    %2854 = vmatprep.subr.mxu0 0.0
    %2855 = vmatpush1.msra.mxu0 0.0
    %2856 = vmatprep.subr.mxu0 0.0
    %2857 = vmatpush1.msra.mxu0 0.0
    %2858 = vmatprep.subr.mxu0 0.0
    %2859 = vmatpush1.msra.mxu0 0.0
    %2860 = vmatprep.subr.mxu0 0.0
    %2861 = vmatpush1.msra.mxu0 0.0
    %2862 = vmatprep.subr.mxu0 0.0
    %2863 = vmatpush1.msra.mxu0 0.0
    %2864 = vmatprep.subr.mxu0 0.0
    %2865 = vmatpush1.msra.mxu0 0.0
    %2866 = vmatprep.subr.mxu0 0.0
    %2867 = vmatpush1.msra.mxu0 0.0
    %2868 = vmatprep.subr.mxu0 0.0
    %2869 = vmatpush1.msra.mxu0 0.0
    %2870 = vmatprep.mubr.f32.mxu0 0.0
    %2871 = vmatmul.mubr.f32.gmra.mrb[0].mxu0 %v2804
    %v2872 = vpop.f32.mrb[0].mxu0
    %v2873 = vadd.f32 0.0, %v2872
    %v2874 = vpop.f32.mrb[0].mxu0
    %2875 = vdwg.mxu0
    %2876 = vrot.lane.b32.xlu0 %v1932, 40
    %v2877 = vpop.permute.xlu0 %2876
    %v2880 = vsel %vm220, %v2643, 0
    %2882 = vmatprep.subr.mxu0 0.0
    %2883 = vmatpush1.msra.mxu0 %v2877
    %2884 = vmatprep.subr.mxu0 0.0
    %2885 = vmatpush1.msra.mxu0 0.0
    %2886 = vmatprep.subr.mxu0 0.0
    %2887 = vmatpush1.msra.mxu0 0.0
    %2888 = vmatprep.subr.mxu0 0.0
    %2889 = vmatpush1.msra.mxu0 0.0
    %2890 = vmatprep.subr.mxu0 0.0
    %2891 = vmatpush1.msra.mxu0 0.0
    %2892 = vmatprep.subr.mxu0 0.0
    %2893 = vmatpush1.msra.mxu0 0.0
    %2894 = vmatprep.subr.mxu0 0.0
    %2895 = vmatpush1.msra.mxu0 0.0
    %2896 = vmatprep.subr.mxu0 0.0
    %2897 = vmatpush1.msra.mxu0 0.0
    %2898 = vmatprep.subr.mxu0 0.0
    %2899 = vmatpush1.msra.mxu0 0.0
    %2900 = vmatprep.subr.mxu0 0.0
    %2901 = vmatpush1.msra.mxu0 0.0
    %2902 = vmatprep.subr.mxu0 0.0
    %2903 = vmatpush1.msra.mxu0 0.0
    %2904 = vmatprep.subr.mxu0 0.0
    %2905 = vmatpush1.msra.mxu0 0.0
    %2906 = vmatprep.subr.mxu0 0.0
    %2907 = vmatpush1.msra.mxu0 0.0
    %2908 = vmatprep.subr.mxu0 0.0
    %2909 = vmatpush1.msra.mxu0 0.0
    %2910 = vmatprep.subr.mxu0 0.0
    %2911 = vmatpush1.msra.mxu0 0.0
    %2912 = vmatprep.subr.mxu0 0.0
    %2913 = vmatpush1.msra.mxu0 0.0
    %2914 = vmatprep.subr.mxu0 0.0
    %2915 = vmatpush1.msra.mxu0 0.0
    %2916 = vmatprep.subr.mxu0 0.0
    %2917 = vmatpush1.msra.mxu0 0.0
    %2918 = vmatprep.subr.mxu0 0.0
    %2919 = vmatpush1.msra.mxu0 0.0
    %2920 = vmatprep.subr.mxu0 0.0
    %2921 = vmatpush1.msra.mxu0 0.0
    %2922 = vmatprep.subr.mxu0 0.0
    %2923 = vmatpush1.msra.mxu0 0.0
    %2924 = vmatprep.subr.mxu0 0.0
    %2925 = vmatpush1.msra.mxu0 0.0
    %2926 = vmatprep.subr.mxu0 0.0
    %2927 = vmatpush1.msra.mxu0 0.0
    %2928 = vmatprep.subr.mxu0 0.0
    %2929 = vmatpush1.msra.mxu0 0.0
    %2930 = vmatprep.subr.mxu0 0.0
    %2931 = vmatpush1.msra.mxu0 0.0
    %2932 = vmatprep.subr.mxu0 0.0
    %2933 = vmatpush1.msra.mxu0 0.0
    %2934 = vmatprep.subr.mxu0 0.0
    %2935 = vmatpush1.msra.mxu0 0.0
    %2936 = vmatprep.subr.mxu0 0.0
    %2937 = vmatpush1.msra.mxu0 0.0
    %2938 = vmatprep.subr.mxu0 0.0
    %2939 = vmatpush1.msra.mxu0 0.0
    %2940 = vmatprep.subr.mxu0 0.0
    %2941 = vmatpush1.msra.mxu0 0.0
    %2942 = vmatprep.subr.mxu0 0.0
    %2943 = vmatpush1.msra.mxu0 0.0
    %2944 = vmatprep.subr.mxu0 0.0
    %2945 = vmatpush1.msra.mxu0 0.0
    %2946 = vmatprep.mubr.f32.mxu0 0.0
    %2947 = vmatmul.mubr.f32.gmra.mrb[0].mxu0 %v2880
    %v2948 = vpop.f32.mrb[0].mxu0
    %v2949 = vadd.f32 0.0, %v2948
    %v2950 = vpop.f32.mrb[0].mxu0
    %2951 = vdwg.mxu0
    %2953 = vrot.lane.b32.xlu0 %v2797, 8
    %v2954 = vpop.permute.xlu0 %2953
    %2957 = vrot.lane.b32.xlu0 %v2873, 16
    %v2958 = vpop.permute.xlu0 %2957
    %2961 = vrot.lane.b32.xlu0 %v2949, 24
    %v2962 = vpop.permute.xlu0 %2961
    %v2964 = vsel %vm220, %v2721, %v2954
    %v2965 = vsel %vm1245, %v2964, %v2958
    %v2966 = vsel %vm1247, %v2965, %v2962
    %2967 = vrot.lane.b32.xlu0 %v1935, 64
    %v2968 = vpop.permute.xlu0 %2967
    %v2971 = vsel %vm220, %v2644, 0
    %2973 = vmatprep.subr.mxu0 0.0
    %2974 = vmatpush1.msra.mxu0 %v2968
    %2975 = vmatprep.subr.mxu0 0.0
    %2976 = vmatpush1.msra.mxu0 0.0
    %2977 = vmatprep.subr.mxu0 0.0
    %2978 = vmatpush1.msra.mxu0 0.0
    %2979 = vmatprep.subr.mxu0 0.0
    %2980 = vmatpush1.msra.mxu0 0.0
    %2981 = vmatprep.subr.mxu0 0.0
    %2982 = vmatpush1.msra.mxu0 0.0
    %2983 = vmatprep.subr.mxu0 0.0
    %2984 = vmatpush1.msra.mxu0 0.0
    %2985 = vmatprep.subr.mxu0 0.0
    %2986 = vmatpush1.msra.mxu0 0.0
    %2987 = vmatprep.subr.mxu0 0.0
    %2988 = vmatpush1.msra.mxu0 0.0
    %2989 = vmatprep.subr.mxu0 0.0
    %2990 = vmatpush1.msra.mxu0 0.0
    %2991 = vmatprep.subr.mxu0 0.0
    %2992 = vmatpush1.msra.mxu0 0.0
    %2993 = vmatprep.subr.mxu0 0.0
    %2994 = vmatpush1.msra.mxu0 0.0
    %2995 = vmatprep.subr.mxu0 0.0
    %2996 = vmatpush1.msra.mxu0 0.0
    %2997 = vmatprep.subr.mxu0 0.0
    %2998 = vmatpush1.msra.mxu0 0.0
    %2999 = vmatprep.subr.mxu0 0.0
    %3000 = vmatpush1.msra.mxu0 0.0
    %3001 = vmatprep.subr.mxu0 0.0
    %3002 = vmatpush1.msra.mxu0 0.0
    %3003 = vmatprep.subr.mxu0 0.0
    %3004 = vmatpush1.msra.mxu0 0.0
    %3005 = vmatprep.subr.mxu0 0.0
    %3006 = vmatpush1.msra.mxu0 0.0
    %3007 = vmatprep.subr.mxu0 0.0
    %3008 = vmatpush1.msra.mxu0 0.0
    %3009 = vmatprep.subr.mxu0 0.0
    %3010 = vmatpush1.msra.mxu0 0.0
    %3011 = vmatprep.subr.mxu0 0.0
    %3012 = vmatpush1.msra.mxu0 0.0
    %3013 = vmatprep.subr.mxu0 0.0
    %3014 = vmatpush1.msra.mxu0 0.0
    %3015 = vmatprep.subr.mxu0 0.0
    %3016 = vmatpush1.msra.mxu0 0.0
    %3017 = vmatprep.subr.mxu0 0.0
    %3018 = vmatpush1.msra.mxu0 0.0
    %3019 = vmatprep.subr.mxu0 0.0
    %3020 = vmatpush1.msra.mxu0 0.0
    %3021 = vmatprep.subr.mxu0 0.0
    %3022 = vmatpush1.msra.mxu0 0.0
    %3023 = vmatprep.subr.mxu0 0.0
    %3024 = vmatpush1.msra.mxu0 0.0
    %3025 = vmatprep.subr.mxu0 0.0
    %3026 = vmatpush1.msra.mxu0 0.0
    %3027 = vmatprep.subr.mxu0 0.0
    %3028 = vmatpush1.msra.mxu0 0.0
    %3029 = vmatprep.subr.mxu0 0.0
    %3030 = vmatpush1.msra.mxu0 0.0
    %3031 = vmatprep.subr.mxu0 0.0
    %3032 = vmatpush1.msra.mxu0 0.0
    %3033 = vmatprep.subr.mxu0 0.0
    %3034 = vmatpush1.msra.mxu0 0.0
    %3035 = vmatprep.subr.mxu0 0.0
    %3036 = vmatpush1.msra.mxu0 0.0
    %3037 = vmatprep.mubr.f32.mxu0 0.0
    %3038 = vmatmul.mubr.f32.gmra.mrb[0].mxu0 %v2971
    %v3039 = vpop.f32.mrb[0].mxu0
    %v3040 = vadd.f32 0.0, %v3039
    %v3041 = vpop.f32.mrb[0].mxu0
    %3042 = vdwg.mxu0
    %3043 = vrot.lane.b32.xlu0 %v1935, 56
    %v3044 = vpop.permute.xlu0 %3043
    %v3047 = vsel %vm220, %v2645, 0
    %3049 = vmatprep.subr.mxu0 0.0
    %3050 = vmatpush1.msra.mxu0 %v3044
    %3051 = vmatprep.subr.mxu0 0.0
    %3052 = vmatpush1.msra.mxu0 0.0
    %3053 = vmatprep.subr.mxu0 0.0
    %3054 = vmatpush1.msra.mxu0 0.0
    %3055 = vmatprep.subr.mxu0 0.0
    %3056 = vmatpush1.msra.mxu0 0.0
    %3057 = vmatprep.subr.mxu0 0.0
    %3058 = vmatpush1.msra.mxu0 0.0
    %3059 = vmatprep.subr.mxu0 0.0
    %3060 = vmatpush1.msra.mxu0 0.0
    %3061 = vmatprep.subr.mxu0 0.0
    %3062 = vmatpush1.msra.mxu0 0.0
    %3063 = vmatprep.subr.mxu0 0.0
    %3064 = vmatpush1.msra.mxu0 0.0
    %3065 = vmatprep.subr.mxu0 0.0
    %3066 = vmatpush1.msra.mxu0 0.0
    %3067 = vmatprep.subr.mxu0 0.0
    %3068 = vmatpush1.msra.mxu0 0.0
    %3069 = vmatprep.subr.mxu0 0.0
    %3070 = vmatpush1.msra.mxu0 0.0
    %3071 = vmatprep.subr.mxu0 0.0
    %3072 = vmatpush1.msra.mxu0 0.0
    %3073 = vmatprep.subr.mxu0 0.0
    %3074 = vmatpush1.msra.mxu0 0.0
    %3075 = vmatprep.subr.mxu0 0.0
    %3076 = vmatpush1.msra.mxu0 0.0
    %3077 = vmatprep.subr.mxu0 0.0
    %3078 = vmatpush1.msra.mxu0 0.0
    %3079 = vmatprep.subr.mxu0 0.0
    %3080 = vmatpush1.msra.mxu0 0.0
    %3081 = vmatprep.subr.mxu0 0.0
    %3082 = vmatpush1.msra.mxu0 0.0
    %3083 = vmatprep.subr.mxu0 0.0
    %3084 = vmatpush1.msra.mxu0 0.0
    %3085 = vmatprep.subr.mxu0 0.0
    %3086 = vmatpush1.msra.mxu0 0.0
    %3087 = vmatprep.subr.mxu0 0.0
    %3088 = vmatpush1.msra.mxu0 0.0
    %3089 = vmatprep.subr.mxu0 0.0
    %3090 = vmatpush1.msra.mxu0 0.0
    %3091 = vmatprep.subr.mxu0 0.0
    %3092 = vmatpush1.msra.mxu0 0.0
    %3093 = vmatprep.subr.mxu0 0.0
    %3094 = vmatpush1.msra.mxu0 0.0
    %3095 = vmatprep.subr.mxu0 0.0
    %3096 = vmatpush1.msra.mxu0 0.0
    %3097 = vmatprep.subr.mxu0 0.0
    %3098 = vmatpush1.msra.mxu0 0.0
    %3099 = vmatprep.subr.mxu0 0.0
    %3100 = vmatpush1.msra.mxu0 0.0
    %3101 = vmatprep.subr.mxu0 0.0
    %3102 = vmatpush1.msra.mxu0 0.0
    %3103 = vmatprep.subr.mxu0 0.0
    %3104 = vmatpush1.msra.mxu0 0.0
    %3105 = vmatprep.subr.mxu0 0.0
    %3106 = vmatpush1.msra.mxu0 0.0
    %3107 = vmatprep.subr.mxu0 0.0
    %3108 = vmatpush1.msra.mxu0 0.0
    %3109 = vmatprep.subr.mxu0 0.0
    %3110 = vmatpush1.msra.mxu0 0.0
    %3111 = vmatprep.subr.mxu0 0.0
    %3112 = vmatpush1.msra.mxu0 0.0
    %3113 = vmatprep.mubr.f32.mxu0 0.0
    %3114 = vmatmul.mubr.f32.gmra.mrb[0].mxu0 %v3047
    %v3115 = vpop.f32.mrb[0].mxu0
    %v3116 = vadd.f32 0.0, %v3115
    %v3117 = vpop.f32.mrb[0].mxu0
    %3118 = vdwg.mxu0
    %3119 = vrot.lane.b32.xlu0 %v1935, 48
    %v3120 = vpop.permute.xlu0 %3119
    %v3123 = vsel %vm220, %v2646, 0
    %3125 = vmatprep.subr.mxu0 0.0
    %3126 = vmatpush1.msra.mxu0 %v3120
    %3127 = vmatprep.subr.mxu0 0.0
    %3128 = vmatpush1.msra.mxu0 0.0
    %3129 = vmatprep.subr.mxu0 0.0
    %3130 = vmatpush1.msra.mxu0 0.0
    %3131 = vmatprep.subr.mxu0 0.0
    %3132 = vmatpush1.msra.mxu0 0.0
    %3133 = vmatprep.subr.mxu0 0.0
    %3134 = vmatpush1.msra.mxu0 0.0
    %3135 = vmatprep.subr.mxu0 0.0
    %3136 = vmatpush1.msra.mxu0 0.0
    %3137 = vmatprep.subr.mxu0 0.0
    %3138 = vmatpush1.msra.mxu0 0.0
    %3139 = vmatprep.subr.mxu0 0.0
    %3140 = vmatpush1.msra.mxu0 0.0
    %3141 = vmatprep.subr.mxu0 0.0
    %3142 = vmatpush1.msra.mxu0 0.0
    %3143 = vmatprep.subr.mxu0 0.0
    %3144 = vmatpush1.msra.mxu0 0.0
    %3145 = vmatprep.subr.mxu0 0.0
    %3146 = vmatpush1.msra.mxu0 0.0
    %3147 = vmatprep.subr.mxu0 0.0
    %3148 = vmatpush1.msra.mxu0 0.0
    %3149 = vmatprep.subr.mxu0 0.0
    %3150 = vmatpush1.msra.mxu0 0.0
    %3151 = vmatprep.subr.mxu0 0.0
    %3152 = vmatpush1.msra.mxu0 0.0
    %3153 = vmatprep.subr.mxu0 0.0
    %3154 = vmatpush1.msra.mxu0 0.0
    %3155 = vmatprep.subr.mxu0 0.0
    %3156 = vmatpush1.msra.mxu0 0.0
    %3157 = vmatprep.subr.mxu0 0.0
    %3158 = vmatpush1.msra.mxu0 0.0
    %3159 = vmatprep.subr.mxu0 0.0
    %3160 = vmatpush1.msra.mxu0 0.0
    %3161 = vmatprep.subr.mxu0 0.0
    %3162 = vmatpush1.msra.mxu0 0.0
    %3163 = vmatprep.subr.mxu0 0.0
    %3164 = vmatpush1.msra.mxu0 0.0
    %3165 = vmatprep.subr.mxu0 0.0
    %3166 = vmatpush1.msra.mxu0 0.0
    %3167 = vmatprep.subr.mxu0 0.0
    %3168 = vmatpush1.msra.mxu0 0.0
    %3169 = vmatprep.subr.mxu0 0.0
    %3170 = vmatpush1.msra.mxu0 0.0
    %3171 = vmatprep.subr.mxu0 0.0
    %3172 = vmatpush1.msra.mxu0 0.0
    %3173 = vmatprep.subr.mxu0 0.0
    %3174 = vmatpush1.msra.mxu0 0.0
    %3175 = vmatprep.subr.mxu0 0.0
    %3176 = vmatpush1.msra.mxu0 0.0
    %3177 = vmatprep.subr.mxu0 0.0
    %3178 = vmatpush1.msra.mxu0 0.0
    %3179 = vmatprep.subr.mxu0 0.0
    %3180 = vmatpush1.msra.mxu0 0.0
    %3181 = vmatprep.subr.mxu0 0.0
    %3182 = vmatpush1.msra.mxu0 0.0
    %3183 = vmatprep.subr.mxu0 0.0
    %3184 = vmatpush1.msra.mxu0 0.0
    %3185 = vmatprep.subr.mxu0 0.0
    %3186 = vmatpush1.msra.mxu0 0.0
    %3187 = vmatprep.subr.mxu0 0.0
    %3188 = vmatpush1.msra.mxu0 0.0
    %3189 = vmatprep.mubr.f32.mxu0 0.0
    %3190 = vmatmul.mubr.f32.gmra.mrb[0].mxu0 %v3123
    %v3191 = vpop.f32.mrb[0].mxu0
    %v3192 = vadd.f32 0.0, %v3191
    %v3193 = vpop.f32.mrb[0].mxu0
    %3194 = vdwg.mxu0
    %3195 = vrot.lane.b32.xlu0 %v1935, 40
    %v3196 = vpop.permute.xlu0 %3195
    %v3199 = vsel %vm220, %v2647, 0
    %3201 = vmatprep.subr.mxu0 0.0
    %3202 = vmatpush1.msra.mxu0 %v3196
    %3203 = vmatprep.subr.mxu0 0.0
    %3204 = vmatpush1.msra.mxu0 0.0
    %3205 = vmatprep.subr.mxu0 0.0
    %3206 = vmatpush1.msra.mxu0 0.0
    %3207 = vmatprep.subr.mxu0 0.0
    %3208 = vmatpush1.msra.mxu0 0.0
    %3209 = vmatprep.subr.mxu0 0.0
    %3210 = vmatpush1.msra.mxu0 0.0
    %3211 = vmatprep.subr.mxu0 0.0
    %3212 = vmatpush1.msra.mxu0 0.0
    %3213 = vmatprep.subr.mxu0 0.0
    %3214 = vmatpush1.msra.mxu0 0.0
    %3215 = vmatprep.subr.mxu0 0.0
    %3216 = vmatpush1.msra.mxu0 0.0
    %3217 = vmatprep.subr.mxu0 0.0
    %3218 = vmatpush1.msra.mxu0 0.0
    %3219 = vmatprep.subr.mxu0 0.0
    %3220 = vmatpush1.msra.mxu0 0.0
    %3221 = vmatprep.subr.mxu0 0.0
    %3222 = vmatpush1.msra.mxu0 0.0
    %3223 = vmatprep.subr.mxu0 0.0
    %3224 = vmatpush1.msra.mxu0 0.0
    %3225 = vmatprep.subr.mxu0 0.0
    %3226 = vmatpush1.msra.mxu0 0.0
    %3227 = vmatprep.subr.mxu0 0.0
    %3228 = vmatpush1.msra.mxu0 0.0
    %3229 = vmatprep.subr.mxu0 0.0
    %3230 = vmatpush1.msra.mxu0 0.0
    %3231 = vmatprep.subr.mxu0 0.0
    %3232 = vmatpush1.msra.mxu0 0.0
    %3233 = vmatprep.subr.mxu0 0.0
    %3234 = vmatpush1.msra.mxu0 0.0
    %3235 = vmatprep.subr.mxu0 0.0
    %3236 = vmatpush1.msra.mxu0 0.0
    %3237 = vmatprep.subr.mxu0 0.0
    %3238 = vmatpush1.msra.mxu0 0.0
    %3239 = vmatprep.subr.mxu0 0.0
    %3240 = vmatpush1.msra.mxu0 0.0
    %3241 = vmatprep.subr.mxu0 0.0
    %3242 = vmatpush1.msra.mxu0 0.0
    %3243 = vmatprep.subr.mxu0 0.0
    %3244 = vmatpush1.msra.mxu0 0.0
    %3245 = vmatprep.subr.mxu0 0.0
    %3246 = vmatpush1.msra.mxu0 0.0
    %3247 = vmatprep.subr.mxu0 0.0
    %3248 = vmatpush1.msra.mxu0 0.0
    %3249 = vmatprep.subr.mxu0 0.0
    %3250 = vmatpush1.msra.mxu0 0.0
    %3251 = vmatprep.subr.mxu0 0.0
    %3252 = vmatpush1.msra.mxu0 0.0
    %3253 = vmatprep.subr.mxu0 0.0
    %3254 = vmatpush1.msra.mxu0 0.0
    %3255 = vmatprep.subr.mxu0 0.0
    %3256 = vmatpush1.msra.mxu0 0.0
    %3257 = vmatprep.subr.mxu0 0.0
    %3258 = vmatpush1.msra.mxu0 0.0
    %3259 = vmatprep.subr.mxu0 0.0
    %3260 = vmatpush1.msra.mxu0 0.0
    %3261 = vmatprep.subr.mxu0 0.0
    %3262 = vmatpush1.msra.mxu0 0.0
    %3263 = vmatprep.subr.mxu0 0.0
    %3264 = vmatpush1.msra.mxu0 0.0
    %3265 = vmatprep.mubr.f32.mxu0 0.0
    %3266 = vmatmul.mubr.f32.gmra.mrb[0].mxu0 %v3199
    %v3267 = vpop.f32.mrb[0].mxu0
    %v3268 = vadd.f32 0.0, %v3267
    %v3269 = vpop.f32.mrb[0].mxu0
    %3270 = vdwg.mxu0
    %3272 = vrot.lane.b32.xlu0 %v3116, 8
    %v3273 = vpop.permute.xlu0 %3272
    %3276 = vrot.lane.b32.xlu0 %v3192, 16
    %v3277 = vpop.permute.xlu0 %3276
    %3280 = vrot.lane.b32.xlu0 %v3268, 24
    %v3281 = vpop.permute.xlu0 %3280
    %v3283 = vsel %vm220, %v3040, %v3273
    %v3284 = vsel %vm1245, %v3283, %v3277
    %v3285 = vsel %vm1247, %v3284, %v3281
    %v3286 = vpack.c.bf16 %v3285, %v2966
    %s3287 = scalar_lea.vmem %s7, 16
    %v3288 = vld [vmem:[%s3287] sm:$0xf]
    %v3289 = vld [vmem:[%s3287 + $0x4] sm:$0xf]
    %v3290 = vld [vmem:[%s3287 + $0x8] sm:$0xf]
    %v3291 = vld [vmem:[%s3287 + $0xc] sm:$0xf]
    %v3292 = vlaneseq
    %v3293 = vshrl.u32 %v3292, 7
    %v3294 = vsub.s32 0, %v3293
    %v3295 = vrot.slane %v1867, %v3294
    %v3300 = vunpack.c.l.b16 %v3288
    %v3301 = vunpack.c.l.b16 %v3289
    %v3302 = vunpack.c.l.b16 %v3290
    %v3303 = vunpack.c.l.b16 %v3291
    %v3304 = vpack.c.b16 %v3301, %v3300
    %v3305 = vpack.c.b16 %v3303, %v3302
    %v3309 = vsel %vm172, %v3286, 0
    %3311 = vmatprep.subr.bf16.mxu0 0
    %3312 = vmatpush1.bf16.msra.mxu0 %v3304
    %3313 = vmatprep.subr.bf16.mxu0 0
    %3314 = vmatpush1.bf16.msra.mxu0 %v3305
    %3315 = vmatprep.subr.bf16.mxu0 0
    %3316 = vmatpush1.bf16.msra.mxu0 0
    %3317 = vmatprep.subr.bf16.mxu0 0
    %3318 = vmatpush1.bf16.msra.mxu0 0
    %3319 = vmatprep.subr.bf16.mxu0 0
    %3320 = vmatpush1.bf16.msra.mxu0 0
    %3321 = vmatprep.subr.bf16.mxu0 0
    %3322 = vmatpush1.bf16.msra.mxu0 0
    %3323 = vmatprep.subr.bf16.mxu0 0
    %3324 = vmatpush1.bf16.msra.mxu0 0
    %3325 = vmatprep.subr.bf16.mxu0 0
    %3326 = vmatpush1.bf16.msra.mxu0 0
    %3327 = vmatprep.subr.bf16.mxu0 0
    %3328 = vmatpush1.bf16.msra.mxu0 0
    %3329 = vmatprep.subr.bf16.mxu0 0
    %3330 = vmatpush1.bf16.msra.mxu0 0
    %3331 = vmatprep.subr.bf16.mxu0 0
    %3332 = vmatpush1.bf16.msra.mxu0 0
    %3333 = vmatprep.subr.bf16.mxu0 0
    %3334 = vmatpush1.bf16.msra.mxu0 0
    %3335 = vmatprep.subr.bf16.mxu0 0
    %3336 = vmatpush1.bf16.msra.mxu0 0
    %3337 = vmatprep.subr.bf16.mxu0 0
    %3338 = vmatpush1.bf16.msra.mxu0 0
    %3339 = vmatprep.subr.bf16.mxu0 0
    %3340 = vmatpush1.bf16.msra.mxu0 0
    %3341 = vmatprep.subr.bf16.mxu0 0
    %3342 = vmatpush1.bf16.msra.mxu0 0
    %3343 = vmatprep.mubr.bf16.mxu0 0
    %3344 = vmatmul.mubr.bf16.gmra.mrb[0].mxu0 %v3309
    %v3345 = vpop.f32.mrb[0].mxu0
    %v3346 = vadd.f32 %v3295, %v3345
    %v3347 = vpop.f32.mrb[0].mxu0
    %v3348 = vpop.f32.mrb[0].mxu0
    %v3349 = vadd.f32 %v3295, %v3348
    %v3350 = vpop.f32.mrb[0].mxu0
    %3351 = vdwg.mxu0
    %v3352 = vadd.f32 %v1864, %v3346
    %v3353 = vadd.f32 %v1865, %v3349
    %v3354 = vsel %vm172, %v3352, 0.0
    %3355 = vadd.xlane.f32.xlu0 %v3354
    %v3356 = vpop.xlane.xlu0 %3355
    %v3357 = vsel %vm172, %v3353, 0.0
    %3358 = vadd.xlane.f32.xlu0 %v3357
    %v3359 = vpop.xlane.xlu0 %3358
    %v3360 = vmul.f32 %v3356, %v1641
    %v3361 = vmul.f32 %v3359, %v1641
    %v3362 = vsub.f32 %v3352, %v3360
    %v3363 = vsub.f32 %v3353, %v3361
    %v3364 = vmul.f32 %v3362, %v3362
    %v3365 = vmul.f32 %v3363, %v3363
    %v3366 = vsel %vm172, %v3364, 0.0
    %3367 = vadd.xlane.f32.xlu0 %v3366
    %v3368 = vpop.xlane.xlu0 %3367
    %v3369 = vsel %vm172, %v3365, 0.0
    %3370 = vadd.xlane.f32.xlu0 %v3369
    %v3371 = vpop.xlane.xlu0 %3370
    %v3372 = vmul.f32 %v3368, %v1641
    %v3373 = vmul.f32 %v3371, %v1641
    %v3374 = vadd.f32 %v3372, 1e-05
    %v3375 = vadd.f32 %v3373, 1e-05
    %v3376 = vrsqrt.pop %v3374
    %v3377 = vrsqrt.pop %v3375
    %v3378 = vmul.f32 %v3362, %v3376
    %v3379 = vmul.f32 %v3363, %v3377
    %v3380 = vlaneseq
    %v3381 = vshrl.u32 %v3380, 7
    %v3382 = vsub.s32 1, %v3381
    %v3383 = vrot.slane %v1867, %v3382
    %v3384 = vmul.f32 %v3378, %v3383
    %v3385 = vmul.f32 %v3379, %v3383
    %v3386 = vlaneseq
    %v3387 = vshrl.u32 %v3386, 7
    %v3388 = vsub.s32 2, %v3387
    %v3389 = vrot.slane %v1867, %v3388
    %v3390 = vadd.f32 %v3384, %v3389
    %v3391 = vadd.f32 %v3385, %v3389
    %v3392 = vpack.c.bf16 %v3391, %v3390
    %s3393 = scalar_lea.vmem %s8, 16
    %v3394 = vld [vmem:[%s3393] sm:$0xf]
    %v3395 = vld [vmem:[%s3393 + $0x4] sm:$0xf]
    %v3396 = vld [vmem:[%s3393 + $0x8] sm:$0xf]
    %v3397 = vld [vmem:[%s3393 + $0xc] sm:$0xf]
    %s3398 = scalar_lea.vmem %s9, 1
    %v3399 = vld [vmem:[%s3398] sm:$0x1]
    %v3401 = vlaneseq
    %v3402 = vshrl.u32 %v3401, 7
    %v3403 = vsub.s32 0, %v3402
    %v3404 = vrot.slane %v3399, %v3403
    %v3410 = vunpack.c.l.b16 %v3394
    %v3411 = vunpack.c.l.b16 %v3395
    %v3412 = vunpack.c.l.b16 %v3396
    %v3413 = vunpack.c.l.b16 %v3397
    %v3414 = vpack.c.b16 %v3411, %v3410
    %v3415 = vpack.c.b16 %v3413, %v3412
    %v3419 = vsel %vm172, %v3392, 0
    %3421 = vmatprep.subr.bf16.mxu0 0
    %3422 = vmatpush1.bf16.msra.mxu0 %v3414
    %3423 = vmatprep.subr.bf16.mxu0 0
    %3424 = vmatpush1.bf16.msra.mxu0 %v3415
    %3425 = vmatprep.subr.bf16.mxu0 0
    %3426 = vmatpush1.bf16.msra.mxu0 0
    %3427 = vmatprep.subr.bf16.mxu0 0
    %3428 = vmatpush1.bf16.msra.mxu0 0
    %3429 = vmatprep.subr.bf16.mxu0 0
    %3430 = vmatpush1.bf16.msra.mxu0 0
    %3431 = vmatprep.subr.bf16.mxu0 0
    %3432 = vmatpush1.bf16.msra.mxu0 0
    %3433 = vmatprep.subr.bf16.mxu0 0
    %3434 = vmatpush1.bf16.msra.mxu0 0
    %3435 = vmatprep.subr.bf16.mxu0 0
    %3436 = vmatpush1.bf16.msra.mxu0 0
    %3437 = vmatprep.subr.bf16.mxu0 0
    %3438 = vmatpush1.bf16.msra.mxu0 0
    %3439 = vmatprep.subr.bf16.mxu0 0
    %3440 = vmatpush1.bf16.msra.mxu0 0
    %3441 = vmatprep.subr.bf16.mxu0 0
    %3442 = vmatpush1.bf16.msra.mxu0 0
    %3443 = vmatprep.subr.bf16.mxu0 0
    %3444 = vmatpush1.bf16.msra.mxu0 0
    %3445 = vmatprep.subr.bf16.mxu0 0
    %3446 = vmatpush1.bf16.msra.mxu0 0
    %3447 = vmatprep.subr.bf16.mxu0 0
    %3448 = vmatpush1.bf16.msra.mxu0 0
    %3449 = vmatprep.subr.bf16.mxu0 0
    %3450 = vmatpush1.bf16.msra.mxu0 0
    %3451 = vmatprep.subr.bf16.mxu0 0
    %3452 = vmatpush1.bf16.msra.mxu0 0
    %3453 = vmatprep.mubr.bf16.mxu0 0
    %3454 = vmatmul.mubr.bf16.gmra.mrb[0].mxu0 %v3419
    %v3455 = vpop.f32.mrb[0].mxu0
    %v3456 = vadd.f32 %v3404, %v3455
    %v3457 = vpop.f32.mrb[0].mxu0
    %v3458 = vpop.f32.mrb[0].mxu0
    %v3459 = vadd.f32 %v3404, %v3458
    %v3460 = vpop.f32.mrb[0].mxu0
    %3461 = vdwg.mxu0
    %v3462 = vmax.f32 %v3456, 0.0
    %v3463 = vmax.f32 %v3459, 0.0
    %v3464 = vpack.c.bf16 %v3463, %v3462
    %s3465 = scalar_lea.vmem %s10, 32
    %v3466 = vld [vmem:[%s3465] sm:$0xf]
    %v3467 = vld [vmem:[%s3465 + $0x4] sm:$0xf]
    %v3468 = vld [vmem:[%s3465 + $0x8] sm:$0xf]
    %v3469 = vld [vmem:[%s3465 + $0xc] sm:$0xf]
    %v3470 = vld [vmem:[%s3465 + $0x10] sm:$0xf]
    %v3471 = vld [vmem:[%s3465 + $0x14] sm:$0xf]
    %v3472 = vld [vmem:[%s3465 + $0x18] sm:$0xf]
    %v3473 = vld [vmem:[%s3465 + $0x1c] sm:$0xf]
    %v3474 = vlaneseq
    %v3475 = vshrl.u32 %v3474, 7
    %v3476 = vsub.s32 3, %v3475
    %v3477 = vrot.slane %v1867, %v3476
    %v3486 = vunpack.c.l.b16 %v3466
    %v3487 = vunpack.c.l.b16 %v3467
    %v3488 = vunpack.c.l.b16 %v3468
    %v3489 = vunpack.c.l.b16 %v3469
    %v3490 = vunpack.c.l.b16 %v3470
    %v3491 = vunpack.c.l.b16 %v3471
    %v3492 = vunpack.c.l.b16 %v3472
    %v3493 = vunpack.c.l.b16 %v3473
    %v3494 = vpack.c.b16 %v3487, %v3486
    %v3495 = vpack.c.b16 %v3489, %v3488
    %v3496 = vpack.c.b16 %v3491, %v3490
    %v3497 = vpack.c.b16 %v3493, %v3492
    %v3503 = vsel %vm1781, %v3464, 0
    %3505 = vmatprep.subr.bf16.mxu0 0
    %3506 = vmatpush1.bf16.msra.mxu0 %v3494
    %3507 = vmatprep.subr.bf16.mxu0 0
    %3508 = vmatpush1.bf16.msra.mxu0 %v3495
    %3509 = vmatprep.subr.bf16.mxu0 0
    %3510 = vmatpush1.bf16.msra.mxu0 %v3496
    %3511 = vmatprep.subr.bf16.mxu0 0
    %3512 = vmatpush1.bf16.msra.mxu0 %v3497
    %3513 = vmatprep.subr.bf16.mxu0 0
    %3514 = vmatpush1.bf16.msra.mxu0 0
    %3515 = vmatprep.subr.bf16.mxu0 0
    %3516 = vmatpush1.bf16.msra.mxu0 0
    %3517 = vmatprep.subr.bf16.mxu0 0
    %3518 = vmatpush1.bf16.msra.mxu0 0
    %3519 = vmatprep.subr.bf16.mxu0 0
    %3520 = vmatpush1.bf16.msra.mxu0 0
    %3521 = vmatprep.subr.bf16.mxu0 0
    %3522 = vmatpush1.bf16.msra.mxu0 0
    %3523 = vmatprep.subr.bf16.mxu0 0
    %3524 = vmatpush1.bf16.msra.mxu0 0
    %3525 = vmatprep.subr.bf16.mxu0 0
    %3526 = vmatpush1.bf16.msra.mxu0 0
    %3527 = vmatprep.subr.bf16.mxu0 0
    %3528 = vmatpush1.bf16.msra.mxu0 0
    %3529 = vmatprep.subr.bf16.mxu0 0
    %3530 = vmatpush1.bf16.msra.mxu0 0
    %3531 = vmatprep.subr.bf16.mxu0 0
    %3532 = vmatpush1.bf16.msra.mxu0 0
    %3533 = vmatprep.subr.bf16.mxu0 0
    %3534 = vmatpush1.bf16.msra.mxu0 0
    %3535 = vmatprep.subr.bf16.mxu0 0
    %3536 = vmatpush1.bf16.msra.mxu0 0
    %3537 = vmatprep.mubr.bf16.mxu0 0
    %3538 = vmatmul.mubr.bf16.gmra.mrb[0].mxu0 %v3503
    %v3539 = vpop.f32.mrb[0].mxu0
    %v3540 = vadd.f32 %v3477, %v3539
    %v3541 = vpop.f32.mrb[0].mxu0
    %v3542 = vpop.f32.mrb[0].mxu0
    %v3543 = vadd.f32 %v3477, %v3542
    %v3544 = vpop.f32.mrb[0].mxu0
    %3545 = vdwg.mxu0
    %v3546 = vadd.f32 %v3390, %v3540
    %v3547 = vadd.f32 %v3391, %v3543
    %v3548 = vsel %vm172, %v3546, 0.0
    %3549 = vadd.xlane.f32.xlu0 %v3548
    %v3550 = vpop.xlane.xlu0 %3549
    %v3551 = vsel %vm172, %v3547, 0.0
    %3552 = vadd.xlane.f32.xlu0 %v3551
    %v3553 = vpop.xlane.xlu0 %3552
    %v3554 = vmul.f32 %v3550, %v1641
    %v3555 = vmul.f32 %v3553, %v1641
    %v3556 = vsub.f32 %v3546, %v3554
    %v3557 = vsub.f32 %v3547, %v3555
    %v3558 = vmul.f32 %v3556, %v3556
    %v3559 = vmul.f32 %v3557, %v3557
    %v3560 = vsel %vm172, %v3558, 0.0
    %3561 = vadd.xlane.f32.xlu0 %v3560
    %v3562 = vpop.xlane.xlu0 %3561
    %v3563 = vsel %vm172, %v3559, 0.0
    %3564 = vadd.xlane.f32.xlu0 %v3563
    %v3565 = vpop.xlane.xlu0 %3564
    %v3566 = vmul.f32 %v3562, %v1641
    %v3567 = vmul.f32 %v3565, %v1641
    %v3568 = vadd.f32 %v3566, 1e-05
    %v3569 = vadd.f32 %v3567, 1e-05
    %v3570 = vrsqrt.pop %v3568
    %v3571 = vrsqrt.pop %v3569
    %v3572 = vmul.f32 %v3556, %v3570
    %v3573 = vmul.f32 %v3557, %v3571
    %v3574 = vlaneseq
    %v3575 = vshrl.u32 %v3574, 7
    %v3576 = vsub.s32 4, %v3575
    %v3577 = vrot.slane %v1867, %v3576
    %v3578 = vmul.f32 %v3572, %v3577
    %v3579 = vmul.f32 %v3573, %v3577
    %v3580 = vlaneseq
    %v3581 = vshrl.u32 %v3580, 7
    %v3582 = vsub.s32 5, %v3581
    %v3583 = vrot.slane %v1867, %v3582
    %v3584 = vadd.f32 %v3578, %v3583
    %v3585 = vadd.f32 %v3579, %v3583
    %v3586 = vpack.c.bf16 %v3585, %v3584
    %v3587 = vld [vmem:[%s12] sm:$0xf]
    %v3588 = vld [vmem:[%s12 + $0x4] sm:$0xf]
    %v3589 = vld [vmem:[%s12 + $0x8] sm:$0xf]
    %v3590 = vld [vmem:[%s12 + $0xc] sm:$0xf]
    %v3591 = vld [vmem:[%s13] sm:$0x1]
    %v3593 = vlaneseq
    %v3594 = vshrl.u32 %v3593, 7
    %v3595 = vsub.s32 0, %v3594
    %v3596 = vrot.slane %v3591, %v3595
    %v3602 = vunpack.c.l.b16 %v3587
    %v3603 = vunpack.c.l.b16 %v3588
    %v3604 = vunpack.c.l.b16 %v3589
    %v3605 = vunpack.c.l.b16 %v3590
    %v3606 = vpack.c.b16 %v3603, %v3602
    %v3607 = vpack.c.b16 %v3605, %v3604
    %v3611 = vsel %vm172, %v3586, 0
    %3613 = vmatprep.subr.bf16.mxu0 0
    %3614 = vmatpush1.bf16.msra.mxu0 %v3606
    %3615 = vmatprep.subr.bf16.mxu0 0
    %3616 = vmatpush1.bf16.msra.mxu0 %v3607
    %3617 = vmatprep.subr.bf16.mxu0 0
    %3618 = vmatpush1.bf16.msra.mxu0 0
    %3619 = vmatprep.subr.bf16.mxu0 0
    %3620 = vmatpush1.bf16.msra.mxu0 0
    %3621 = vmatprep.subr.bf16.mxu0 0
    %3622 = vmatpush1.bf16.msra.mxu0 0
    %3623 = vmatprep.subr.bf16.mxu0 0
    %3624 = vmatpush1.bf16.msra.mxu0 0
    %3625 = vmatprep.subr.bf16.mxu0 0
    %3626 = vmatpush1.bf16.msra.mxu0 0
    %3627 = vmatprep.subr.bf16.mxu0 0
    %3628 = vmatpush1.bf16.msra.mxu0 0
    %3629 = vmatprep.subr.bf16.mxu0 0
    %3630 = vmatpush1.bf16.msra.mxu0 0
    %3631 = vmatprep.subr.bf16.mxu0 0
    %3632 = vmatpush1.bf16.msra.mxu0 0
    %3633 = vmatprep.subr.bf16.mxu0 0
    %3634 = vmatpush1.bf16.msra.mxu0 0
    %3635 = vmatprep.subr.bf16.mxu0 0
    %3636 = vmatpush1.bf16.msra.mxu0 0
    %3637 = vmatprep.subr.bf16.mxu0 0
    %3638 = vmatpush1.bf16.msra.mxu0 0
    %3639 = vmatprep.subr.bf16.mxu0 0
    %3640 = vmatpush1.bf16.msra.mxu0 0
    %3641 = vmatprep.subr.bf16.mxu0 0
    %3642 = vmatpush1.bf16.msra.mxu0 0
    %3643 = vmatprep.subr.bf16.mxu0 0
    %3644 = vmatpush1.bf16.msra.mxu0 0
    %3645 = vmatprep.mubr.bf16.mxu0 0
    %3646 = vmatmul.mubr.bf16.gmra.mrb[0].mxu0 %v3611
    %v3647 = vpop.f32.mrb[0].mxu0
    %v3648 = vadd.f32 %v3596, %v3647
    %v3649 = vpop.f32.mrb[0].mxu0
    %v3650 = vpop.f32.mrb[0].mxu0
    %v3651 = vadd.f32 %v3596, %v3650
    %v3652 = vpop.f32.mrb[0].mxu0
    %3653 = vdwg.mxu0
    %3654 = vst [vmem:[#allocation2] sm:$0xff] %v3648
    %s3655 = scalar_lea.vmem [#allocation2], 8
    %3656 = vst [vmem:[%s3655] sm:$0xff] %v3651
    // Predicated region
    $region58: #{attack_transformer_forward.1} parent=1 // pred_check
      _
    $region59: #{attack_transformer_forward.1} parent=1 // pred_check_branch
      %3658 = sbr.rel (0) target = $region61
    $region60: #{attack_transformer_forward.1} parent=1 // pred_region
      %s3660 = ssub.s32 256, 256
      %3661 = vsyncadd [#allocation3], %s3660
      %s3662 = sshll.u32 [#allocation2], 4
      %s3663 = int_to_ptr.vmem [resolvable:$true] %s3662
      %3668 = dma.vmem_to_hbm [thread:$0]  %s3663, 256, %s14, [#allocation3], 128, 128, 8
    $region61: #{attack_transformer_forward.1} parent=1 // pred_fallthru
      _
    // Predicated region
    $region62: #{attack_transformer_forward.1} parent=1 // pred_check
      _
    $region63: #{attack_transformer_forward.1} parent=1 // pred_check_branch
      %3670 = sbr.rel (0) target = $region65
    $region64: #{attack_transformer_forward.1} parent=1 // pred_region
      %3671 = dma.done [#allocation3], 256
    $region65: #{attack_transformer_forward.1} parent=1 // pred_fallthru
      _
    %3672 = vsyncpa [#allocation3], 1

</llo_original>
